<compile_context>
chip_gen: v7x
topology: tpu7x:2x2x1
jax: 0.10.0
libtpu: 0.0.40
codegen_flags: <defaults>
</compile_context>

<pallas_src>
import jax
import jax.numpy as jnp
from jax import lax
from jax.experimental import pallas as pl
from jax.experimental.pallas import tpu as pltpu


# ---------------------------------------------------------------------------
# Fused kernel: Conv3d(3x3x3, pad=1) + bias + ReLU + global-avg-pool + Linear
# One grid step == one batch element.
# ---------------------------------------------------------------------------
def _make_fused_kernel(T, H, W, C, hidden, num_classes):
    inv_S = 1.0 / float(T * H * W)

    def kernel(xp_ref, w_ref, cb_ref, hw_ref, hb_ref, out_ref):
        # xp_ref : (T+2, H+2, W+2, C)  bf16  zero-padded, channels-last, 1 batch
        # w_ref  : (27, C, hidden)     bf16  tap-major conv weight
        # cb_ref : (1, hidden)         f32   conv bias
        # hw_ref : (hidden, classes)   f32   head weight
        # hb_ref : (1, classes)        f32   head bias
        # out_ref: (1, classes)        f32   logits for this batch element

        def t_body(t, pooled):
            # Load the three temporal planes once per output t-slice; widen to
            # f32 so the (H, W, C) -> (H*W, C) collapse stays sublane-aligned.
            planes = [xp_ref[t + kt].astype(jnp.float32) for kt in range(3)]
            acc = jnp.zeros((H * W, hidden), dtype=jnp.float32)
            for kt in range(3):
                p = planes[kt]                                    # (H+2, W+2, C)
                for kh in range(3):
                    for kw in range(3):
                        tap = p[kh:kh + H, kw:kw + W, :]          # (H, W, C)
                        lhs = tap.reshape(H * W, C).astype(jnp.bfloat16)
                        wt = w_ref[kt * 9 + kh * 3 + kw]          # (C, hidden)
                        acc = acc + jnp.dot(
                            lhs, wt, preferred_element_type=jnp.float32)
            feat = jnp.maximum(acc + cb_ref[...], 0.0)            # (H*W, hidden)
            # Partial global-average-pool: accumulate the row sum in f32.
            return pooled + jnp.sum(feat, axis=0, keepdims=True)  # (1, hidden)

        pooled = lax.fori_loop(0, T, t_body,
                               jnp.zeros((1, hidden), dtype=jnp.float32))
        pooled = pooled * inv_S                                   # mean over (T,H,W)

        # Tiny classification head, fused so `pooled` never touches HBM.
        logits = jnp.dot(pooled, hw_ref[...],
                         preferred_element_type=jnp.float32) + hb_ref[...]
        out_ref[...] = logits.astype(out_ref.dtype)

    return kernel


# ---------------------------------------------------------------------------
# Wrapper = BaseVideoModel.forward
# ---------------------------------------------------------------------------
@jax.jit
def base_video_model_forward(x, conv_w, conv_b, head_w, head_b):
    B, C, T, H, W = x.shape
    hidden = conv_w.shape[0]
    num_classes = head_w.shape[1]
    Hp, Wp = H + 2, W + 2

    # Channels-last, zero-padded (pad=1 on T/H/W), bf16 activations in HBM.
    xp = jnp.transpose(x, (0, 2, 3, 4, 1))                 # (B, T, H, W, C)
    xp = jnp.pad(xp, ((0, 0), (1, 1), (1, 1), (1, 1), (0, 0)))
    xp = xp.astype(jnp.bfloat16)                           # (B, T+2, Hp, Wp, C)

    # Conv weight -> (27, C, hidden), tap-major (kt, kh, kw), bf16.
    w_taps = jnp.transpose(conv_w, (2, 3, 4, 1, 0)).reshape(27, C, hidden)
    w_taps = w_taps.astype(jnp.bfloat16)

    cb = conv_b.reshape(1, hidden).astype(jnp.float32)
    hw = head_w.astype(jnp.float32)
    hb = head_b.reshape(1, num_classes).astype(jnp.float32)

    # VMEM budget: per-batch input block is double-buffered; weights/biases and
    # the (1, classes) output are tiny.  Cap at 32 MiB so the same setting is
    # valid on v5e/v6e (128 MiB VMEM) and v7x (64 MiB VMEM, 32 MiB scoped).
    xp_block_bytes = (T + 2) * Hp * Wp * C * 2
    vmem_limit = int(min(32 * 1024 * 1024,
                         max(16 * 1024 * 1024, 4 * xp_block_bytes + 4 * 1024 * 1024)))

    kernel = _make_fused_kernel(T, H, W, C, hidden, num_classes)

    logits3 = pl.pallas_call(
        kernel,
        out_shape=jax.ShapeDtypeStruct((B, 1, num_classes), jnp.float32),
        grid=(B,),
        in_specs=[
            # Whole padded volume of one batch element (read exactly once).
            pl.BlockSpec((None, T + 2, Hp, Wp, C), lambda b: (b, 0, 0, 0, 0)),
            pl.BlockSpec((27, C, hidden), lambda b: (0, 0, 0)),
            pl.BlockSpec((1, hidden), lambda b: (0, 0)),
            pl.BlockSpec((hidden, num_classes), lambda b: (0, 0)),
            pl.BlockSpec((1, num_classes), lambda b: (0, 0)),
        ],
        out_specs=pl.BlockSpec((None, 1, num_classes), lambda b: (b, 0, 0)),
        compiler_params=pltpu.CompilerParams(
            dimension_semantics=("parallel",),   # v7x: shard batch across 2 TCs
            vmem_limit_bytes=vmem_limit,
        ),
    )(xp, w_taps, cb, hw, hb)

    return logits3.reshape(B, num_classes)


# ---------------------------------------------------------------------------
# Pure-JAX reference (test-only; the kernel never materializes this im2col).
# ---------------------------------------------------------------------------
def im2col_3x3x3(x):
    """x: (B, C, T, H, W) -> (B*T*H*W, C*27) patches in (c, kt, kh, kw) order."""
    B, C, T, H, W = x.shape
    xp = jnp.pad(x, ((0, 0), (0, 0), (1, 1), (1, 1), (1, 1)))
    taps = []
    for kt in range(3):
        for kh in range(3):
            for kw in range(3):
                taps.append(xp[:, :, kt:kt + T, kh:kh + H, kw:kw + W])
    taps = jnp.stack(taps, axis=0)                    # (27, B, C, T, H, W)
    taps = jnp.transpose(taps, (1, 3, 4, 5, 2, 0))    # (B, T, H, W, C, 27)
    return taps.reshape(B * T * H * W, C * 27)


def reference_forward(x, conv_w, conv_b, head_w, head_b):
    """Same math as the kernel: bf16-rounded activations/weights, f32 accumulate."""
    B, C, T, H, W = x.shape
    hidden = conv_w.shape[0]
    xr = x.astype(jnp.bfloat16).astype(jnp.float32)
    wr = conv_w.astype(jnp.bfloat16).astype(jnp.float32)
    patches = im2col_3x3x3(xr)
    feats = jnp.maximum(
        jnp.dot(patches, wr.reshape(hidden, -1).T,
                precision=jax.lax.Precision.HIGHEST) + conv_b, 0.0)
    pooled = feats.reshape(B, T * H * W, hidden).mean(axis=1)
    return jnp.dot(pooled, head_w, precision=jax.lax.Precision.HIGHEST) + head_b


if __name__ == "__main__":
    # Small deterministic config (W, H multiples of 8 keep layouts lane/sublane
    # friendly; arbitrary B and T are supported — no N % tile restriction).
    B, C, T, H, W = 2, 3, 4, 8, 8
    hidden, num_classes = 32, 10

    key = jax.random.PRNGKey(0)
    k_x, k_cw, k_cb, k_hw, k_hb = jax.random.split(key, 5)

    x = jax.random.normal(k_x, (B, C, T, H, W), dtype=jnp.float32)
    conv_w = 0.1 * jax.random.normal(k_cw, (hidden, C, 3, 3, 3), dtype=jnp.float32)
    conv_b = 0.1 * jax.random.normal(k_cb, (hidden,), dtype=jnp.float32)
    head_w = 0.1 * jax.random.normal(k_hw, (hidden, num_classes), dtype=jnp.float32)
    head_b = 0.1 * jax.random.normal(k_hb, (num_classes,), dtype=jnp.float32)

    out = base_video_model_forward(x, conv_w, conv_b, head_w, head_b)
    out = jax.block_until_ready(out)

    ref = reference_forward(x, conv_w, conv_b, head_w, head_b)
    assert out.shape == (B, num_classes)
    assert jnp.allclose(out, ref, atol=5e-3, rtol=5e-3), (
        "Pallas output mismatch: max abs err "
        f"{jnp.max(jnp.abs(out - ref))}")

    # TODO(synk): BN.FREEZE / train-mode toggling has no inference-time effect;
    # not represented in the kernel.
    print("KERNEL_OK")
</pallas_src>

<mosaic_0001>
module attributes {stable_mosaic.version = 11 : i64} {
  func.func @kernel(%arg0: i32, %arg1: memref<1x6x10x10x3xbf16, #tpu.memory_space<vmem>>, %arg2: memref<27x3x32xbf16, #tpu.memory_space<vmem>>, %arg3: memref<1x32xf32, #tpu.memory_space<vmem>>, %arg4: memref<32x10xf32, #tpu.memory_space<vmem>>, %arg5: memref<1x10xf32, #tpu.memory_space<vmem>>, %arg6: memref<1x1x10xf32, #tpu.memory_space<vmem>>) attributes {dimension_semantics = [#tpu.dimension_semantics<parallel>], iteration_bounds = array<i64: 2>, scalar_prefetch = 0 : i64, scratch_operands = 0 : i64, tpu.core_type = #tpu.core_type<tc>, window_params = [{transform_indices = @transform_0, window_bounds = array<i64: 1, 6, 10, 10, 3>}, {pipeline_mode = #tpu.pipeline_mode<synchronous>, transform_indices = @transform_1, window_bounds = array<i64: 27, 3, 32>}, {pipeline_mode = #tpu.pipeline_mode<synchronous>, transform_indices = @transform_2, window_bounds = array<i64: 1, 32>}, {pipeline_mode = #tpu.pipeline_mode<synchronous>, transform_indices = @transform_3, window_bounds = array<i64: 32, 10>}, {pipeline_mode = #tpu.pipeline_mode<synchronous>, transform_indices = @transform_4, window_bounds = array<i64: 1, 10>}, {transform_indices = @transform_5, window_bounds = array<i64: 1, 1, 10>}]} {
    %cst = arith.constant 0.000000e+00 : f32
    %0 = vector.broadcast %cst : f32 to vector<1x32xf32>
    %c0_i32 = arith.constant 0 : i32
    %c4_i32 = arith.constant 4 : i32
    %1 = arith.addi %c0_i32, %c4_i32 : i32
    %c1_i32 = arith.constant 1 : i32
    %2 = scf.for %arg7 = %c0_i32 to %1 step %c1_i32 iter_args(%arg8 = %0) -> (vector<1x32xf32>)  : i32 {
      %c0_i32_9 = arith.constant 0 : i32
      %12 = arith.addi %arg7, %c0_i32_9 : i32
      %c0_10 = arith.constant 0 : index
      %13 = arith.index_cast %12 : i32 to index
      %c0_11 = arith.constant 0 : index
      %c0_12 = arith.constant 0 : index
      %c0_13 = arith.constant 0 : index
      %14 = vector.load %arg1[%c0_10, %13, %c0_11, %c0_12, %c0_13] : memref<1x6x10x10x3xbf16, #tpu.memory_space<vmem>>, vector<1x1x10x10x3xbf16>
      %15 = vector.shape_cast %14 : vector<1x1x10x10x3xbf16> to vector<10x10x3xbf16>
      %16 = arith.extf %15 : vector<10x10x3xbf16> to vector<10x10x3xf32>
      %c1_i32_14 = arith.constant 1 : i32
      %17 = arith.addi %arg7, %c1_i32_14 : i32
      %c0_15 = arith.constant 0 : index
      %18 = arith.index_cast %17 : i32 to index
      %c0_16 = arith.constant 0 : index
      %c0_17 = arith.constant 0 : index
      %c0_18 = arith.constant 0 : index
      %19 = vector.load %arg1[%c0_15, %18, %c0_16, %c0_17, %c0_18] : memref<1x6x10x10x3xbf16, #tpu.memory_space<vmem>>, vector<1x1x10x10x3xbf16>
      %20 = vector.shape_cast %19 : vector<1x1x10x10x3xbf16> to vector<10x10x3xbf16>
      %21 = arith.extf %20 : vector<10x10x3xbf16> to vector<10x10x3xf32>
      %c2_i32 = arith.constant 2 : i32
      %22 = arith.addi %arg7, %c2_i32 : i32
      %c0_19 = arith.constant 0 : index
      %23 = arith.index_cast %22 : i32 to index
      %c0_20 = arith.constant 0 : index
      %c0_21 = arith.constant 0 : index
      %c0_22 = arith.constant 0 : index
      %24 = vector.load %arg1[%c0_19, %23, %c0_20, %c0_21, %c0_22] : memref<1x6x10x10x3xbf16, #tpu.memory_space<vmem>>, vector<1x1x10x10x3xbf16>
      %25 = vector.shape_cast %24 : vector<1x1x10x10x3xbf16> to vector<10x10x3xbf16>
      %26 = arith.extf %25 : vector<10x10x3xbf16> to vector<10x10x3xf32>
      %cst_23 = arith.constant 0.000000e+00 : f32
      %27 = vector.broadcast %cst_23 : f32 to vector<64x32xf32>
      %28 = vector.extract_strided_slice %16 {offsets = [0, 0, 0], sizes = [8, 8, 3], strides = [1, 1, 1]} : vector<10x10x3xf32> to vector<8x8x3xf32>
      %29 = vector.shape_cast %28 : vector<8x8x3xf32> to vector<64x3xf32>
      %30 = arith.truncf %29 : vector<64x3xf32> to vector<64x3xbf16>
      %c0_24 = arith.constant 0 : index
      %c0_25 = arith.constant 0 : index
      %c0_26 = arith.constant 0 : index
      %31 = vector.load %arg2[%c0_24, %c0_25, %c0_26] : memref<27x3x32xbf16, #tpu.memory_space<vmem>>, vector<1x3x32xbf16>
      %32 = vector.shape_cast %31 : vector<1x3x32xbf16> to vector<3x32xbf16>
      %cst_27 = arith.constant dense<0.000000e+00> : vector<64x32xf32>
      %33 = tpu.matmul %30, %32, %cst_27 {dimension_numbers = #tpu.dot_dimension_numbers<[1], [0], [0], [1], [0, 0, 1, 1], [], []>} : vector<64x3xbf16>, vector<3x32xbf16>, vector<64x32xf32> -> vector<64x32xf32>
      %34 = arith.addf %27, %33 : vector<64x32xf32>
      %35 = vector.extract_strided_slice %16 {offsets = [0, 1, 0], sizes = [8, 8, 3], strides = [1, 1, 1]} : vector<10x10x3xf32> to vector<8x8x3xf32>
      %36 = vector.shape_cast %35 : vector<8x8x3xf32> to vector<64x3xf32>
      %37 = arith.truncf %36 : vector<64x3xf32> to vector<64x3xbf16>
      %c1 = arith.constant 1 : index
      %c0_28 = arith.constant 0 : index
      %c0_29 = arith.constant 0 : index
      %38 = vector.load %arg2[%c1, %c0_28, %c0_29] : memref<27x3x32xbf16, #tpu.memory_space<vmem>>, vector<1x3x32xbf16>
      %39 = vector.shape_cast %38 : vector<1x3x32xbf16> to vector<3x32xbf16>
      %cst_30 = arith.constant dense<0.000000e+00> : vector<64x32xf32>
      %40 = tpu.matmul %37, %39, %cst_30 {dimension_numbers = #tpu.dot_dimension_numbers<[1], [0], [0], [1], [0, 0, 1, 1], [], []>} : vector<64x3xbf16>, vector<3x32xbf16>, vector<64x32xf32> -> vector<64x32xf32>
      %41 = arith.addf %34, %40 : vector<64x32xf32>
      %42 = vector.extract_strided_slice %16 {offsets = [0, 2, 0], sizes = [8, 8, 3], strides = [1, 1, 1]} : vector<10x10x3xf32> to vector<8x8x3xf32>
      %43 = vector.shape_cast %42 : vector<8x8x3xf32> to vector<64x3xf32>
      %44 = arith.truncf %43 : vector<64x3xf32> to vector<64x3xbf16>
      %c2 = arith.constant 2 : index
      %c0_31 = arith.constant 0 : index
      %c0_32 = arith.constant 0 : index
      %45 = vector.load %arg2[%c2, %c0_31, %c0_32] : memref<27x3x32xbf16, #tpu.memory_space<vmem>>, vector<1x3x32xbf16>
      %46 = vector.shape_cast %45 : vector<1x3x32xbf16> to vector<3x32xbf16>
      %cst_33 = arith.constant dense<0.000000e+00> : vector<64x32xf32>
      %47 = tpu.matmul %44, %46, %cst_33 {dimension_numbers = #tpu.dot_dimension_numbers<[1], [0], [0], [1], [0, 0, 1, 1], [], []>} : vector<64x3xbf16>, vector<3x32xbf16>, vector<64x32xf32> -> vector<64x32xf32>
      %48 = arith.addf %41, %47 : vector<64x32xf32>
      %49 = vector.extract_strided_slice %16 {offsets = [1, 0, 0], sizes = [8, 8, 3], strides = [1, 1, 1]} : vector<10x10x3xf32> to vector<8x8x3xf32>
      %50 = vector.shape_cast %49 : vector<8x8x3xf32> to vector<64x3xf32>
      %51 = arith.truncf %50 : vector<64x3xf32> to vector<64x3xbf16>
      %c3 = arith.constant 3 : index
      %c0_34 = arith.constant 0 : index
      %c0_35 = arith.constant 0 : index
      %52 = vector.load %arg2[%c3, %c0_34, %c0_35] : memref<27x3x32xbf16, #tpu.memory_space<vmem>>, vector<1x3x32xbf16>
      %53 = vector.shape_cast %52 : vector<1x3x32xbf16> to vector<3x32xbf16>
      %cst_36 = arith.constant dense<0.000000e+00> : vector<64x32xf32>
      %54 = tpu.matmul %51, %53, %cst_36 {dimension_numbers = #tpu.dot_dimension_numbers<[1], [0], [0], [1], [0, 0, 1, 1], [], []>} : vector<64x3xbf16>, vector<3x32xbf16>, vector<64x32xf32> -> vector<64x32xf32>
      %55 = arith.addf %48, %54 : vector<64x32xf32>
      %56 = vector.extract_strided_slice %16 {offsets = [1, 1, 0], sizes = [8, 8, 3], strides = [1, 1, 1]} : vector<10x10x3xf32> to vector<8x8x3xf32>
      %57 = vector.shape_cast %56 : vector<8x8x3xf32> to vector<64x3xf32>
      %58 = arith.truncf %57 : vector<64x3xf32> to vector<64x3xbf16>
      %c4 = arith.constant 4 : index
      %c0_37 = arith.constant 0 : index
      %c0_38 = arith.constant 0 : index
      %59 = vector.load %arg2[%c4, %c0_37, %c0_38] : memref<27x3x32xbf16, #tpu.memory_space<vmem>>, vector<1x3x32xbf16>
      %60 = vector.shape_cast %59 : vector<1x3x32xbf16> to vector<3x32xbf16>
      %cst_39 = arith.constant dense<0.000000e+00> : vector<64x32xf32>
      %61 = tpu.matmul %58, %60, %cst_39 {dimension_numbers = #tpu.dot_dimension_numbers<[1], [0], [0], [1], [0, 0, 1, 1], [], []>} : vector<64x3xbf16>, vector<3x32xbf16>, vector<64x32xf32> -> vector<64x32xf32>
      %62 = arith.addf %55, %61 : vector<64x32xf32>
      %63 = vector.extract_strided_slice %16 {offsets = [1, 2, 0], sizes = [8, 8, 3], strides = [1, 1, 1]} : vector<10x10x3xf32> to vector<8x8x3xf32>
      %64 = vector.shape_cast %63 : vector<8x8x3xf32> to vector<64x3xf32>
      %65 = arith.truncf %64 : vector<64x3xf32> to vector<64x3xbf16>
      %c5 = arith.constant 5 : index
      %c0_40 = arith.constant 0 : index
      %c0_41 = arith.constant 0 : index
      %66 = vector.load %arg2[%c5, %c0_40, %c0_41] : memref<27x3x32xbf16, #tpu.memory_space<vmem>>, vector<1x3x32xbf16>
      %67 = vector.shape_cast %66 : vector<1x3x32xbf16> to vector<3x32xbf16>
      %cst_42 = arith.constant dense<0.000000e+00> : vector<64x32xf32>
      %68 = tpu.matmul %65, %67, %cst_42 {dimension_numbers = #tpu.dot_dimension_numbers<[1], [0], [0], [1], [0, 0, 1, 1], [], []>} : vector<64x3xbf16>, vector<3x32xbf16>, vector<64x32xf32> -> vector<64x32xf32>
      %69 = arith.addf %62, %68 : vector<64x32xf32>
      %70 = vector.extract_strided_slice %16 {offsets = [2, 0, 0], sizes = [8, 8, 3], strides = [1, 1, 1]} : vector<10x10x3xf32> to vector<8x8x3xf32>
      %71 = vector.shape_cast %70 : vector<8x8x3xf32> to vector<64x3xf32>
      %72 = arith.truncf %71 : vector<64x3xf32> to vector<64x3xbf16>
      %c6 = arith.constant 6 : index
      %c0_43 = arith.constant 0 : index
      %c0_44 = arith.constant 0 : index
      %73 = vector.load %arg2[%c6, %c0_43, %c0_44] : memref<27x3x32xbf16, #tpu.memory_space<vmem>>, vector<1x3x32xbf16>
      %74 = vector.shape_cast %73 : vector<1x3x32xbf16> to vector<3x32xbf16>
      %cst_45 = arith.constant dense<0.000000e+00> : vector<64x32xf32>
      %75 = tpu.matmul %72, %74, %cst_45 {dimension_numbers = #tpu.dot_dimension_numbers<[1], [0], [0], [1], [0, 0, 1, 1], [], []>} : vector<64x3xbf16>, vector<3x32xbf16>, vector<64x32xf32> -> vector<64x32xf32>
      %76 = arith.addf %69, %75 : vector<64x32xf32>
      %77 = vector.extract_strided_slice %16 {offsets = [2, 1, 0], sizes = [8, 8, 3], strides = [1, 1, 1]} : vector<10x10x3xf32> to vector<8x8x3xf32>
      %78 = vector.shape_cast %77 : vector<8x8x3xf32> to vector<64x3xf32>
      %79 = arith.truncf %78 : vector<64x3xf32> to vector<64x3xbf16>
      %c7 = arith.constant 7 : index
      %c0_46 = arith.constant 0 : index
      %c0_47 = arith.constant 0 : index
      %80 = vector.load %arg2[%c7, %c0_46, %c0_47] : memref<27x3x32xbf16, #tpu.memory_space<vmem>>, vector<1x3x32xbf16>
      %81 = vector.shape_cast %80 : vector<1x3x32xbf16> to vector<3x32xbf16>
      %cst_48 = arith.constant dense<0.000000e+00> : vector<64x32xf32>
      %82 = tpu.matmul %79, %81, %cst_48 {dimension_numbers = #tpu.dot_dimension_numbers<[1], [0], [0], [1], [0, 0, 1, 1], [], []>} : vector<64x3xbf16>, vector<3x32xbf16>, vector<64x32xf32> -> vector<64x32xf32>
      %83 = arith.addf %76, %82 : vector<64x32xf32>
      %84 = vector.extract_strided_slice %16 {offsets = [2, 2, 0], sizes = [8, 8, 3], strides = [1, 1, 1]} : vector<10x10x3xf32> to vector<8x8x3xf32>
      %85 = vector.shape_cast %84 : vector<8x8x3xf32> to vector<64x3xf32>
      %86 = arith.truncf %85 : vector<64x3xf32> to vector<64x3xbf16>
      %c8 = arith.constant 8 : index
      %c0_49 = arith.constant 0 : index
      %c0_50 = arith.constant 0 : index
      %87 = vector.load %arg2[%c8, %c0_49, %c0_50] : memref<27x3x32xbf16, #tpu.memory_space<vmem>>, vector<1x3x32xbf16>
      %88 = vector.shape_cast %87 : vector<1x3x32xbf16> to vector<3x32xbf16>
      %cst_51 = arith.constant dense<0.000000e+00> : vector<64x32xf32>
      %89 = tpu.matmul %86, %88, %cst_51 {dimension_numbers = #tpu.dot_dimension_numbers<[1], [0], [0], [1], [0, 0, 1, 1], [], []>} : vector<64x3xbf16>, vector<3x32xbf16>, vector<64x32xf32> -> vector<64x32xf32>
      %90 = arith.addf %83, %89 : vector<64x32xf32>
      %91 = vector.extract_strided_slice %21 {offsets = [0, 0, 0], sizes = [8, 8, 3], strides = [1, 1, 1]} : vector<10x10x3xf32> to vector<8x8x3xf32>
      %92 = vector.shape_cast %91 : vector<8x8x3xf32> to vector<64x3xf32>
      %93 = arith.truncf %92 : vector<64x3xf32> to vector<64x3xbf16>
      %c9 = arith.constant 9 : index
      %c0_52 = arith.constant 0 : index
      %c0_53 = arith.constant 0 : index
      %94 = vector.load %arg2[%c9, %c0_52, %c0_53] : memref<27x3x32xbf16, #tpu.memory_space<vmem>>, vector<1x3x32xbf16>
      %95 = vector.shape_cast %94 : vector<1x3x32xbf16> to vector<3x32xbf16>
      %cst_54 = arith.constant dense<0.000000e+00> : vector<64x32xf32>
      %96 = tpu.matmul %93, %95, %cst_54 {dimension_numbers = #tpu.dot_dimension_numbers<[1], [0], [0], [1], [0, 0, 1, 1], [], []>} : vector<64x3xbf16>, vector<3x32xbf16>, vector<64x32xf32> -> vector<64x32xf32>
      %97 = arith.addf %90, %96 : vector<64x32xf32>
      %98 = vector.extract_strided_slice %21 {offsets = [0, 1, 0], sizes = [8, 8, 3], strides = [1, 1, 1]} : vector<10x10x3xf32> to vector<8x8x3xf32>
      %99 = vector.shape_cast %98 : vector<8x8x3xf32> to vector<64x3xf32>
      %100 = arith.truncf %99 : vector<64x3xf32> to vector<64x3xbf16>
      %c10 = arith.constant 10 : index
      %c0_55 = arith.constant 0 : index
      %c0_56 = arith.constant 0 : index
      %101 = vector.load %arg2[%c10, %c0_55, %c0_56] : memref<27x3x32xbf16, #tpu.memory_space<vmem>>, vector<1x3x32xbf16>
      %102 = vector.shape_cast %101 : vector<1x3x32xbf16> to vector<3x32xbf16>
      %cst_57 = arith.constant dense<0.000000e+00> : vector<64x32xf32>
      %103 = tpu.matmul %100, %102, %cst_57 {dimension_numbers = #tpu.dot_dimension_numbers<[1], [0], [0], [1], [0, 0, 1, 1], [], []>} : vector<64x3xbf16>, vector<3x32xbf16>, vector<64x32xf32> -> vector<64x32xf32>
      %104 = arith.addf %97, %103 : vector<64x32xf32>
      %105 = vector.extract_strided_slice %21 {offsets = [0, 2, 0], sizes = [8, 8, 3], strides = [1, 1, 1]} : vector<10x10x3xf32> to vector<8x8x3xf32>
      %106 = vector.shape_cast %105 : vector<8x8x3xf32> to vector<64x3xf32>
      %107 = arith.truncf %106 : vector<64x3xf32> to vector<64x3xbf16>
      %c11 = arith.constant 11 : index
      %c0_58 = arith.constant 0 : index
      %c0_59 = arith.constant 0 : index
      %108 = vector.load %arg2[%c11, %c0_58, %c0_59] : memref<27x3x32xbf16, #tpu.memory_space<vmem>>, vector<1x3x32xbf16>
      %109 = vector.shape_cast %108 : vector<1x3x32xbf16> to vector<3x32xbf16>
      %cst_60 = arith.constant dense<0.000000e+00> : vector<64x32xf32>
      %110 = tpu.matmul %107, %109, %cst_60 {dimension_numbers = #tpu.dot_dimension_numbers<[1], [0], [0], [1], [0, 0, 1, 1], [], []>} : vector<64x3xbf16>, vector<3x32xbf16>, vector<64x32xf32> -> vector<64x32xf32>
      %111 = arith.addf %104, %110 : vector<64x32xf32>
      %112 = vector.extract_strided_slice %21 {offsets = [1, 0, 0], sizes = [8, 8, 3], strides = [1, 1, 1]} : vector<10x10x3xf32> to vector<8x8x3xf32>
      %113 = vector.shape_cast %112 : vector<8x8x3xf32> to vector<64x3xf32>
      %114 = arith.truncf %113 : vector<64x3xf32> to vector<64x3xbf16>
      %c12 = arith.constant 12 : index
      %c0_61 = arith.constant 0 : index
      %c0_62 = arith.constant 0 : index
      %115 = vector.load %arg2[%c12, %c0_61, %c0_62] : memref<27x3x32xbf16, #tpu.memory_space<vmem>>, vector<1x3x32xbf16>
      %116 = vector.shape_cast %115 : vector<1x3x32xbf16> to vector<3x32xbf16>
      %cst_63 = arith.constant dense<0.000000e+00> : vector<64x32xf32>
      %117 = tpu.matmul %114, %116, %cst_63 {dimension_numbers = #tpu.dot_dimension_numbers<[1], [0], [0], [1], [0, 0, 1, 1], [], []>} : vector<64x3xbf16>, vector<3x32xbf16>, vector<64x32xf32> -> vector<64x32xf32>
      %118 = arith.addf %111, %117 : vector<64x32xf32>
      %119 = vector.extract_strided_slice %21 {offsets = [1, 1, 0], sizes = [8, 8, 3], strides = [1, 1, 1]} : vector<10x10x3xf32> to vector<8x8x3xf32>
      %120 = vector.shape_cast %119 : vector<8x8x3xf32> to vector<64x3xf32>
      %121 = arith.truncf %120 : vector<64x3xf32> to vector<64x3xbf16>
      %c13 = arith.constant 13 : index
      %c0_64 = arith.constant 0 : index
      %c0_65 = arith.constant 0 : index
      %122 = vector.load %arg2[%c13, %c0_64, %c0_65] : memref<27x3x32xbf16, #tpu.memory_space<vmem>>, vector<1x3x32xbf16>
      %123 = vector.shape_cast %122 : vector<1x3x32xbf16> to vector<3x32xbf16>
      %cst_66 = arith.constant dense<0.000000e+00> : vector<64x32xf32>
      %124 = tpu.matmul %121, %123, %cst_66 {dimension_numbers = #tpu.dot_dimension_numbers<[1], [0], [0], [1], [0, 0, 1, 1], [], []>} : vector<64x3xbf16>, vector<3x32xbf16>, vector<64x32xf32> -> vector<64x32xf32>
      %125 = arith.addf %118, %124 : vector<64x32xf32>
      %126 = vector.extract_strided_slice %21 {offsets = [1, 2, 0], sizes = [8, 8, 3], strides = [1, 1, 1]} : vector<10x10x3xf32> to vector<8x8x3xf32>
      %127 = vector.shape_cast %126 : vector<8x8x3xf32> to vector<64x3xf32>
      %128 = arith.truncf %127 : vector<64x3xf32> to vector<64x3xbf16>
      %c14 = arith.constant 14 : index
      %c0_67 = arith.constant 0 : index
      %c0_68 = arith.constant 0 : index
      %129 = vector.load %arg2[%c14, %c0_67, %c0_68] : memref<27x3x32xbf16, #tpu.memory_space<vmem>>, vector<1x3x32xbf16>
      %130 = vector.shape_cast %129 : vector<1x3x32xbf16> to vector<3x32xbf16>
      %cst_69 = arith.constant dense<0.000000e+00> : vector<64x32xf32>
      %131 = tpu.matmul %128, %130, %cst_69 {dimension_numbers = #tpu.dot_dimension_numbers<[1], [0], [0], [1], [0, 0, 1, 1], [], []>} : vector<64x3xbf16>, vector<3x32xbf16>, vector<64x32xf32> -> vector<64x32xf32>
      %132 = arith.addf %125, %131 : vector<64x32xf32>
      %133 = vector.extract_strided_slice %21 {offsets = [2, 0, 0], sizes = [8, 8, 3], strides = [1, 1, 1]} : vector<10x10x3xf32> to vector<8x8x3xf32>
      %134 = vector.shape_cast %133 : vector<8x8x3xf32> to vector<64x3xf32>
      %135 = arith.truncf %134 : vector<64x3xf32> to vector<64x3xbf16>
      %c15 = arith.constant 15 : index
      %c0_70 = arith.constant 0 : index
      %c0_71 = arith.constant 0 : index
      %136 = vector.load %arg2[%c15, %c0_70, %c0_71] : memref<27x3x32xbf16, #tpu.memory_space<vmem>>, vector<1x3x32xbf16>
      %137 = vector.shape_cast %136 : vector<1x3x32xbf16> to vector<3x32xbf16>
      %cst_72 = arith.constant dense<0.000000e+00> : vector<64x32xf32>
      %138 = tpu.matmul %135, %137, %cst_72 {dimension_numbers = #tpu.dot_dimension_numbers<[1], [0], [0], [1], [0, 0, 1, 1], [], []>} : vector<64x3xbf16>, vector<3x32xbf16>, vector<64x32xf32> -> vector<64x32xf32>
      %139 = arith.addf %132, %138 : vector<64x32xf32>
      %140 = vector.extract_strided_slice %21 {offsets = [2, 1, 0], sizes = [8, 8, 3], strides = [1, 1, 1]} : vector<10x10x3xf32> to vector<8x8x3xf32>
      %141 = vector.shape_cast %140 : vector<8x8x3xf32> to vector<64x3xf32>
      %142 = arith.truncf %141 : vector<64x3xf32> to vector<64x3xbf16>
      %c16 = arith.constant 16 : index
      %c0_73 = arith.constant 0 : index
      %c0_74 = arith.constant 0 : index
      %143 = vector.load %arg2[%c16, %c0_73, %c0_74] : memref<27x3x32xbf16, #tpu.memory_space<vmem>>, vector<1x3x32xbf16>
      %144 = vector.shape_cast %143 : vector<1x3x32xbf16> to vector<3x32xbf16>
      %cst_75 = arith.constant dense<0.000000e+00> : vector<64x32xf32>
      %145 = tpu.matmul %142, %144, %cst_75 {dimension_numbers = #tpu.dot_dimension_numbers<[1], [0], [0], [1], [0, 0, 1, 1], [], []>} : vector<64x3xbf16>, vector<3x32xbf16>, vector<64x32xf32> -> vector<64x32xf32>
      %146 = arith.addf %139, %145 : vector<64x32xf32>
      %147 = vector.extract_strided_slice %21 {offsets = [2, 2, 0], sizes = [8, 8, 3], strides = [1, 1, 1]} : vector<10x10x3xf32> to vector<8x8x3xf32>
      %148 = vector.shape_cast %147 : vector<8x8x3xf32> to vector<64x3xf32>
      %149 = arith.truncf %148 : vector<64x3xf32> to vector<64x3xbf16>
      %c17 = arith.constant 17 : index
      %c0_76 = arith.constant 0 : index
      %c0_77 = arith.constant 0 : index
      %150 = vector.load %arg2[%c17, %c0_76, %c0_77] : memref<27x3x32xbf16, #tpu.memory_space<vmem>>, vector<1x3x32xbf16>
      %151 = vector.shape_cast %150 : vector<1x3x32xbf16> to vector<3x32xbf16>
      %cst_78 = arith.constant dense<0.000000e+00> : vector<64x32xf32>
      %152 = tpu.matmul %149, %151, %cst_78 {dimension_numbers = #tpu.dot_dimension_numbers<[1], [0], [0], [1], [0, 0, 1, 1], [], []>} : vector<64x3xbf16>, vector<3x32xbf16>, vector<64x32xf32> -> vector<64x32xf32>
      %153 = arith.addf %146, %152 : vector<64x32xf32>
      %154 = vector.extract_strided_slice %26 {offsets = [0, 0, 0], sizes = [8, 8, 3], strides = [1, 1, 1]} : vector<10x10x3xf32> to vector<8x8x3xf32>
      %155 = vector.shape_cast %154 : vector<8x8x3xf32> to vector<64x3xf32>
      %156 = arith.truncf %155 : vector<64x3xf32> to vector<64x3xbf16>
      %c18 = arith.constant 18 : index
      %c0_79 = arith.constant 0 : index
      %c0_80 = arith.constant 0 : index
      %157 = vector.load %arg2[%c18, %c0_79, %c0_80] : memref<27x3x32xbf16, #tpu.memory_space<vmem>>, vector<1x3x32xbf16>
      %158 = vector.shape_cast %157 : vector<1x3x32xbf16> to vector<3x32xbf16>
      %cst_81 = arith.constant dense<0.000000e+00> : vector<64x32xf32>
      %159 = tpu.matmul %156, %158, %cst_81 {dimension_numbers = #tpu.dot_dimension_numbers<[1], [0], [0], [1], [0, 0, 1, 1], [], []>} : vector<64x3xbf16>, vector<3x32xbf16>, vector<64x32xf32> -> vector<64x32xf32>
      %160 = arith.addf %153, %159 : vector<64x32xf32>
      %161 = vector.extract_strided_slice %26 {offsets = [0, 1, 0], sizes = [8, 8, 3], strides = [1, 1, 1]} : vector<10x10x3xf32> to vector<8x8x3xf32>
      %162 = vector.shape_cast %161 : vector<8x8x3xf32> to vector<64x3xf32>
      %163 = arith.truncf %162 : vector<64x3xf32> to vector<64x3xbf16>
      %c19 = arith.constant 19 : index
      %c0_82 = arith.constant 0 : index
      %c0_83 = arith.constant 0 : index
      %164 = vector.load %arg2[%c19, %c0_82, %c0_83] : memref<27x3x32xbf16, #tpu.memory_space<vmem>>, vector<1x3x32xbf16>
      %165 = vector.shape_cast %164 : vector<1x3x32xbf16> to vector<3x32xbf16>
      %cst_84 = arith.constant dense<0.000000e+00> : vector<64x32xf32>
      %166 = tpu.matmul %163, %165, %cst_84 {dimension_numbers = #tpu.dot_dimension_numbers<[1], [0], [0], [1], [0, 0, 1, 1], [], []>} : vector<64x3xbf16>, vector<3x32xbf16>, vector<64x32xf32> -> vector<64x32xf32>
      %167 = arith.addf %160, %166 : vector<64x32xf32>
      %168 = vector.extract_strided_slice %26 {offsets = [0, 2, 0], sizes = [8, 8, 3], strides = [1, 1, 1]} : vector<10x10x3xf32> to vector<8x8x3xf32>
      %169 = vector.shape_cast %168 : vector<8x8x3xf32> to vector<64x3xf32>
      %170 = arith.truncf %169 : vector<64x3xf32> to vector<64x3xbf16>
      %c20 = arith.constant 20 : index
      %c0_85 = arith.constant 0 : index
      %c0_86 = arith.constant 0 : index
      %171 = vector.load %arg2[%c20, %c0_85, %c0_86] : memref<27x3x32xbf16, #tpu.memory_space<vmem>>, vector<1x3x32xbf16>
      %172 = vector.shape_cast %171 : vector<1x3x32xbf16> to vector<3x32xbf16>
      %cst_87 = arith.constant dense<0.000000e+00> : vector<64x32xf32>
      %173 = tpu.matmul %170, %172, %cst_87 {dimension_numbers = #tpu.dot_dimension_numbers<[1], [0], [0], [1], [0, 0, 1, 1], [], []>} : vector<64x3xbf16>, vector<3x32xbf16>, vector<64x32xf32> -> vector<64x32xf32>
      %174 = arith.addf %167, %173 : vector<64x32xf32>
      %175 = vector.extract_strided_slice %26 {offsets = [1, 0, 0], sizes = [8, 8, 3], strides = [1, 1, 1]} : vector<10x10x3xf32> to vector<8x8x3xf32>
      %176 = vector.shape_cast %175 : vector<8x8x3xf32> to vector<64x3xf32>
      %177 = arith.truncf %176 : vector<64x3xf32> to vector<64x3xbf16>
      %c21 = arith.constant 21 : index
      %c0_88 = arith.constant 0 : index
      %c0_89 = arith.constant 0 : index
      %178 = vector.load %arg2[%c21, %c0_88, %c0_89] : memref<27x3x32xbf16, #tpu.memory_space<vmem>>, vector<1x3x32xbf16>
      %179 = vector.shape_cast %178 : vector<1x3x32xbf16> to vector<3x32xbf16>
      %cst_90 = arith.constant dense<0.000000e+00> : vector<64x32xf32>
      %180 = tpu.matmul %177, %179, %cst_90 {dimension_numbers = #tpu.dot_dimension_numbers<[1], [0], [0], [1], [0, 0, 1, 1], [], []>} : vector<64x3xbf16>, vector<3x32xbf16>, vector<64x32xf32> -> vector<64x32xf32>
      %181 = arith.addf %174, %180 : vector<64x32xf32>
      %182 = vector.extract_strided_slice %26 {offsets = [1, 1, 0], sizes = [8, 8, 3], strides = [1, 1, 1]} : vector<10x10x3xf32> to vector<8x8x3xf32>
      %183 = vector.shape_cast %182 : vector<8x8x3xf32> to vector<64x3xf32>
      %184 = arith.truncf %183 : vector<64x3xf32> to vector<64x3xbf16>
      %c22 = arith.constant 22 : index
      %c0_91 = arith.constant 0 : index
      %c0_92 = arith.constant 0 : index
      %185 = vector.load %arg2[%c22, %c0_91, %c0_92] : memref<27x3x32xbf16, #tpu.memory_space<vmem>>, vector<1x3x32xbf16>
      %186 = vector.shape_cast %185 : vector<1x3x32xbf16> to vector<3x32xbf16>
      %cst_93 = arith.constant dense<0.000000e+00> : vector<64x32xf32>
      %187 = tpu.matmul %184, %186, %cst_93 {dimension_numbers = #tpu.dot_dimension_numbers<[1], [0], [0], [1], [0, 0, 1, 1], [], []>} : vector<64x3xbf16>, vector<3x32xbf16>, vector<64x32xf32> -> vector<64x32xf32>
      %188 = arith.addf %181, %187 : vector<64x32xf32>
      %189 = vector.extract_strided_slice %26 {offsets = [1, 2, 0], sizes = [8, 8, 3], strides = [1, 1, 1]} : vector<10x10x3xf32> to vector<8x8x3xf32>
      %190 = vector.shape_cast %189 : vector<8x8x3xf32> to vector<64x3xf32>
      %191 = arith.truncf %190 : vector<64x3xf32> to vector<64x3xbf16>
      %c23 = arith.constant 23 : index
      %c0_94 = arith.constant 0 : index
      %c0_95 = arith.constant 0 : index
      %192 = vector.load %arg2[%c23, %c0_94, %c0_95] : memref<27x3x32xbf16, #tpu.memory_space<vmem>>, vector<1x3x32xbf16>
      %193 = vector.shape_cast %192 : vector<1x3x32xbf16> to vector<3x32xbf16>
      %cst_96 = arith.constant dense<0.000000e+00> : vector<64x32xf32>
      %194 = tpu.matmul %191, %193, %cst_96 {dimension_numbers = #tpu.dot_dimension_numbers<[1], [0], [0], [1], [0, 0, 1, 1], [], []>} : vector<64x3xbf16>, vector<3x32xbf16>, vector<64x32xf32> -> vector<64x32xf32>
      %195 = arith.addf %188, %194 : vector<64x32xf32>
      %196 = vector.extract_strided_slice %26 {offsets = [2, 0, 0], sizes = [8, 8, 3], strides = [1, 1, 1]} : vector<10x10x3xf32> to vector<8x8x3xf32>
      %197 = vector.shape_cast %196 : vector<8x8x3xf32> to vector<64x3xf32>
      %198 = arith.truncf %197 : vector<64x3xf32> to vector<64x3xbf16>
      %c24 = arith.constant 24 : index
      %c0_97 = arith.constant 0 : index
      %c0_98 = arith.constant 0 : index
      %199 = vector.load %arg2[%c24, %c0_97, %c0_98] : memref<27x3x32xbf16, #tpu.memory_space<vmem>>, vector<1x3x32xbf16>
      %200 = vector.shape_cast %199 : vector<1x3x32xbf16> to vector<3x32xbf16>
      %cst_99 = arith.constant dense<0.000000e+00> : vector<64x32xf32>
      %201 = tpu.matmul %198, %200, %cst_99 {dimension_numbers = #tpu.dot_dimension_numbers<[1], [0], [0], [1], [0, 0, 1, 1], [], []>} : vector<64x3xbf16>, vector<3x32xbf16>, vector<64x32xf32> -> vector<64x32xf32>
      %202 = arith.addf %195, %201 : vector<64x32xf32>
      %203 = vector.extract_strided_slice %26 {offsets = [2, 1, 0], sizes = [8, 8, 3], strides = [1, 1, 1]} : vector<10x10x3xf32> to vector<8x8x3xf32>
      %204 = vector.shape_cast %203 : vector<8x8x3xf32> to vector<64x3xf32>
      %205 = arith.truncf %204 : vector<64x3xf32> to vector<64x3xbf16>
      %c25 = arith.constant 25 : index
      %c0_100 = arith.constant 0 : index
      %c0_101 = arith.constant 0 : index
      %206 = vector.load %arg2[%c25, %c0_100, %c0_101] : memref<27x3x32xbf16, #tpu.memory_space<vmem>>, vector<1x3x32xbf16>
      %207 = vector.shape_cast %206 : vector<1x3x32xbf16> to vector<3x32xbf16>
      %cst_102 = arith.constant dense<0.000000e+00> : vector<64x32xf32>
      %208 = tpu.matmul %205, %207, %cst_102 {dimension_numbers = #tpu.dot_dimension_numbers<[1], [0], [0], [1], [0, 0, 1, 1], [], []>} : vector<64x3xbf16>, vector<3x32xbf16>, vector<64x32xf32> -> vector<64x32xf32>
      %209 = arith.addf %202, %208 : vector<64x32xf32>
      %210 = vector.extract_strided_slice %26 {offsets = [2, 2, 0], sizes = [8, 8, 3], strides = [1, 1, 1]} : vector<10x10x3xf32> to vector<8x8x3xf32>
      %211 = vector.shape_cast %210 : vector<8x8x3xf32> to vector<64x3xf32>
      %212 = arith.truncf %211 : vector<64x3xf32> to vector<64x3xbf16>
      %c26 = arith.constant 26 : index
      %c0_103 = arith.constant 0 : index
      %c0_104 = arith.constant 0 : index
      %213 = vector.load %arg2[%c26, %c0_103, %c0_104] : memref<27x3x32xbf16, #tpu.memory_space<vmem>>, vector<1x3x32xbf16>
      %214 = vector.shape_cast %213 : vector<1x3x32xbf16> to vector<3x32xbf16>
      %cst_105 = arith.constant dense<0.000000e+00> : vector<64x32xf32>
      %215 = tpu.matmul %212, %214, %cst_105 {dimension_numbers = #tpu.dot_dimension_numbers<[1], [0], [0], [1], [0, 0, 1, 1], [], []>} : vector<64x3xbf16>, vector<3x32xbf16>, vector<64x32xf32> -> vector<64x32xf32>
      %216 = arith.addf %209, %215 : vector<64x32xf32>
      %c0_106 = arith.constant 0 : index
      %c0_107 = arith.constant 0 : index
      %217 = vector.load %arg3[%c0_106, %c0_107] : memref<1x32xf32, #tpu.memory_space<vmem>>, vector<1x32xf32>
      %218 = vector.broadcast %217 : vector<1x32xf32> to vector<64x32xf32>
      %219 = arith.addf %216, %218 : vector<64x32xf32>
      %cst_108 = arith.constant 0.000000e+00 : f32
      %220 = vector.broadcast %cst_108 : f32 to vector<64x32xf32>
      %221 = arith.maximumf %219, %220 : vector<64x32xf32>
      %cst_109 = arith.constant dense<0.000000e+00> : vector<32xf32>
      %222 = vector.multi_reduction <add>, %221, %cst_109 [0] : vector<64x32xf32> to vector<32xf32>
      %223 = vector.shape_cast %222 : vector<32xf32> to vector<1x32xf32>
      %224 = arith.addf %arg8, %223 : vector<1x32xf32>
      scf.yield %224 : vector<1x32xf32>
    }
    %c4_i32_0 = arith.constant 4 : i32
    %cst_1 = arith.constant 3.906250e-03 : f32
    %3 = vector.broadcast %cst_1 : f32 to vector<1x32xf32>
    %4 = arith.mulf %2, %3 : vector<1x32xf32>
    %c0 = arith.constant 0 : index
    %c0_2 = arith.constant 0 : index
    %5 = vector.load %arg4[%c0, %c0_2] : memref<32x10xf32, #tpu.memory_space<vmem>>, vector<32x10xf32>
    %cst_3 = arith.constant dense<0.000000e+00> : vector<1x10xf32>
    %6 = tpu.matmul %4, %5, %cst_3 {dimension_numbers = #tpu.dot_dimension_numbers<[1], [0], [0], [1], [0, 0, 1, 1], [], []>} : vector<1x32xf32>, vector<32x10xf32>, vector<1x10xf32> -> vector<1x10xf32>
    %c0_4 = arith.constant 0 : index
    %c0_5 = arith.constant 0 : index
    %7 = vector.load %arg5[%c0_4, %c0_5] : memref<1x10xf32, #tpu.memory_space<vmem>>, vector<1x10xf32>
    %8 = arith.addf %6, %7 : vector<1x10xf32>
    %c0_6 = arith.constant 0 : index
    %c0_7 = arith.constant 0 : index
    %c0_8 = arith.constant 0 : index
    %9 = vector.load %arg6[%c0_6, %c0_7, %c0_8] : memref<1x1x10xf32, #tpu.memory_space<vmem>>, vector<1x1x10xf32>
    %10 = vector.shape_cast %9 : vector<1x1x10xf32> to vector<1x10xf32>
    %11 = vector.shape_cast %8 : vector<1x10xf32> to vector<1x1x10xf32>
    tpu.vector_store %arg6[%c0_6, %c0_7, %c0_8], %11 {strides = array<i32>} : memref<1x1x10xf32, #tpu.memory_space<vmem>>, vector<1x1x10xf32>,
    return
  }
  func.func @transform_0(%arg0: i32) -> (i32, i32, i32, i32, i32) {
    %c0_i32 = arith.constant 0 : i32
    %c0_i32_0 = arith.constant 0 : i32
    %c0_i32_1 = arith.constant 0 : i32
    %c0_i32_2 = arith.constant 0 : i32
    %c0_i32_3 = arith.constant 0 : i32
    return %arg0, %c0_i32, %c0_i32_0, %c0_i32_1, %c0_i32_2 : i32, i32, i32, i32, i32
  }
  func.func @transform_1(%arg0: i32) -> (i32, i32, i32) {
    %c0_i32 = arith.constant 0 : i32
    %c0_i32_0 = arith.constant 0 : i32
    %c0_i32_1 = arith.constant 0 : i32
    %c0_i32_2 = arith.constant 0 : i32
    return %c0_i32, %c0_i32_0, %c0_i32_1 : i32, i32, i32
  }
  func.func @transform_2(%arg0: i32) -> (i32, i32) {
    %c0_i32 = arith.constant 0 : i32
    %c0_i32_0 = arith.constant 0 : i32
    %c0_i32_1 = arith.constant 0 : i32
    return %c0_i32, %c0_i32_0 : i32, i32
  }
  func.func @transform_3(%arg0: i32) -> (i32, i32) {
    %c0_i32 = arith.constant 0 : i32
    %c0_i32_0 = arith.constant 0 : i32
    %c0_i32_1 = arith.constant 0 : i32
    return %c0_i32, %c0_i32_0 : i32, i32
  }
  func.func @transform_4(%arg0: i32) -> (i32, i32) {
    %c0_i32 = arith.constant 0 : i32
    %c0_i32_0 = arith.constant 0 : i32
    %c0_i32_1 = arith.constant 0 : i32
    return %c0_i32, %c0_i32_0 : i32, i32
  }
  func.func @transform_5(%arg0: i32) -> (i32, i32, i32) {
    %c0_i32 = arith.constant 0 : i32
    %c0_i32_0 = arith.constant 0 : i32
    %c0_i32_1 = arith.constant 0 : i32
    return %arg0, %c0_i32, %c0_i32_0 : i32, i32, i32
  }
}

</mosaic_0001>

<llo_original>
// kernel: base_video_model_forward.1
$region0: #{base_video_model_forward.1}
  #allocation0 [shape = 'u32[]', space=smem, size = 0x4, offset = 0x4, fixed_abs, tag = 'smem constant byte address 0x4 - core index']
  #allocation1 [shape = 'u32[144,128]{1,0:T(1,128)}', space=vmem, size = 0x12000, scoped, tag = 'internal scratch']
  %s0 = inlined_call_operand.vmem [shape: bf16[2,6,10,10,3], index: 0, kind: input, shape index: {}]
  %s1 = inlined_call_operand.vmem [shape: bf16[27,3,32], index: 1, kind: input, shape index: {}]
  %s2 = inlined_call_operand.vmem [shape: f32[1,32], index: 2, kind: input, shape index: {}]
  %s3 = inlined_call_operand.vmem [shape: f32[32,10], index: 3, kind: input, shape index: {}]
  %s4 = inlined_call_operand.vmem [shape: f32[1,10], index: 4, kind: input, shape index: {}]
  %s5 = inlined_call_operand.hbm [shape: f32[2,1,10], index: 5, kind: output, shape index: {}]
  %s6 = sld [smem:[#allocation0]]
  $region60: #{base_video_model_forward.1} parent=0
    _
  %s8 = ssub.s32 1, %s6
  %s9 = scalar_select 0, %s8, %s6
  $region1: #{base_video_model_forward.1} parent=0
    #allocation2 [shape = 'u8[1024]{0}', space=vmem, size = 0x400, scoped, tag = 'output window, operand 0']
    #allocation3 [shape = 's32[2]{0}', space=sflag, size = 0x8, scoped, tag = 'scoped memory for base_video_model_forward.1']
    %10 = vsyncpa [#allocation3], 0
    %s11 = scalar_lea.sflag [#allocation3], 1
    %12 = vsyncpa %s11, 0
    loop: start=0, step=1, limit=4
    $region2: #{base_video_model_forward.1} parent=1 // loop_pre_header
      _
    $region3: #{base_video_model_forward.1} parent=1 // loop_header
      %s14 = sphi 0, %s18
      %p15 = scmp.ge.s32.totalorder %s14, 4
      %s24 = sphi 0, %s26
      %s27 = sphi 0, %s24
      %s28 = sphi 0, %s27
      %s44 = sphi 0, %s28
      %s48 = sphi 0, %s48
      %s50 = sphi 0, %s48
      %s51 = sphi 0, %s50
      %s65 = sphi 0, %s51
      %s69 = sphi 0, %s69
      %s71 = sphi 0, %s69
      %s72 = sphi 0, %s71
      %s86 = sphi 0, %s72
      %s90 = sphi 0, %s90
      %s92 = sphi 0, %s90
      %s93 = sphi 0, %s92
      %s107 = sphi 0, %s93
      %s111 = sphi 0, %s111
      %s113 = sphi 0, %s111
      %s114 = sphi 0, %s113
      %s128 = sphi 0, %s114
      %s134 = sphi 0, %s136
      %s137 = sphi 0, %s134
      %s138 = sphi 0, %s137
      %s154 = sphi 0, %s138
    $region4: #{base_video_model_forward.1} parent=1 // loop_header_branch
      %17 = sbr.rel (%p15) target = $region8
    $region5: #{base_video_model_forward.1} parent=1 // loop_body
      %s19 = ssub.s32 %s14, 1
      %s20 = ssub.s32 %s14, 2
      %s21 = sadd.s32 %s14, 1
      %s22 = ssub.s32 %s14, %s21
      %p23 = scmp.eq.s32.totalorder %s22, 0
      %s25 = sadd.s32 %s24, 1
      %s26 = scalar_select %p23, %s24, %s25
      %p29 = pneg %p23
      %p30 = scmp.eq.s32.totalorder %s14, 1
      %p31 = por %p29, %p30
      %p32 = scmp.ne.s32.totalorder %s24, %s27
      %p33 = scmp.eq.s32.totalorder %s14, 0
      %p34 = por %p32, %p33
      %p35 = scmp.ne.s32.totalorder %s24, %s27
      %p36 = scmp.eq.s32.totalorder %s19, 1
      %p37 = por %p35, %p36
      %p38 = scmp.ne.s32.totalorder %s27, %s28
      %p39 = scmp.eq.s32.totalorder %s19, 0
      %p40 = por %p38, %p39
      %p41 = scmp.ne.s32.totalorder %s27, %s28
      %p42 = scmp.eq.s32.totalorder %s20, 1
      %p43 = por %p41, %p42
      %p45 = scmp.ne.s32.totalorder %s28, %s44
      %p46 = scmp.eq.s32.totalorder %s20, 0
      %p47 = por %p45, %p46
      %s49 = sadd.s32 %s48, 1
      %p52 = scmp.eq.s32.totalorder %s14, 1
      %p53 = scmp.ne.s32.totalorder %s48, %s50
      %p54 = scmp.eq.s32.totalorder %s14, 0
      %p55 = por %p53, %p54
      %p56 = scmp.ne.s32.totalorder %s48, %s50
      %p57 = scmp.eq.s32.totalorder %s19, 1
      %p58 = por %p56, %p57
      %p59 = scmp.ne.s32.totalorder %s50, %s51
      %p60 = scmp.eq.s32.totalorder %s19, 0
      %p61 = por %p59, %p60
      %p62 = scmp.ne.s32.totalorder %s50, %s51
      %p63 = scmp.eq.s32.totalorder %s20, 1
      %p64 = por %p62, %p63
      %p66 = scmp.ne.s32.totalorder %s51, %s65
      %p67 = scmp.eq.s32.totalorder %s20, 0
      %p68 = por %p66, %p67
      %s70 = sadd.s32 %s69, 1
      %p73 = scmp.eq.s32.totalorder %s14, 1
      %p74 = scmp.ne.s32.totalorder %s69, %s71
      %p75 = scmp.eq.s32.totalorder %s14, 0
      %p76 = por %p74, %p75
      %p77 = scmp.ne.s32.totalorder %s69, %s71
      %p78 = scmp.eq.s32.totalorder %s19, 1
      %p79 = por %p77, %p78
      %p80 = scmp.ne.s32.totalorder %s71, %s72
      %p81 = scmp.eq.s32.totalorder %s19, 0
      %p82 = por %p80, %p81
      %p83 = scmp.ne.s32.totalorder %s71, %s72
      %p84 = scmp.eq.s32.totalorder %s20, 1
      %p85 = por %p83, %p84
      %p87 = scmp.ne.s32.totalorder %s72, %s86
      %p88 = scmp.eq.s32.totalorder %s20, 0
      %p89 = por %p87, %p88
      %s91 = sadd.s32 %s90, 1
      %p94 = scmp.eq.s32.totalorder %s14, 1
      %p95 = scmp.ne.s32.totalorder %s90, %s92
      %p96 = scmp.eq.s32.totalorder %s14, 0
      %p97 = por %p95, %p96
      %p98 = scmp.ne.s32.totalorder %s90, %s92
      %p99 = scmp.eq.s32.totalorder %s19, 1
      %p100 = por %p98, %p99
      %p101 = scmp.ne.s32.totalorder %s92, %s93
      %p102 = scmp.eq.s32.totalorder %s19, 0
      %p103 = por %p101, %p102
      %p104 = scmp.ne.s32.totalorder %s92, %s93
      %p105 = scmp.eq.s32.totalorder %s20, 1
      %p106 = por %p104, %p105
      %p108 = scmp.ne.s32.totalorder %s93, %s107
      %p109 = scmp.eq.s32.totalorder %s20, 0
      %p110 = por %p108, %p109
      %s112 = sadd.s32 %s111, 1
      %p115 = scmp.eq.s32.totalorder %s14, 1
      %p116 = scmp.ne.s32.totalorder %s111, %s113
      %p117 = scmp.eq.s32.totalorder %s14, 0
      %p118 = por %p116, %p117
      %p119 = scmp.ne.s32.totalorder %s111, %s113
      %p120 = scmp.eq.s32.totalorder %s19, 1
      %p121 = por %p119, %p120
      %p122 = scmp.ne.s32.totalorder %s113, %s114
      %p123 = scmp.eq.s32.totalorder %s19, 0
      %p124 = por %p122, %p123
      %p125 = scmp.ne.s32.totalorder %s113, %s114
      %p126 = scmp.eq.s32.totalorder %s20, 1
      %p127 = por %p125, %p126
      %p129 = scmp.ne.s32.totalorder %s114, %s128
      %p130 = scmp.eq.s32.totalorder %s20, 0
      %p131 = por %p129, %p130
      %s132 = ssub.s32 %s14, %s21
      %p133 = scmp.eq.s32.totalorder %s132, 0
      %s135 = sadd.s32 %s134, 1
      %s136 = scalar_select %p133, %s134, %s135
      %p139 = pneg %p133
      %p140 = scmp.eq.s32.totalorder %s14, 1
      %p141 = por %p139, %p140
      %p142 = scmp.ne.s32.totalorder %s134, %s137
      %p143 = scmp.eq.s32.totalorder %s14, 0
      %p144 = por %p142, %p143
      %p145 = scmp.ne.s32.totalorder %s134, %s137
      %p146 = scmp.eq.s32.totalorder %s19, 1
      %p147 = por %p145, %p146
      %p148 = scmp.ne.s32.totalorder %s137, %s138
      %p149 = scmp.eq.s32.totalorder %s19, 0
      %p150 = por %p148, %p149
      %p151 = scmp.ne.s32.totalorder %s137, %s138
      %p152 = scmp.eq.s32.totalorder %s20, 1
      %p153 = por %p151, %p152
      %p155 = scmp.ne.s32.totalorder %s138, %s154
      %p156 = scmp.eq.s32.totalorder %s20, 0
      %p157 = por %p155, %p156
      %p158 = scmp.le.s32.totalorder 1, %s14
      %p159 = scmp.lt.s32.totalorder %s14, 3
      %p160 = pnand %p158, %p159
      %p161 = pneg %p160
      // Predicated region
      $region9: #{base_video_model_forward.1} parent=5 // pred_check
        _
      $region10: #{base_video_model_forward.1} parent=5 // pred_check_branch
        %163 = sbr.rel (%p160) target = $region12
      $region11: #{base_video_model_forward.1} parent=5 // pred_region
        %s164 = ssub.s32 %s14, 1
        // Predicated region
        $region13: #{base_video_model_forward.1} parent=11 // pred_check
          %p165 = pneg %p61
        $region14: #{base_video_model_forward.1} parent=11 // pred_check_branch
          %167 = sbr.rel (%p165) target = $region16
        $region15: #{base_video_model_forward.1} parent=11 // pred_region
          _
        $region16: #{base_video_model_forward.1} parent=11 // pred_fallthru
          _
        // Predicated region
        $region17: #{base_video_model_forward.1} parent=11 // pred_check
          %p168 = pneg %p82
        $region18: #{base_video_model_forward.1} parent=11 // pred_check_branch
          %170 = sbr.rel (%p168) target = $region20
        $region19: #{base_video_model_forward.1} parent=11 // pred_region
          _
        $region20: #{base_video_model_forward.1} parent=11 // pred_fallthru
          _
        // Predicated region
        $region21: #{base_video_model_forward.1} parent=11 // pred_check
          %p171 = pneg %p103
        $region22: #{base_video_model_forward.1} parent=11 // pred_check_branch
          %173 = sbr.rel (%p171) target = $region24
        $region23: #{base_video_model_forward.1} parent=11 // pred_region
          _
        $region24: #{base_video_model_forward.1} parent=11 // pred_fallthru
          _
        // Predicated region
        $region25: #{base_video_model_forward.1} parent=11 // pred_check
          %p174 = pneg %p124
        $region26: #{base_video_model_forward.1} parent=11 // pred_check_branch
          %176 = sbr.rel (%p174) target = $region28
        $region27: #{base_video_model_forward.1} parent=11 // pred_region
          _
        $region28: #{base_video_model_forward.1} parent=11 // pred_fallthru
          _
      $region12: #{base_video_model_forward.1} parent=5 // pred_fallthru
        _
      %p177 = scmp.lt.s32.totalorder %s14, 2
      // Predicated region
      $region29: #{base_video_model_forward.1} parent=5 // pred_check
        %p178 = pneg %p177
      $region30: #{base_video_model_forward.1} parent=5 // pred_check_branch
        %180 = sbr.rel (%p178) target = $region32
      $region31: #{base_video_model_forward.1} parent=5 // pred_region
        // Predicated region
        $region33: #{base_video_model_forward.1} parent=31 // pred_check
          %p181 = pneg %p34
        $region34: #{base_video_model_forward.1} parent=31 // pred_check_branch
          %183 = sbr.rel (%p181) target = $region36
        $region35: #{base_video_model_forward.1} parent=31 // pred_region
          %p184 = scmp.lt.s32.totalorder %s14, 1
          %s185 = scalar_select %p184, %s14, 1
          %s186 = smul.addr %s185, 120
          %s187 = smul.addr %s186, 4
          %s188 = scalar_lea.vmem %s0, %s187
        $region36: #{base_video_model_forward.1} parent=31 // pred_fallthru
          _
      $region32: #{base_video_model_forward.1} parent=5 // pred_fallthru
        _
      %p189 = scmp.le.s32.totalorder 1, %s14
      %p190 = scmp.lt.s32.totalorder %s14, 3
      %p191 = pnand %p189, %p190
      %p192 = pneg %p191
      // Predicated region
      $region37: #{base_video_model_forward.1} parent=5 // pred_check
        _
      $region38: #{base_video_model_forward.1} parent=5 // pred_check_branch
        %194 = sbr.rel (%p191) target = $region40
      $region39: #{base_video_model_forward.1} parent=5 // pred_region
        %s195 = ssub.s32 %s14, 1
        %p196 = scmp.lt.s32.totalorder %s19, 1
        %s197 = scalar_select %p196, %s19, 1
        %s198 = smul.addr %s197, 120
        %s199 = smul.addr %s198, 4
        %s200 = scalar_lea.vmem %s0, %s199
        %p201 = pneg %p40
        %p202 = pneg %p37
        %p203 = pneg %p61
        %p204 = pneg %p58
        %p205 = pneg %p82
        %p206 = pneg %p79
        %p207 = pneg %p103
        %p208 = pneg %p100
        %p209 = pneg %p124
        %p210 = pneg %p121
        %p211 = pneg %p150
        %p212 = pneg %p147
        %s213 = sand.u32 %s137, 1
        %s214 = scalar_lea.sflag [#allocation3], %s213
        %s215 = sand.u32 %s137, 1
        %s216 = scalar_lea.vmem [#allocation2], %s215
        %p217 = scmp.lt.s32.totalorder %s19, 1
        %s218 = scalar_select %p217, %s19, 1
        %s219 = smul.addr %s218, 120
        %s220 = smul.addr %s219, 4
        %s221 = scalar_lea.vmem %s0, %s220
        loop: start=0, step=1, limit=4
        $region41: #{base_video_model_forward.1} parent=39 // loop_pre_header
          _
        $region42: #{base_video_model_forward.1} parent=39 // loop_header
          %s224 = sphi 0, %s228
          %p225 = scmp.ge.s32.totalorder %s224, 4
          %v229 = vphi 0.0, %v3126
        $region43: #{base_video_model_forward.1} parent=39 // loop_header_branch
          %227 = sbr.rel (%p225) target = $region47
        $region44: #{base_video_model_forward.1} parent=39 // loop_body
          %s230 = smul.u32 %s224, 20
          %s231 = smul.addr %s230, 4
          %s232 = scalar_lea.vmem %s221, %s231
          %v233 = vld [vmem:[%s232] sm:$0xf]
          %v234 = vld [vmem:[%s232 + $0x4] sm:$0x1]
          %v235 = vld [vmem:[%s232 + $0x8] sm:$0xf]
          %v236 = vld [vmem:[%s232 + $0xc] sm:$0x1]
          %v237 = vld [vmem:[%s232 + $0x10] sm:$0xf]
          %v238 = vld [vmem:[%s232 + $0x14] sm:$0x1]
          %v239 = vld [vmem:[%s232 + $0x18] sm:$0xf]
          %v240 = vld [vmem:[%s232 + $0x1c] sm:$0x1]
          %v241 = vld [vmem:[%s232 + $0x20] sm:$0xf]
          %v242 = vld [vmem:[%s232 + $0x24] sm:$0x1]
          %v243 = vld [vmem:[%s232 + $0x28] sm:$0xf]
          %v244 = vld [vmem:[%s232 + $0x2c] sm:$0x1]
          %v245 = vld [vmem:[%s232 + $0x30] sm:$0xf]
          %v246 = vld [vmem:[%s232 + $0x34] sm:$0x1]
          %v247 = vld [vmem:[%s232 + $0x38] sm:$0xf]
          %v248 = vld [vmem:[%s232 + $0x3c] sm:$0x1]
          %v249 = vld [vmem:[%s232 + $0x40] sm:$0xf]
          %v250 = vld [vmem:[%s232 + $0x44] sm:$0x1]
          %v251 = vld [vmem:[%s232 + $0x48] sm:$0xf]
          %v252 = vld [vmem:[%s232 + $0x4c] sm:$0x1]
          %v253 = vunpack.c.l.bf16 %v233
          %v254 = vunpack.c.l.bf16 %v234
          %v255 = vunpack.c.l.bf16 %v235
          %v256 = vunpack.c.l.bf16 %v236
          %v257 = vunpack.c.l.bf16 %v237
          %v258 = vunpack.c.l.bf16 %v238
          %v259 = vunpack.c.l.bf16 %v239
          %v260 = vunpack.c.l.bf16 %v240
          %v261 = vunpack.c.l.bf16 %v241
          %v262 = vunpack.c.l.bf16 %v242
          %v263 = vunpack.c.l.bf16 %v243
          %v264 = vunpack.c.l.bf16 %v244
          %v265 = vunpack.c.l.bf16 %v245
          %v266 = vunpack.c.l.bf16 %v246
          %v267 = vunpack.c.l.bf16 %v247
          %v268 = vunpack.c.l.bf16 %v248
          %v269 = vunpack.c.l.bf16 %v249
          %v270 = vunpack.c.l.bf16 %v250
          %v271 = vunpack.c.l.bf16 %v251
          %v272 = vunpack.c.l.bf16 %v252
          %s273 = sadd.s32 %s224, 1
          %s274 = smul.u32 %s273, 20
          %s275 = smul.addr %s274, 4
          %s276 = scalar_lea.vmem %s221, %s275
          %v277 = vld [vmem:[%s276] sm:$0xf]
          %v278 = vld [vmem:[%s276 + $0x4] sm:$0x1]
          %v279 = vld [vmem:[%s276 + $0x8] sm:$0xf]
          %v280 = vld [vmem:[%s276 + $0xc] sm:$0x1]
          %v281 = vld [vmem:[%s276 + $0x10] sm:$0xf]
          %v282 = vld [vmem:[%s276 + $0x14] sm:$0x1]
          %v283 = vld [vmem:[%s276 + $0x18] sm:$0xf]
          %v284 = vld [vmem:[%s276 + $0x1c] sm:$0x1]
          %v285 = vld [vmem:[%s276 + $0x20] sm:$0xf]
          %v286 = vld [vmem:[%s276 + $0x24] sm:$0x1]
          %v287 = vld [vmem:[%s276 + $0x28] sm:$0xf]
          %v288 = vld [vmem:[%s276 + $0x2c] sm:$0x1]
          %v289 = vld [vmem:[%s276 + $0x30] sm:$0xf]
          %v290 = vld [vmem:[%s276 + $0x34] sm:$0x1]
          %v291 = vld [vmem:[%s276 + $0x38] sm:$0xf]
          %v292 = vld [vmem:[%s276 + $0x3c] sm:$0x1]
          %v293 = vld [vmem:[%s276 + $0x40] sm:$0xf]
          %v294 = vld [vmem:[%s276 + $0x44] sm:$0x1]
          %v295 = vld [vmem:[%s276 + $0x48] sm:$0xf]
          %v296 = vld [vmem:[%s276 + $0x4c] sm:$0x1]
          %v297 = vunpack.c.l.bf16 %v277
          %v298 = vunpack.c.l.bf16 %v278
          %v299 = vunpack.c.l.bf16 %v279
          %v300 = vunpack.c.l.bf16 %v280
          %v301 = vunpack.c.l.bf16 %v281
          %v302 = vunpack.c.l.bf16 %v282
          %v303 = vunpack.c.l.bf16 %v283
          %v304 = vunpack.c.l.bf16 %v284
          %v305 = vunpack.c.l.bf16 %v285
          %v306 = vunpack.c.l.bf16 %v286
          %v307 = vunpack.c.l.bf16 %v287
          %v308 = vunpack.c.l.bf16 %v288
          %v309 = vunpack.c.l.bf16 %v289
          %v310 = vunpack.c.l.bf16 %v290
          %v311 = vunpack.c.l.bf16 %v291
          %v312 = vunpack.c.l.bf16 %v292
          %v313 = vunpack.c.l.bf16 %v293
          %v314 = vunpack.c.l.bf16 %v294
          %v315 = vunpack.c.l.bf16 %v295
          %v316 = vunpack.c.l.bf16 %v296
          %s317 = sadd.s32 %s224, 2
          %s318 = smul.u32 %s317, 20
          %s319 = smul.addr %s318, 4
          %s320 = scalar_lea.vmem %s221, %s319
          %v321 = vld [vmem:[%s320] sm:$0xf]
          %v322 = vld [vmem:[%s320 + $0x4] sm:$0x1]
          %v323 = vld [vmem:[%s320 + $0x8] sm:$0xf]
          %v324 = vld [vmem:[%s320 + $0xc] sm:$0x1]
          %v325 = vld [vmem:[%s320 + $0x10] sm:$0xf]
          %v326 = vld [vmem:[%s320 + $0x14] sm:$0x1]
          %v327 = vld [vmem:[%s320 + $0x18] sm:$0xf]
          %v328 = vld [vmem:[%s320 + $0x1c] sm:$0x1]
          %v329 = vld [vmem:[%s320 + $0x20] sm:$0xf]
          %v330 = vld [vmem:[%s320 + $0x24] sm:$0x1]
          %v331 = vld [vmem:[%s320 + $0x28] sm:$0xf]
          %v332 = vld [vmem:[%s320 + $0x2c] sm:$0x1]
          %v333 = vld [vmem:[%s320 + $0x30] sm:$0xf]
          %v334 = vld [vmem:[%s320 + $0x34] sm:$0x1]
          %v335 = vld [vmem:[%s320 + $0x38] sm:$0xf]
          %v336 = vld [vmem:[%s320 + $0x3c] sm:$0x1]
          %v337 = vld [vmem:[%s320 + $0x40] sm:$0xf]
          %v338 = vld [vmem:[%s320 + $0x44] sm:$0x1]
          %v339 = vld [vmem:[%s320 + $0x48] sm:$0xf]
          %v340 = vld [vmem:[%s320 + $0x4c] sm:$0x1]
          %v341 = vunpack.c.l.bf16 %v321
          %v342 = vunpack.c.l.bf16 %v322
          %v343 = vunpack.c.l.bf16 %v323
          %v344 = vunpack.c.l.bf16 %v324
          %v345 = vunpack.c.l.bf16 %v325
          %v346 = vunpack.c.l.bf16 %v326
          %v347 = vunpack.c.l.bf16 %v327
          %v348 = vunpack.c.l.bf16 %v328
          %v349 = vunpack.c.l.bf16 %v329
          %v350 = vunpack.c.l.bf16 %v330
          %v351 = vunpack.c.l.bf16 %v331
          %v352 = vunpack.c.l.bf16 %v332
          %v353 = vunpack.c.l.bf16 %v333
          %v354 = vunpack.c.l.bf16 %v334
          %v355 = vunpack.c.l.bf16 %v335
          %v356 = vunpack.c.l.bf16 %v336
          %v357 = vunpack.c.l.bf16 %v337
          %v358 = vunpack.c.l.bf16 %v338
          %v359 = vunpack.c.l.bf16 %v339
          %v360 = vunpack.c.l.bf16 %v340
          %v361 = vpack.c.bf16 %v255, %v253
          %v362 = vpack.c.bf16 %v259, %v257
          %v363 = vpack.c.bf16 %v263, %v261
          %v364 = vpack.c.bf16 %v267, %v265
          %v365 = vld [vmem:[%s1] sm:$0x3]
          %vm382 = vcmask 1046528
          %v383 = vrot.slane %v253, 1
          %v384 = vrot.slane %v254, 1
          %v385 = vsel %vm382, %v383, %v384
          %v386 = vrot.slane %v255, 1
          %v387 = vrot.slane %v256, 1
          %v388 = vsel %vm382, %v386, %v387
          %v389 = vrot.slane %v257, 1
          %v390 = vrot.slane %v258, 1
          %v391 = vsel %vm382, %v389, %v390
          %v392 = vrot.slane %v259, 1
          %v393 = vrot.slane %v260, 1
          %v394 = vsel %vm382, %v392, %v393
          %v395 = vrot.slane %v261, 1
          %v396 = vrot.slane %v262, 1
          %v397 = vsel %vm382, %v395, %v396
          %v398 = vrot.slane %v263, 1
          %v399 = vrot.slane %v264, 1
          %v400 = vsel %vm382, %v398, %v399
          %v401 = vrot.slane %v265, 1
          %v402 = vrot.slane %v266, 1
          %v403 = vsel %vm382, %v401, %v402
          %v404 = vrot.slane %v267, 1
          %v405 = vrot.slane %v268, 1
          %v406 = vsel %vm382, %v404, %v405
          %v415 = vpack.c.bf16 %v388, %v385
          %v416 = vpack.c.bf16 %v394, %v391
          %v417 = vpack.c.bf16 %v400, %v397
          %v418 = vpack.c.bf16 %v406, %v403
          %s419 = scalar_lea.vmem %s1, 2
          %v420 = vld [vmem:[%s419] sm:$0x3]
          %vm421 = vcmask 23552
          %v423 = vsel %vm421, %v415, 0
          %v426 = vsel %vm421, %v416, 0
          %v429 = vsel %vm421, %v417, 0
          %v432 = vsel %vm421, %v418, 0
          %vm434 = vcmask 1040384
          %vm435 = vcmask 1041408
          %v436 = vsel %vm434, 4294967295, 65535
          %v437 = vsel %vm435, %v436, 0
          %v439 = vand.u32 %v420, %v437
          %441 = vmatprep.subr.bf16.mxu0 0
          %442 = vmatpush1.bf16.msra.mxu0 %v439
          %443 = vmatprep.subr.bf16.mxu0 0
          %444 = vmatpush1.bf16.msra.mxu0 0
          %445 = vmatprep.subr.bf16.mxu0 0
          %446 = vmatpush1.bf16.msra.mxu0 0
          %447 = vmatprep.subr.bf16.mxu0 0
          %448 = vmatpush1.bf16.msra.mxu0 0
          %449 = vmatprep.subr.bf16.mxu0 0
          %450 = vmatpush1.bf16.msra.mxu0 0
          %451 = vmatprep.subr.bf16.mxu0 0
          %452 = vmatpush1.bf16.msra.mxu0 0
          %453 = vmatprep.subr.bf16.mxu0 0
          %454 = vmatpush1.bf16.msra.mxu0 0
          %455 = vmatprep.subr.bf16.mxu0 0
          %456 = vmatpush1.bf16.msra.mxu0 0
          %457 = vmatprep.subr.bf16.mxu0 0
          %458 = vmatpush1.bf16.msra.mxu0 0
          %459 = vmatprep.subr.bf16.mxu0 0
          %460 = vmatpush1.bf16.msra.mxu0 0
          %461 = vmatprep.subr.bf16.mxu0 0
          %462 = vmatpush1.bf16.msra.mxu0 0
          %463 = vmatprep.subr.bf16.mxu0 0
          %464 = vmatpush1.bf16.msra.mxu0 0
          %465 = vmatprep.subr.bf16.mxu0 0
          %466 = vmatpush1.bf16.msra.mxu0 0
          %467 = vmatprep.subr.bf16.mxu0 0
          %468 = vmatpush1.bf16.msra.mxu0 0
          %469 = vmatprep.subr.bf16.mxu0 0
          %470 = vmatpush1.bf16.msra.mxu0 0
          %471 = vmatprep.subr.bf16.mxu0 0
          %472 = vmatpush1.bf16.msra.mxu0 0
          %473 = vmatprep.mubr.bf16.mxu0 0
          %474 = vmatmul.mubr.bf16.gmra.mrb[0].mxu0 %v423
          %v475 = vpop.f32.mrb[0].mxu0
          %v476 = vadd.f32 0.0, %v475
          %v477 = vpop.f32.mrb[0].mxu0
          %v478 = vpop.f32.mrb[0].mxu0
          %v479 = vadd.f32 0.0, %v478
          %v480 = vpop.f32.mrb[0].mxu0
          %481 = vmatprep.mubr.bf16.mxu0 0
          %482 = vmatmul.mubr.bf16.gmra.mrb[0].mxu0 %v426
          %v483 = vpop.f32.mrb[0].mxu0
          %v484 = vadd.f32 0.0, %v483
          %v485 = vpop.f32.mrb[0].mxu0
          %v486 = vpop.f32.mrb[0].mxu0
          %v487 = vadd.f32 0.0, %v486
          %v488 = vpop.f32.mrb[0].mxu0
          %489 = vmatprep.mubr.bf16.mxu0 0
          %490 = vmatmul.mubr.bf16.gmra.mrb[0].mxu0 %v429
          %v491 = vpop.f32.mrb[0].mxu0
          %v492 = vadd.f32 0.0, %v491
          %v493 = vpop.f32.mrb[0].mxu0
          %v494 = vpop.f32.mrb[0].mxu0
          %v495 = vadd.f32 0.0, %v494
          %v496 = vpop.f32.mrb[0].mxu0
          %497 = vmatprep.mubr.bf16.mxu0 0
          %498 = vmatmul.mubr.bf16.gmra.mrb[0].mxu0 %v432
          %v499 = vpop.f32.mrb[0].mxu0
          %v500 = vadd.f32 0.0, %v499
          %v501 = vpop.f32.mrb[0].mxu0
          %v502 = vpop.f32.mrb[0].mxu0
          %v503 = vadd.f32 0.0, %v502
          %v504 = vpop.f32.mrb[0].mxu0
          %505 = vdwg.mxu0
          %v507 = vsel %vm421, %v361, 0
          %v510 = vsel %vm421, %v362, 0
          %v513 = vsel %vm421, %v363, 0
          %v516 = vsel %vm421, %v364, 0
          %v519 = vand.u32 %v365, %v437
          %521 = vmatprep.subr.bf16.mxu0 0
          %522 = vmatpush1.bf16.msra.mxu0 %v519
          %523 = vmatprep.subr.bf16.mxu0 0
          %524 = vmatpush1.bf16.msra.mxu0 0
          %525 = vmatprep.subr.bf16.mxu0 0
          %526 = vmatpush1.bf16.msra.mxu0 0
          %527 = vmatprep.subr.bf16.mxu0 0
          %528 = vmatpush1.bf16.msra.mxu0 0
          %529 = vmatprep.subr.bf16.mxu0 0
          %530 = vmatpush1.bf16.msra.mxu0 0
          %531 = vmatprep.subr.bf16.mxu0 0
          %532 = vmatpush1.bf16.msra.mxu0 0
          %533 = vmatprep.subr.bf16.mxu0 0
          %534 = vmatpush1.bf16.msra.mxu0 0
          %535 = vmatprep.subr.bf16.mxu0 0
          %536 = vmatpush1.bf16.msra.mxu0 0
          %537 = vmatprep.subr.bf16.mxu0 0
          %538 = vmatpush1.bf16.msra.mxu0 0
          %539 = vmatprep.subr.bf16.mxu0 0
          %540 = vmatpush1.bf16.msra.mxu0 0
          %541 = vmatprep.subr.bf16.mxu0 0
          %542 = vmatpush1.bf16.msra.mxu0 0
          %543 = vmatprep.subr.bf16.mxu0 0
          %544 = vmatpush1.bf16.msra.mxu0 0
          %545 = vmatprep.subr.bf16.mxu0 0
          %546 = vmatpush1.bf16.msra.mxu0 0
          %547 = vmatprep.subr.bf16.mxu0 0
          %548 = vmatpush1.bf16.msra.mxu0 0
          %549 = vmatprep.subr.bf16.mxu0 0
          %550 = vmatpush1.bf16.msra.mxu0 0
          %551 = vmatprep.subr.bf16.mxu0 0
          %552 = vmatpush1.bf16.msra.mxu0 0
          %553 = vmatprep.mubr.bf16.mxu0 0
          %554 = vmatmul.mubr.bf16.gmra.mrb[0].mxu0 %v507
          %v555 = vpop.f32.mrb[0].mxu0
          %v556 = vadd.f32 %v476, %v555
          %v557 = vpop.f32.mrb[0].mxu0
          %v558 = vpop.f32.mrb[0].mxu0
          %v559 = vadd.f32 %v479, %v558
          %v560 = vpop.f32.mrb[0].mxu0
          %561 = vmatprep.mubr.bf16.mxu0 0
          %562 = vmatmul.mubr.bf16.gmra.mrb[0].mxu0 %v510
          %v563 = vpop.f32.mrb[0].mxu0
          %v564 = vadd.f32 %v484, %v563
          %v565 = vpop.f32.mrb[0].mxu0
          %v566 = vpop.f32.mrb[0].mxu0
          %v567 = vadd.f32 %v487, %v566
          %v568 = vpop.f32.mrb[0].mxu0
          %569 = vmatprep.mubr.bf16.mxu0 0
          %570 = vmatmul.mubr.bf16.gmra.mrb[0].mxu0 %v513
          %v571 = vpop.f32.mrb[0].mxu0
          %v572 = vadd.f32 %v492, %v571
          %v573 = vpop.f32.mrb[0].mxu0
          %v574 = vpop.f32.mrb[0].mxu0
          %v575 = vadd.f32 %v495, %v574
          %v576 = vpop.f32.mrb[0].mxu0
          %577 = vmatprep.mubr.bf16.mxu0 0
          %578 = vmatmul.mubr.bf16.gmra.mrb[0].mxu0 %v516
          %v579 = vpop.f32.mrb[0].mxu0
          %v580 = vadd.f32 %v500, %v579
          %v581 = vpop.f32.mrb[0].mxu0
          %v582 = vpop.f32.mrb[0].mxu0
          %v583 = vadd.f32 %v503, %v582
          %v584 = vpop.f32.mrb[0].mxu0
          %585 = vdwg.mxu0
          %vm586 = vcmask 1045504
          %v587 = vrot.slane %v253, 2
          %v588 = vrot.slane %v254, 2
          %v589 = vsel %vm586, %v587, %v588
          %v590 = vrot.slane %v255, 2
          %v591 = vrot.slane %v256, 2
          %v592 = vsel %vm586, %v590, %v591
          %v593 = vrot.slane %v257, 2
          %v594 = vrot.slane %v258, 2
          %v595 = vsel %vm586, %v593, %v594
          %v596 = vrot.slane %v259, 2
          %v597 = vrot.slane %v260, 2
          %v598 = vsel %vm586, %v596, %v597
          %v599 = vrot.slane %v261, 2
          %v600 = vrot.slane %v262, 2
          %v601 = vsel %vm586, %v599, %v600
          %v602 = vrot.slane %v263, 2
          %v603 = vrot.slane %v264, 2
          %v604 = vsel %vm586, %v602, %v603
          %v605 = vrot.slane %v265, 2
          %v606 = vrot.slane %v266, 2
          %v607 = vsel %vm586, %v605, %v606
          %v608 = vrot.slane %v267, 2
          %v609 = vrot.slane %v268, 2
          %v610 = vsel %vm586, %v608, %v609
          %v619 = vpack.c.bf16 %v592, %v589
          %v620 = vpack.c.bf16 %v598, %v595
          %v621 = vpack.c.bf16 %v604, %v601
          %v622 = vpack.c.bf16 %v610, %v607
          %s623 = scalar_lea.vmem %s1, 4
          %v624 = vld [vmem:[%s623] sm:$0x3]
          %v626 = vsel %vm421, %v619, 0
          %v629 = vsel %vm421, %v620, 0
          %v632 = vsel %vm421, %v621, 0
          %v635 = vsel %vm421, %v622, 0
          %v638 = vand.u32 %v624, %v437
          %640 = vmatprep.subr.bf16.mxu0 0
          %641 = vmatpush1.bf16.msra.mxu0 %v638
          %642 = vmatprep.subr.bf16.mxu0 0
          %643 = vmatpush1.bf16.msra.mxu0 0
          %644 = vmatprep.subr.bf16.mxu0 0
          %645 = vmatpush1.bf16.msra.mxu0 0
          %646 = vmatprep.subr.bf16.mxu0 0
          %647 = vmatpush1.bf16.msra.mxu0 0
          %648 = vmatprep.subr.bf16.mxu0 0
          %649 = vmatpush1.bf16.msra.mxu0 0
          %650 = vmatprep.subr.bf16.mxu0 0
          %651 = vmatpush1.bf16.msra.mxu0 0
          %652 = vmatprep.subr.bf16.mxu0 0
          %653 = vmatpush1.bf16.msra.mxu0 0
          %654 = vmatprep.subr.bf16.mxu0 0
          %655 = vmatpush1.bf16.msra.mxu0 0
          %656 = vmatprep.subr.bf16.mxu0 0
          %657 = vmatpush1.bf16.msra.mxu0 0
          %658 = vmatprep.subr.bf16.mxu0 0
          %659 = vmatpush1.bf16.msra.mxu0 0
          %660 = vmatprep.subr.bf16.mxu0 0
          %661 = vmatpush1.bf16.msra.mxu0 0
          %662 = vmatprep.subr.bf16.mxu0 0
          %663 = vmatpush1.bf16.msra.mxu0 0
          %664 = vmatprep.subr.bf16.mxu0 0
          %665 = vmatpush1.bf16.msra.mxu0 0
          %666 = vmatprep.subr.bf16.mxu0 0
          %667 = vmatpush1.bf16.msra.mxu0 0
          %668 = vmatprep.subr.bf16.mxu0 0
          %669 = vmatpush1.bf16.msra.mxu0 0
          %670 = vmatprep.subr.bf16.mxu0 0
          %671 = vmatpush1.bf16.msra.mxu0 0
          %672 = vmatprep.mubr.bf16.mxu0 0
          %673 = vmatmul.mubr.bf16.gmra.mrb[0].mxu0 %v626
          %v674 = vpop.f32.mrb[0].mxu0
          %v675 = vadd.f32 0.0, %v674
          %v676 = vpop.f32.mrb[0].mxu0
          %v677 = vpop.f32.mrb[0].mxu0
          %v678 = vadd.f32 0.0, %v677
          %v679 = vpop.f32.mrb[0].mxu0
          %680 = vmatprep.mubr.bf16.mxu0 0
          %681 = vmatmul.mubr.bf16.gmra.mrb[0].mxu0 %v629
          %v682 = vpop.f32.mrb[0].mxu0
          %v683 = vadd.f32 0.0, %v682
          %v684 = vpop.f32.mrb[0].mxu0
          %v685 = vpop.f32.mrb[0].mxu0
          %v686 = vadd.f32 0.0, %v685
          %v687 = vpop.f32.mrb[0].mxu0
          %688 = vmatprep.mubr.bf16.mxu0 0
          %689 = vmatmul.mubr.bf16.gmra.mrb[0].mxu0 %v632
          %v690 = vpop.f32.mrb[0].mxu0
          %v691 = vadd.f32 0.0, %v690
          %v692 = vpop.f32.mrb[0].mxu0
          %v693 = vpop.f32.mrb[0].mxu0
          %v694 = vadd.f32 0.0, %v693
          %v695 = vpop.f32.mrb[0].mxu0
          %696 = vmatprep.mubr.bf16.mxu0 0
          %697 = vmatmul.mubr.bf16.gmra.mrb[0].mxu0 %v635
          %v698 = vpop.f32.mrb[0].mxu0
          %v699 = vadd.f32 0.0, %v698
          %v700 = vpop.f32.mrb[0].mxu0
          %v701 = vpop.f32.mrb[0].mxu0
          %v702 = vadd.f32 0.0, %v701
          %v703 = vpop.f32.mrb[0].mxu0
          %704 = vdwg.mxu0
          %v705 = vadd.f32 %v556, %v675
          %v706 = vadd.f32 %v559, %v678
          %v707 = vadd.f32 %v564, %v683
          %v708 = vadd.f32 %v567, %v686
          %v709 = vadd.f32 %v572, %v691
          %v710 = vadd.f32 %v575, %v694
          %v711 = vadd.f32 %v580, %v699
          %v712 = vadd.f32 %v583, %v702
          %v713 = vpack.c.bf16 %v257, %v255
          %v714 = vpack.c.bf16 %v261, %v259
          %v715 = vpack.c.bf16 %v265, %v263
          %v716 = vpack.c.bf16 %v269, %v267
          %s717 = scalar_lea.vmem %s1, 6
          %v718 = vld [vmem:[%s717] sm:$0x3]
          %v720 = vsel %vm421, %v713, 0
          %v723 = vsel %vm421, %v714, 0
          %v726 = vsel %vm421, %v715, 0
          %v729 = vsel %vm421, %v716, 0
          %v732 = vand.u32 %v718, %v437
          %734 = vmatprep.subr.bf16.mxu0 0
          %735 = vmatpush1.bf16.msra.mxu0 %v732
          %736 = vmatprep.subr.bf16.mxu0 0
          %737 = vmatpush1.bf16.msra.mxu0 0
          %738 = vmatprep.subr.bf16.mxu0 0
          %739 = vmatpush1.bf16.msra.mxu0 0
          %740 = vmatprep.subr.bf16.mxu0 0
          %741 = vmatpush1.bf16.msra.mxu0 0
          %742 = vmatprep.subr.bf16.mxu0 0
          %743 = vmatpush1.bf16.msra.mxu0 0
          %744 = vmatprep.subr.bf16.mxu0 0
          %745 = vmatpush1.bf16.msra.mxu0 0
          %746 = vmatprep.subr.bf16.mxu0 0
          %747 = vmatpush1.bf16.msra.mxu0 0
          %748 = vmatprep.subr.bf16.mxu0 0
          %749 = vmatpush1.bf16.msra.mxu0 0
          %750 = vmatprep.subr.bf16.mxu0 0
          %751 = vmatpush1.bf16.msra.mxu0 0
          %752 = vmatprep.subr.bf16.mxu0 0
          %753 = vmatpush1.bf16.msra.mxu0 0
          %754 = vmatprep.subr.bf16.mxu0 0
          %755 = vmatpush1.bf16.msra.mxu0 0
          %756 = vmatprep.subr.bf16.mxu0 0
          %757 = vmatpush1.bf16.msra.mxu0 0
          %758 = vmatprep.subr.bf16.mxu0 0
          %759 = vmatpush1.bf16.msra.mxu0 0
          %760 = vmatprep.subr.bf16.mxu0 0
          %761 = vmatpush1.bf16.msra.mxu0 0
          %762 = vmatprep.subr.bf16.mxu0 0
          %763 = vmatpush1.bf16.msra.mxu0 0
          %764 = vmatprep.subr.bf16.mxu0 0
          %765 = vmatpush1.bf16.msra.mxu0 0
          %766 = vmatprep.mubr.bf16.mxu0 0
          %767 = vmatmul.mubr.bf16.gmra.mrb[0].mxu0 %v720
          %v768 = vpop.f32.mrb[0].mxu0
          %v769 = vadd.f32 0.0, %v768
          %v770 = vpop.f32.mrb[0].mxu0
          %v771 = vpop.f32.mrb[0].mxu0
          %v772 = vadd.f32 0.0, %v771
          %v773 = vpop.f32.mrb[0].mxu0
          %774 = vmatprep.mubr.bf16.mxu0 0
          %775 = vmatmul.mubr.bf16.gmra.mrb[0].mxu0 %v723
          %v776 = vpop.f32.mrb[0].mxu0
          %v777 = vadd.f32 0.0, %v776
          %v778 = vpop.f32.mrb[0].mxu0
          %v779 = vpop.f32.mrb[0].mxu0
          %v780 = vadd.f32 0.0, %v779
          %v781 = vpop.f32.mrb[0].mxu0
          %782 = vmatprep.mubr.bf16.mxu0 0
          %783 = vmatmul.mubr.bf16.gmra.mrb[0].mxu0 %v726
          %v784 = vpop.f32.mrb[0].mxu0
          %v785 = vadd.f32 0.0, %v784
          %v786 = vpop.f32.mrb[0].mxu0
          %v787 = vpop.f32.mrb[0].mxu0
          %v788 = vadd.f32 0.0, %v787
          %v789 = vpop.f32.mrb[0].mxu0
          %790 = vmatprep.mubr.bf16.mxu0 0
          %791 = vmatmul.mubr.bf16.gmra.mrb[0].mxu0 %v729
          %v792 = vpop.f32.mrb[0].mxu0
          %v793 = vadd.f32 0.0, %v792
          %v794 = vpop.f32.mrb[0].mxu0
          %v795 = vpop.f32.mrb[0].mxu0
          %v796 = vadd.f32 0.0, %v795
          %v797 = vpop.f32.mrb[0].mxu0
          %798 = vdwg.mxu0
          %v799 = vadd.f32 %v705, %v769
          %v800 = vadd.f32 %v706, %v772
          %v801 = vadd.f32 %v707, %v777
          %v802 = vadd.f32 %v708, %v780
          %v803 = vadd.f32 %v709, %v785
          %v804 = vadd.f32 %v710, %v788
          %v805 = vadd.f32 %v711, %v793
          %v806 = vadd.f32 %v712, %v796
          %v809 = vrot.slane %v269, 1
          %v810 = vrot.slane %v270, 1
          %v811 = vsel %vm382, %v809, %v810
          %v813 = vpack.c.bf16 %v391, %v388
          %v814 = vpack.c.bf16 %v397, %v394
          %v815 = vpack.c.bf16 %v403, %v400
          %v816 = vpack.c.bf16 %v811, %v406
          %s817 = scalar_lea.vmem %s1, 8
          %v818 = vld [vmem:[%s817] sm:$0x3]
          %v820 = vsel %vm421, %v813, 0
          %v823 = vsel %vm421, %v814, 0
          %v826 = vsel %vm421, %v815, 0
          %v829 = vsel %vm421, %v816, 0
          %v832 = vand.u32 %v818, %v437
          %834 = vmatprep.subr.bf16.mxu0 0
          %835 = vmatpush1.bf16.msra.mxu0 %v832
          %836 = vmatprep.subr.bf16.mxu0 0
          %837 = vmatpush1.bf16.msra.mxu0 0
          %838 = vmatprep.subr.bf16.mxu0 0
          %839 = vmatpush1.bf16.msra.mxu0 0
          %840 = vmatprep.subr.bf16.mxu0 0
          %841 = vmatpush1.bf16.msra.mxu0 0
          %842 = vmatprep.subr.bf16.mxu0 0
          %843 = vmatpush1.bf16.msra.mxu0 0
          %844 = vmatprep.subr.bf16.mxu0 0
          %845 = vmatpush1.bf16.msra.mxu0 0
          %846 = vmatprep.subr.bf16.mxu0 0
          %847 = vmatpush1.bf16.msra.mxu0 0
          %848 = vmatprep.subr.bf16.mxu0 0
          %849 = vmatpush1.bf16.msra.mxu0 0
          %850 = vmatprep.subr.bf16.mxu0 0
          %851 = vmatpush1.bf16.msra.mxu0 0
          %852 = vmatprep.subr.bf16.mxu0 0
          %853 = vmatpush1.bf16.msra.mxu0 0
          %854 = vmatprep.subr.bf16.mxu0 0
          %855 = vmatpush1.bf16.msra.mxu0 0
          %856 = vmatprep.subr.bf16.mxu0 0
          %857 = vmatpush1.bf16.msra.mxu0 0
          %858 = vmatprep.subr.bf16.mxu0 0
          %859 = vmatpush1.bf16.msra.mxu0 0
          %860 = vmatprep.subr.bf16.mxu0 0
          %861 = vmatpush1.bf16.msra.mxu0 0
          %862 = vmatprep.subr.bf16.mxu0 0
          %863 = vmatpush1.bf16.msra.mxu0 0
          %864 = vmatprep.subr.bf16.mxu0 0
          %865 = vmatpush1.bf16.msra.mxu0 0
          %866 = vmatprep.mubr.bf16.mxu0 0
          %867 = vmatmul.mubr.bf16.gmra.mrb[0].mxu0 %v820
          %v868 = vpop.f32.mrb[0].mxu0
          %v869 = vadd.f32 0.0, %v868
          %v870 = vpop.f32.mrb[0].mxu0
          %v871 = vpop.f32.mrb[0].mxu0
          %v872 = vadd.f32 0.0, %v871
          %v873 = vpop.f32.mrb[0].mxu0
          %874 = vmatprep.mubr.bf16.mxu0 0
          %875 = vmatmul.mubr.bf16.gmra.mrb[0].mxu0 %v823
          %v876 = vpop.f32.mrb[0].mxu0
          %v877 = vadd.f32 0.0, %v876
          %v878 = vpop.f32.mrb[0].mxu0
          %v879 = vpop.f32.mrb[0].mxu0
          %v880 = vadd.f32 0.0, %v879
          %v881 = vpop.f32.mrb[0].mxu0
          %882 = vmatprep.mubr.bf16.mxu0 0
          %883 = vmatmul.mubr.bf16.gmra.mrb[0].mxu0 %v826
          %v884 = vpop.f32.mrb[0].mxu0
          %v885 = vadd.f32 0.0, %v884
          %v886 = vpop.f32.mrb[0].mxu0
          %v887 = vpop.f32.mrb[0].mxu0
          %v888 = vadd.f32 0.0, %v887
          %v889 = vpop.f32.mrb[0].mxu0
          %890 = vmatprep.mubr.bf16.mxu0 0
          %891 = vmatmul.mubr.bf16.gmra.mrb[0].mxu0 %v829
          %v892 = vpop.f32.mrb[0].mxu0
          %v893 = vadd.f32 0.0, %v892
          %v894 = vpop.f32.mrb[0].mxu0
          %v895 = vpop.f32.mrb[0].mxu0
          %v896 = vadd.f32 0.0, %v895
          %v897 = vpop.f32.mrb[0].mxu0
          %898 = vdwg.mxu0
          %v899 = vadd.f32 %v799, %v869
          %v900 = vadd.f32 %v800, %v872
          %v901 = vadd.f32 %v801, %v877
          %v902 = vadd.f32 %v802, %v880
          %v903 = vadd.f32 %v803, %v885
          %v904 = vadd.f32 %v804, %v888
          %v905 = vadd.f32 %v805, %v893
          %v906 = vadd.f32 %v806, %v896
          %v907 = vrot.slane %v269, 2
          %v908 = vrot.slane %v270, 2
          %v909 = vsel %vm586, %v907, %v908
          %v911 = vpack.c.bf16 %v595, %v592
          %v912 = vpack.c.bf16 %v601, %v598
          %v913 = vpack.c.bf16 %v607, %v604
          %v914 = vpack.c.bf16 %v909, %v610
          %s915 = scalar_lea.vmem %s1, 10
          %v916 = vld [vmem:[%s915] sm:$0x3]
          %v918 = vsel %vm421, %v911, 0
          %v921 = vsel %vm421, %v912, 0
          %v924 = vsel %vm421, %v913, 0
          %v927 = vsel %vm421, %v914, 0
          %v930 = vand.u32 %v916, %v437
          %932 = vmatprep.subr.bf16.mxu0 0
          %933 = vmatpush1.bf16.msra.mxu0 %v930
          %934 = vmatprep.subr.bf16.mxu0 0
          %935 = vmatpush1.bf16.msra.mxu0 0
          %936 = vmatprep.subr.bf16.mxu0 0
          %937 = vmatpush1.bf16.msra.mxu0 0
          %938 = vmatprep.subr.bf16.mxu0 0
          %939 = vmatpush1.bf16.msra.mxu0 0
          %940 = vmatprep.subr.bf16.mxu0 0
          %941 = vmatpush1.bf16.msra.mxu0 0
          %942 = vmatprep.subr.bf16.mxu0 0
          %943 = vmatpush1.bf16.msra.mxu0 0
          %944 = vmatprep.subr.bf16.mxu0 0
          %945 = vmatpush1.bf16.msra.mxu0 0
          %946 = vmatprep.subr.bf16.mxu0 0
          %947 = vmatpush1.bf16.msra.mxu0 0
          %948 = vmatprep.subr.bf16.mxu0 0
          %949 = vmatpush1.bf16.msra.mxu0 0
          %950 = vmatprep.subr.bf16.mxu0 0
          %951 = vmatpush1.bf16.msra.mxu0 0
          %952 = vmatprep.subr.bf16.mxu0 0
          %953 = vmatpush1.bf16.msra.mxu0 0
          %954 = vmatprep.subr.bf16.mxu0 0
          %955 = vmatpush1.bf16.msra.mxu0 0
          %956 = vmatprep.subr.bf16.mxu0 0
          %957 = vmatpush1.bf16.msra.mxu0 0
          %958 = vmatprep.subr.bf16.mxu0 0
          %959 = vmatpush1.bf16.msra.mxu0 0
          %960 = vmatprep.subr.bf16.mxu0 0
          %961 = vmatpush1.bf16.msra.mxu0 0
          %962 = vmatprep.subr.bf16.mxu0 0
          %963 = vmatpush1.bf16.msra.mxu0 0
          %964 = vmatprep.mubr.bf16.mxu0 0
          %965 = vmatmul.mubr.bf16.gmra.mrb[0].mxu0 %v918
          %v966 = vpop.f32.mrb[0].mxu0
          %v967 = vadd.f32 0.0, %v966
          %v968 = vpop.f32.mrb[0].mxu0
          %v969 = vpop.f32.mrb[0].mxu0
          %v970 = vadd.f32 0.0, %v969
          %v971 = vpop.f32.mrb[0].mxu0
          %972 = vmatprep.mubr.bf16.mxu0 0
          %973 = vmatmul.mubr.bf16.gmra.mrb[0].mxu0 %v921
          %v974 = vpop.f32.mrb[0].mxu0
          %v975 = vadd.f32 0.0, %v974
          %v976 = vpop.f32.mrb[0].mxu0
          %v977 = vpop.f32.mrb[0].mxu0
          %v978 = vadd.f32 0.0, %v977
          %v979 = vpop.f32.mrb[0].mxu0
          %980 = vmatprep.mubr.bf16.mxu0 0
          %981 = vmatmul.mubr.bf16.gmra.mrb[0].mxu0 %v924
          %v982 = vpop.f32.mrb[0].mxu0
          %v983 = vadd.f32 0.0, %v982
          %v984 = vpop.f32.mrb[0].mxu0
          %v985 = vpop.f32.mrb[0].mxu0
          %v986 = vadd.f32 0.0, %v985
          %v987 = vpop.f32.mrb[0].mxu0
          %988 = vmatprep.mubr.bf16.mxu0 0
          %989 = vmatmul.mubr.bf16.gmra.mrb[0].mxu0 %v927
          %v990 = vpop.f32.mrb[0].mxu0
          %v991 = vadd.f32 0.0, %v990
          %v992 = vpop.f32.mrb[0].mxu0
          %v993 = vpop.f32.mrb[0].mxu0
          %v994 = vadd.f32 0.0, %v993
          %v995 = vpop.f32.mrb[0].mxu0
          %996 = vdwg.mxu0
          %v997 = vadd.f32 %v899, %v967
          %v998 = vadd.f32 %v900, %v970
          %v999 = vadd.f32 %v901, %v975
          %v1000 = vadd.f32 %v902, %v978
          %v1001 = vadd.f32 %v903, %v983
          %v1002 = vadd.f32 %v904, %v986
          %v1003 = vadd.f32 %v905, %v991
          %v1004 = vadd.f32 %v906, %v994
          %v1005 = vpack.c.bf16 %v271, %v269
          %s1006 = scalar_lea.vmem %s1, 12
          %v1007 = vld [vmem:[%s1006] sm:$0x3]
          %v1009 = vsel %vm421, %v1005, 0
          %v1012 = vand.u32 %v1007, %v437
          %1014 = vmatprep.subr.bf16.mxu0 0
          %1015 = vmatpush1.bf16.msra.mxu0 %v1012
          %1016 = vmatprep.subr.bf16.mxu0 0
          %1017 = vmatpush1.bf16.msra.mxu0 0
          %1018 = vmatprep.subr.bf16.mxu0 0
          %1019 = vmatpush1.bf16.msra.mxu0 0
          %1020 = vmatprep.subr.bf16.mxu0 0
          %1021 = vmatpush1.bf16.msra.mxu0 0
          %1022 = vmatprep.subr.bf16.mxu0 0
          %1023 = vmatpush1.bf16.msra.mxu0 0
          %1024 = vmatprep.subr.bf16.mxu0 0
          %1025 = vmatpush1.bf16.msra.mxu0 0
          %1026 = vmatprep.subr.bf16.mxu0 0
          %1027 = vmatpush1.bf16.msra.mxu0 0
          %1028 = vmatprep.subr.bf16.mxu0 0
          %1029 = vmatpush1.bf16.msra.mxu0 0
          %1030 = vmatprep.subr.bf16.mxu0 0
          %1031 = vmatpush1.bf16.msra.mxu0 0
          %1032 = vmatprep.subr.bf16.mxu0 0
          %1033 = vmatpush1.bf16.msra.mxu0 0
          %1034 = vmatprep.subr.bf16.mxu0 0
          %1035 = vmatpush1.bf16.msra.mxu0 0
          %1036 = vmatprep.subr.bf16.mxu0 0
          %1037 = vmatpush1.bf16.msra.mxu0 0
          %1038 = vmatprep.subr.bf16.mxu0 0
          %1039 = vmatpush1.bf16.msra.mxu0 0
          %1040 = vmatprep.subr.bf16.mxu0 0
          %1041 = vmatpush1.bf16.msra.mxu0 0
          %1042 = vmatprep.subr.bf16.mxu0 0
          %1043 = vmatpush1.bf16.msra.mxu0 0
          %1044 = vmatprep.subr.bf16.mxu0 0
          %1045 = vmatpush1.bf16.msra.mxu0 0
          %1046 = vmatprep.mubr.bf16.mxu0 0
          %1047 = vmatmul.mubr.bf16.gmra.mrb[0].mxu0 %v510
          %v1048 = vpop.f32.mrb[0].mxu0
          %v1049 = vadd.f32 0.0, %v1048
          %v1050 = vpop.f32.mrb[0].mxu0
          %v1051 = vpop.f32.mrb[0].mxu0
          %v1052 = vadd.f32 0.0, %v1051
          %v1053 = vpop.f32.mrb[0].mxu0
          %1054 = vmatprep.mubr.bf16.mxu0 0
          %1055 = vmatmul.mubr.bf16.gmra.mrb[0].mxu0 %v513
          %v1056 = vpop.f32.mrb[0].mxu0
          %v1057 = vadd.f32 0.0, %v1056
          %v1058 = vpop.f32.mrb[0].mxu0
          %v1059 = vpop.f32.mrb[0].mxu0
          %v1060 = vadd.f32 0.0, %v1059
          %v1061 = vpop.f32.mrb[0].mxu0
          %1062 = vmatprep.mubr.bf16.mxu0 0
          %1063 = vmatmul.mubr.bf16.gmra.mrb[0].mxu0 %v516
          %v1064 = vpop.f32.mrb[0].mxu0
          %v1065 = vadd.f32 0.0, %v1064
          %v1066 = vpop.f32.mrb[0].mxu0
          %v1067 = vpop.f32.mrb[0].mxu0
          %v1068 = vadd.f32 0.0, %v1067
          %v1069 = vpop.f32.mrb[0].mxu0
          %1070 = vmatprep.mubr.bf16.mxu0 0
          %1071 = vmatmul.mubr.bf16.gmra.mrb[0].mxu0 %v1009
          %v1072 = vpop.f32.mrb[0].mxu0
          %v1073 = vadd.f32 0.0, %v1072
          %v1074 = vpop.f32.mrb[0].mxu0
          %v1075 = vpop.f32.mrb[0].mxu0
          %v1076 = vadd.f32 0.0, %v1075
          %v1077 = vpop.f32.mrb[0].mxu0
          %1078 = vdwg.mxu0
          %v1079 = vadd.f32 %v997, %v1049
          %v1080 = vadd.f32 %v998, %v1052
          %v1081 = vadd.f32 %v999, %v1057
          %v1082 = vadd.f32 %v1000, %v1060
          %v1083 = vadd.f32 %v1001, %v1065
          %v1084 = vadd.f32 %v1002, %v1068
          %v1085 = vadd.f32 %v1003, %v1073
          %v1086 = vadd.f32 %v1004, %v1076
          %v1089 = vrot.slane %v271, 1
          %v1090 = vrot.slane %v272, 1
          %v1091 = vsel %vm382, %v1089, %v1090
          %v1093 = vpack.c.bf16 %v1091, %v811
          %s1094 = scalar_lea.vmem %s1, 14
          %v1095 = vld [vmem:[%s1094] sm:$0x3]
          %v1097 = vsel %vm421, %v1093, 0
          %v1100 = vand.u32 %v1095, %v437
          %1102 = vmatprep.subr.bf16.mxu0 0
          %1103 = vmatpush1.bf16.msra.mxu0 %v1100
          %1104 = vmatprep.subr.bf16.mxu0 0
          %1105 = vmatpush1.bf16.msra.mxu0 0
          %1106 = vmatprep.subr.bf16.mxu0 0
          %1107 = vmatpush1.bf16.msra.mxu0 0
          %1108 = vmatprep.subr.bf16.mxu0 0
          %1109 = vmatpush1.bf16.msra.mxu0 0
          %1110 = vmatprep.subr.bf16.mxu0 0
          %1111 = vmatpush1.bf16.msra.mxu0 0
          %1112 = vmatprep.subr.bf16.mxu0 0
          %1113 = vmatpush1.bf16.msra.mxu0 0
          %1114 = vmatprep.subr.bf16.mxu0 0
          %1115 = vmatpush1.bf16.msra.mxu0 0
          %1116 = vmatprep.subr.bf16.mxu0 0
          %1117 = vmatpush1.bf16.msra.mxu0 0
          %1118 = vmatprep.subr.bf16.mxu0 0
          %1119 = vmatpush1.bf16.msra.mxu0 0
          %1120 = vmatprep.subr.bf16.mxu0 0
          %1121 = vmatpush1.bf16.msra.mxu0 0
          %1122 = vmatprep.subr.bf16.mxu0 0
          %1123 = vmatpush1.bf16.msra.mxu0 0
          %1124 = vmatprep.subr.bf16.mxu0 0
          %1125 = vmatpush1.bf16.msra.mxu0 0
          %1126 = vmatprep.subr.bf16.mxu0 0
          %1127 = vmatpush1.bf16.msra.mxu0 0
          %1128 = vmatprep.subr.bf16.mxu0 0
          %1129 = vmatpush1.bf16.msra.mxu0 0
          %1130 = vmatprep.subr.bf16.mxu0 0
          %1131 = vmatpush1.bf16.msra.mxu0 0
          %1132 = vmatprep.subr.bf16.mxu0 0
          %1133 = vmatpush1.bf16.msra.mxu0 0
          %1134 = vmatprep.mubr.bf16.mxu0 0
          %1135 = vmatmul.mubr.bf16.gmra.mrb[0].mxu0 %v426
          %v1136 = vpop.f32.mrb[0].mxu0
          %v1137 = vadd.f32 0.0, %v1136
          %v1138 = vpop.f32.mrb[0].mxu0
          %v1139 = vpop.f32.mrb[0].mxu0
          %v1140 = vadd.f32 0.0, %v1139
          %v1141 = vpop.f32.mrb[0].mxu0
          %1142 = vmatprep.mubr.bf16.mxu0 0
          %1143 = vmatmul.mubr.bf16.gmra.mrb[0].mxu0 %v429
          %v1144 = vpop.f32.mrb[0].mxu0
          %v1145 = vadd.f32 0.0, %v1144
          %v1146 = vpop.f32.mrb[0].mxu0
          %v1147 = vpop.f32.mrb[0].mxu0
          %v1148 = vadd.f32 0.0, %v1147
          %v1149 = vpop.f32.mrb[0].mxu0
          %1150 = vmatprep.mubr.bf16.mxu0 0
          %1151 = vmatmul.mubr.bf16.gmra.mrb[0].mxu0 %v432
          %v1152 = vpop.f32.mrb[0].mxu0
          %v1153 = vadd.f32 0.0, %v1152
          %v1154 = vpop.f32.mrb[0].mxu0
          %v1155 = vpop.f32.mrb[0].mxu0
          %v1156 = vadd.f32 0.0, %v1155
          %v1157 = vpop.f32.mrb[0].mxu0
          %1158 = vmatprep.mubr.bf16.mxu0 0
          %1159 = vmatmul.mubr.bf16.gmra.mrb[0].mxu0 %v1097
          %v1160 = vpop.f32.mrb[0].mxu0
          %v1161 = vadd.f32 0.0, %v1160
          %v1162 = vpop.f32.mrb[0].mxu0
          %v1163 = vpop.f32.mrb[0].mxu0
          %v1164 = vadd.f32 0.0, %v1163
          %v1165 = vpop.f32.mrb[0].mxu0
          %1166 = vdwg.mxu0
          %v1167 = vadd.f32 %v1079, %v1137
          %v1168 = vadd.f32 %v1080, %v1140
          %v1169 = vadd.f32 %v1081, %v1145
          %v1170 = vadd.f32 %v1082, %v1148
          %v1171 = vadd.f32 %v1083, %v1153
          %v1172 = vadd.f32 %v1084, %v1156
          %v1173 = vadd.f32 %v1085, %v1161
          %v1174 = vadd.f32 %v1086, %v1164
          %v1175 = vrot.slane %v271, 2
          %v1176 = vrot.slane %v272, 2
          %v1177 = vsel %vm586, %v1175, %v1176
          %v1179 = vpack.c.bf16 %v1177, %v909
          %s1180 = scalar_lea.vmem %s1, 16
          %v1181 = vld [vmem:[%s1180] sm:$0x3]
          %v1183 = vsel %vm421, %v1179, 0
          %v1186 = vand.u32 %v1181, %v437
          %1188 = vmatprep.subr.bf16.mxu0 0
          %1189 = vmatpush1.bf16.msra.mxu0 %v1186
          %1190 = vmatprep.subr.bf16.mxu0 0
          %1191 = vmatpush1.bf16.msra.mxu0 0
          %1192 = vmatprep.subr.bf16.mxu0 0
          %1193 = vmatpush1.bf16.msra.mxu0 0
          %1194 = vmatprep.subr.bf16.mxu0 0
          %1195 = vmatpush1.bf16.msra.mxu0 0
          %1196 = vmatprep.subr.bf16.mxu0 0
          %1197 = vmatpush1.bf16.msra.mxu0 0
          %1198 = vmatprep.subr.bf16.mxu0 0
          %1199 = vmatpush1.bf16.msra.mxu0 0
          %1200 = vmatprep.subr.bf16.mxu0 0
          %1201 = vmatpush1.bf16.msra.mxu0 0
          %1202 = vmatprep.subr.bf16.mxu0 0
          %1203 = vmatpush1.bf16.msra.mxu0 0
          %1204 = vmatprep.subr.bf16.mxu0 0
          %1205 = vmatpush1.bf16.msra.mxu0 0
          %1206 = vmatprep.subr.bf16.mxu0 0
          %1207 = vmatpush1.bf16.msra.mxu0 0
          %1208 = vmatprep.subr.bf16.mxu0 0
          %1209 = vmatpush1.bf16.msra.mxu0 0
          %1210 = vmatprep.subr.bf16.mxu0 0
          %1211 = vmatpush1.bf16.msra.mxu0 0
          %1212 = vmatprep.subr.bf16.mxu0 0
          %1213 = vmatpush1.bf16.msra.mxu0 0
          %1214 = vmatprep.subr.bf16.mxu0 0
          %1215 = vmatpush1.bf16.msra.mxu0 0
          %1216 = vmatprep.subr.bf16.mxu0 0
          %1217 = vmatpush1.bf16.msra.mxu0 0
          %1218 = vmatprep.subr.bf16.mxu0 0
          %1219 = vmatpush1.bf16.msra.mxu0 0
          %1220 = vmatprep.mubr.bf16.mxu0 0
          %1221 = vmatmul.mubr.bf16.gmra.mrb[0].mxu0 %v629
          %v1222 = vpop.f32.mrb[0].mxu0
          %v1223 = vadd.f32 0.0, %v1222
          %v1224 = vpop.f32.mrb[0].mxu0
          %v1225 = vpop.f32.mrb[0].mxu0
          %v1226 = vadd.f32 0.0, %v1225
          %v1227 = vpop.f32.mrb[0].mxu0
          %1228 = vmatprep.mubr.bf16.mxu0 0
          %1229 = vmatmul.mubr.bf16.gmra.mrb[0].mxu0 %v632
          %v1230 = vpop.f32.mrb[0].mxu0
          %v1231 = vadd.f32 0.0, %v1230
          %v1232 = vpop.f32.mrb[0].mxu0
          %v1233 = vpop.f32.mrb[0].mxu0
          %v1234 = vadd.f32 0.0, %v1233
          %v1235 = vpop.f32.mrb[0].mxu0
          %1236 = vmatprep.mubr.bf16.mxu0 0
          %1237 = vmatmul.mubr.bf16.gmra.mrb[0].mxu0 %v635
          %v1238 = vpop.f32.mrb[0].mxu0
          %v1239 = vadd.f32 0.0, %v1238
          %v1240 = vpop.f32.mrb[0].mxu0
          %v1241 = vpop.f32.mrb[0].mxu0
          %v1242 = vadd.f32 0.0, %v1241
          %v1243 = vpop.f32.mrb[0].mxu0
          %1244 = vmatprep.mubr.bf16.mxu0 0
          %1245 = vmatmul.mubr.bf16.gmra.mrb[0].mxu0 %v1183
          %v1246 = vpop.f32.mrb[0].mxu0
          %v1247 = vadd.f32 0.0, %v1246
          %v1248 = vpop.f32.mrb[0].mxu0
          %v1249 = vpop.f32.mrb[0].mxu0
          %v1250 = vadd.f32 0.0, %v1249
          %v1251 = vpop.f32.mrb[0].mxu0
          %1252 = vdwg.mxu0
          %v1253 = vadd.f32 %v1167, %v1223
          %v1254 = vadd.f32 %v1168, %v1226
          %v1255 = vadd.f32 %v1169, %v1231
          %v1256 = vadd.f32 %v1170, %v1234
          %v1257 = vadd.f32 %v1171, %v1239
          %v1258 = vadd.f32 %v1172, %v1242
          %v1259 = vadd.f32 %v1173, %v1247
          %v1260 = vadd.f32 %v1174, %v1250
          %v1261 = vpack.c.bf16 %v299, %v297
          %v1262 = vpack.c.bf16 %v303, %v301
          %v1263 = vpack.c.bf16 %v307, %v305
          %v1264 = vpack.c.bf16 %v311, %v309
          %s1265 = scalar_lea.vmem %s1, 18
          %v1266 = vld [vmem:[%s1265] sm:$0x3]
          %v1268 = vsel %vm421, %v1261, 0
          %v1271 = vsel %vm421, %v1262, 0
          %v1274 = vsel %vm421, %v1263, 0
          %v1277 = vsel %vm421, %v1264, 0
          %v1280 = vand.u32 %v1266, %v437
          %1282 = vmatprep.subr.bf16.mxu0 0
          %1283 = vmatpush1.bf16.msra.mxu0 %v1280
          %1284 = vmatprep.subr.bf16.mxu0 0
          %1285 = vmatpush1.bf16.msra.mxu0 0
          %1286 = vmatprep.subr.bf16.mxu0 0
          %1287 = vmatpush1.bf16.msra.mxu0 0
          %1288 = vmatprep.subr.bf16.mxu0 0
          %1289 = vmatpush1.bf16.msra.mxu0 0
          %1290 = vmatprep.subr.bf16.mxu0 0
          %1291 = vmatpush1.bf16.msra.mxu0 0
          %1292 = vmatprep.subr.bf16.mxu0 0
          %1293 = vmatpush1.bf16.msra.mxu0 0
          %1294 = vmatprep.subr.bf16.mxu0 0
          %1295 = vmatpush1.bf16.msra.mxu0 0
          %1296 = vmatprep.subr.bf16.mxu0 0
          %1297 = vmatpush1.bf16.msra.mxu0 0
          %1298 = vmatprep.subr.bf16.mxu0 0
          %1299 = vmatpush1.bf16.msra.mxu0 0
          %1300 = vmatprep.subr.bf16.mxu0 0
          %1301 = vmatpush1.bf16.msra.mxu0 0
          %1302 = vmatprep.subr.bf16.mxu0 0
          %1303 = vmatpush1.bf16.msra.mxu0 0
          %1304 = vmatprep.subr.bf16.mxu0 0
          %1305 = vmatpush1.bf16.msra.mxu0 0
          %1306 = vmatprep.subr.bf16.mxu0 0
          %1307 = vmatpush1.bf16.msra.mxu0 0
          %1308 = vmatprep.subr.bf16.mxu0 0
          %1309 = vmatpush1.bf16.msra.mxu0 0
          %1310 = vmatprep.subr.bf16.mxu0 0
          %1311 = vmatpush1.bf16.msra.mxu0 0
          %1312 = vmatprep.subr.bf16.mxu0 0
          %1313 = vmatpush1.bf16.msra.mxu0 0
          %1314 = vmatprep.mubr.bf16.mxu0 0
          %1315 = vmatmul.mubr.bf16.gmra.mrb[0].mxu0 %v1268
          %v1316 = vpop.f32.mrb[0].mxu0
          %v1317 = vadd.f32 0.0, %v1316
          %v1318 = vpop.f32.mrb[0].mxu0
          %v1319 = vpop.f32.mrb[0].mxu0
          %v1320 = vadd.f32 0.0, %v1319
          %v1321 = vpop.f32.mrb[0].mxu0
          %1322 = vmatprep.mubr.bf16.mxu0 0
          %1323 = vmatmul.mubr.bf16.gmra.mrb[0].mxu0 %v1271
          %v1324 = vpop.f32.mrb[0].mxu0
          %v1325 = vadd.f32 0.0, %v1324
          %v1326 = vpop.f32.mrb[0].mxu0
          %v1327 = vpop.f32.mrb[0].mxu0
          %v1328 = vadd.f32 0.0, %v1327
          %v1329 = vpop.f32.mrb[0].mxu0
          %1330 = vmatprep.mubr.bf16.mxu0 0
          %1331 = vmatmul.mubr.bf16.gmra.mrb[0].mxu0 %v1274
          %v1332 = vpop.f32.mrb[0].mxu0
          %v1333 = vadd.f32 0.0, %v1332
          %v1334 = vpop.f32.mrb[0].mxu0
          %v1335 = vpop.f32.mrb[0].mxu0
          %v1336 = vadd.f32 0.0, %v1335
          %v1337 = vpop.f32.mrb[0].mxu0
          %1338 = vmatprep.mubr.bf16.mxu0 0
          %1339 = vmatmul.mubr.bf16.gmra.mrb[0].mxu0 %v1277
          %v1340 = vpop.f32.mrb[0].mxu0
          %v1341 = vadd.f32 0.0, %v1340
          %v1342 = vpop.f32.mrb[0].mxu0
          %v1343 = vpop.f32.mrb[0].mxu0
          %v1344 = vadd.f32 0.0, %v1343
          %v1345 = vpop.f32.mrb[0].mxu0
          %1346 = vdwg.mxu0
          %v1347 = vadd.f32 %v1253, %v1317
          %v1348 = vadd.f32 %v1254, %v1320
          %v1349 = vadd.f32 %v1255, %v1325
          %v1350 = vadd.f32 %v1256, %v1328
          %v1351 = vadd.f32 %v1257, %v1333
          %v1352 = vadd.f32 %v1258, %v1336
          %v1353 = vadd.f32 %v1259, %v1341
          %v1354 = vadd.f32 %v1260, %v1344
          %v1371 = vrot.slane %v297, 1
          %v1372 = vrot.slane %v298, 1
          %v1373 = vsel %vm382, %v1371, %v1372
          %v1374 = vrot.slane %v299, 1
          %v1375 = vrot.slane %v300, 1
          %v1376 = vsel %vm382, %v1374, %v1375
          %v1377 = vrot.slane %v301, 1
          %v1378 = vrot.slane %v302, 1
          %v1379 = vsel %vm382, %v1377, %v1378
          %v1380 = vrot.slane %v303, 1
          %v1381 = vrot.slane %v304, 1
          %v1382 = vsel %vm382, %v1380, %v1381
          %v1383 = vrot.slane %v305, 1
          %v1384 = vrot.slane %v306, 1
          %v1385 = vsel %vm382, %v1383, %v1384
          %v1386 = vrot.slane %v307, 1
          %v1387 = vrot.slane %v308, 1
          %v1388 = vsel %vm382, %v1386, %v1387
          %v1389 = vrot.slane %v309, 1
          %v1390 = vrot.slane %v310, 1
          %v1391 = vsel %vm382, %v1389, %v1390
          %v1392 = vrot.slane %v311, 1
          %v1393 = vrot.slane %v312, 1
          %v1394 = vsel %vm382, %v1392, %v1393
          %v1403 = vpack.c.bf16 %v1376, %v1373
          %v1404 = vpack.c.bf16 %v1382, %v1379
          %v1405 = vpack.c.bf16 %v1388, %v1385
          %v1406 = vpack.c.bf16 %v1394, %v1391
          %s1407 = scalar_lea.vmem %s1, 20
          %v1408 = vld [vmem:[%s1407] sm:$0x3]
          %v1410 = vsel %vm421, %v1403, 0
          %v1413 = vsel %vm421, %v1404, 0
          %v1416 = vsel %vm421, %v1405, 0
          %v1419 = vsel %vm421, %v1406, 0
          %v1422 = vand.u32 %v1408, %v437
          %1424 = vmatprep.subr.bf16.mxu0 0
          %1425 = vmatpush1.bf16.msra.mxu0 %v1422
          %1426 = vmatprep.subr.bf16.mxu0 0
          %1427 = vmatpush1.bf16.msra.mxu0 0
          %1428 = vmatprep.subr.bf16.mxu0 0
          %1429 = vmatpush1.bf16.msra.mxu0 0
          %1430 = vmatprep.subr.bf16.mxu0 0
          %1431 = vmatpush1.bf16.msra.mxu0 0
          %1432 = vmatprep.subr.bf16.mxu0 0
          %1433 = vmatpush1.bf16.msra.mxu0 0
          %1434 = vmatprep.subr.bf16.mxu0 0
          %1435 = vmatpush1.bf16.msra.mxu0 0
          %1436 = vmatprep.subr.bf16.mxu0 0
          %1437 = vmatpush1.bf16.msra.mxu0 0
          %1438 = vmatprep.subr.bf16.mxu0 0
          %1439 = vmatpush1.bf16.msra.mxu0 0
          %1440 = vmatprep.subr.bf16.mxu0 0
          %1441 = vmatpush1.bf16.msra.mxu0 0
          %1442 = vmatprep.subr.bf16.mxu0 0
          %1443 = vmatpush1.bf16.msra.mxu0 0
          %1444 = vmatprep.subr.bf16.mxu0 0
          %1445 = vmatpush1.bf16.msra.mxu0 0
          %1446 = vmatprep.subr.bf16.mxu0 0
          %1447 = vmatpush1.bf16.msra.mxu0 0
          %1448 = vmatprep.subr.bf16.mxu0 0
          %1449 = vmatpush1.bf16.msra.mxu0 0
          %1450 = vmatprep.subr.bf16.mxu0 0
          %1451 = vmatpush1.bf16.msra.mxu0 0
          %1452 = vmatprep.subr.bf16.mxu0 0
          %1453 = vmatpush1.bf16.msra.mxu0 0
          %1454 = vmatprep.subr.bf16.mxu0 0
          %1455 = vmatpush1.bf16.msra.mxu0 0
          %1456 = vmatprep.mubr.bf16.mxu0 0
          %1457 = vmatmul.mubr.bf16.gmra.mrb[0].mxu0 %v1410
          %v1458 = vpop.f32.mrb[0].mxu0
          %v1459 = vadd.f32 0.0, %v1458
          %v1460 = vpop.f32.mrb[0].mxu0
          %v1461 = vpop.f32.mrb[0].mxu0
          %v1462 = vadd.f32 0.0, %v1461
          %v1463 = vpop.f32.mrb[0].mxu0
          %1464 = vmatprep.mubr.bf16.mxu0 0
          %1465 = vmatmul.mubr.bf16.gmra.mrb[0].mxu0 %v1413
          %v1466 = vpop.f32.mrb[0].mxu0
          %v1467 = vadd.f32 0.0, %v1466
          %v1468 = vpop.f32.mrb[0].mxu0
          %v1469 = vpop.f32.mrb[0].mxu0
          %v1470 = vadd.f32 0.0, %v1469
          %v1471 = vpop.f32.mrb[0].mxu0
          %1472 = vmatprep.mubr.bf16.mxu0 0
          %1473 = vmatmul.mubr.bf16.gmra.mrb[0].mxu0 %v1416
          %v1474 = vpop.f32.mrb[0].mxu0
          %v1475 = vadd.f32 0.0, %v1474
          %v1476 = vpop.f32.mrb[0].mxu0
          %v1477 = vpop.f32.mrb[0].mxu0
          %v1478 = vadd.f32 0.0, %v1477
          %v1479 = vpop.f32.mrb[0].mxu0
          %1480 = vmatprep.mubr.bf16.mxu0 0
          %1481 = vmatmul.mubr.bf16.gmra.mrb[0].mxu0 %v1419
          %v1482 = vpop.f32.mrb[0].mxu0
          %v1483 = vadd.f32 0.0, %v1482
          %v1484 = vpop.f32.mrb[0].mxu0
          %v1485 = vpop.f32.mrb[0].mxu0
          %v1486 = vadd.f32 0.0, %v1485
          %v1487 = vpop.f32.mrb[0].mxu0
          %1488 = vdwg.mxu0
          %v1489 = vadd.f32 %v1347, %v1459
          %v1490 = vadd.f32 %v1348, %v1462
          %v1491 = vadd.f32 %v1349, %v1467
          %v1492 = vadd.f32 %v1350, %v1470
          %v1493 = vadd.f32 %v1351, %v1475
          %v1494 = vadd.f32 %v1352, %v1478
          %v1495 = vadd.f32 %v1353, %v1483
          %v1496 = vadd.f32 %v1354, %v1486
          %v1497 = vrot.slane %v297, 2
          %v1498 = vrot.slane %v298, 2
          %v1499 = vsel %vm586, %v1497, %v1498
          %v1500 = vrot.slane %v299, 2
          %v1501 = vrot.slane %v300, 2
          %v1502 = vsel %vm586, %v1500, %v1501
          %v1503 = vrot.slane %v301, 2
          %v1504 = vrot.slane %v302, 2
          %v1505 = vsel %vm586, %v1503, %v1504
          %v1506 = vrot.slane %v303, 2
          %v1507 = vrot.slane %v304, 2
          %v1508 = vsel %vm586, %v1506, %v1507
          %v1509 = vrot.slane %v305, 2
          %v1510 = vrot.slane %v306, 2
          %v1511 = vsel %vm586, %v1509, %v1510
          %v1512 = vrot.slane %v307, 2
          %v1513 = vrot.slane %v308, 2
          %v1514 = vsel %vm586, %v1512, %v1513
          %v1515 = vrot.slane %v309, 2
          %v1516 = vrot.slane %v310, 2
          %v1517 = vsel %vm586, %v1515, %v1516
          %v1518 = vrot.slane %v311, 2
          %v1519 = vrot.slane %v312, 2
          %v1520 = vsel %vm586, %v1518, %v1519
          %v1529 = vpack.c.bf16 %v1502, %v1499
          %v1530 = vpack.c.bf16 %v1508, %v1505
          %v1531 = vpack.c.bf16 %v1514, %v1511
          %v1532 = vpack.c.bf16 %v1520, %v1517
          %s1533 = scalar_lea.vmem %s1, 22
          %v1534 = vld [vmem:[%s1533] sm:$0x3]
          %v1536 = vsel %vm421, %v1529, 0
          %v1539 = vsel %vm421, %v1530, 0
          %v1542 = vsel %vm421, %v1531, 0
          %v1545 = vsel %vm421, %v1532, 0
          %v1548 = vand.u32 %v1534, %v437
          %1550 = vmatprep.subr.bf16.mxu0 0
          %1551 = vmatpush1.bf16.msra.mxu0 %v1548
          %1552 = vmatprep.subr.bf16.mxu0 0
          %1553 = vmatpush1.bf16.msra.mxu0 0
          %1554 = vmatprep.subr.bf16.mxu0 0
          %1555 = vmatpush1.bf16.msra.mxu0 0
          %1556 = vmatprep.subr.bf16.mxu0 0
          %1557 = vmatpush1.bf16.msra.mxu0 0
          %1558 = vmatprep.subr.bf16.mxu0 0
          %1559 = vmatpush1.bf16.msra.mxu0 0
          %1560 = vmatprep.subr.bf16.mxu0 0
          %1561 = vmatpush1.bf16.msra.mxu0 0
          %1562 = vmatprep.subr.bf16.mxu0 0
          %1563 = vmatpush1.bf16.msra.mxu0 0
          %1564 = vmatprep.subr.bf16.mxu0 0
          %1565 = vmatpush1.bf16.msra.mxu0 0
          %1566 = vmatprep.subr.bf16.mxu0 0
          %1567 = vmatpush1.bf16.msra.mxu0 0
          %1568 = vmatprep.subr.bf16.mxu0 0
          %1569 = vmatpush1.bf16.msra.mxu0 0
          %1570 = vmatprep.subr.bf16.mxu0 0
          %1571 = vmatpush1.bf16.msra.mxu0 0
          %1572 = vmatprep.subr.bf16.mxu0 0
          %1573 = vmatpush1.bf16.msra.mxu0 0
          %1574 = vmatprep.subr.bf16.mxu0 0
          %1575 = vmatpush1.bf16.msra.mxu0 0
          %1576 = vmatprep.subr.bf16.mxu0 0
          %1577 = vmatpush1.bf16.msra.mxu0 0
          %1578 = vmatprep.subr.bf16.mxu0 0
          %1579 = vmatpush1.bf16.msra.mxu0 0
          %1580 = vmatprep.subr.bf16.mxu0 0
          %1581 = vmatpush1.bf16.msra.mxu0 0
          %1582 = vmatprep.mubr.bf16.mxu0 0
          %1583 = vmatmul.mubr.bf16.gmra.mrb[0].mxu0 %v1536
          %v1584 = vpop.f32.mrb[0].mxu0
          %v1585 = vadd.f32 0.0, %v1584
          %v1586 = vpop.f32.mrb[0].mxu0
          %v1587 = vpop.f32.mrb[0].mxu0
          %v1588 = vadd.f32 0.0, %v1587
          %v1589 = vpop.f32.mrb[0].mxu0
          %1590 = vmatprep.mubr.bf16.mxu0 0
          %1591 = vmatmul.mubr.bf16.gmra.mrb[0].mxu0 %v1539
          %v1592 = vpop.f32.mrb[0].mxu0
          %v1593 = vadd.f32 0.0, %v1592
          %v1594 = vpop.f32.mrb[0].mxu0
          %v1595 = vpop.f32.mrb[0].mxu0
          %v1596 = vadd.f32 0.0, %v1595
          %v1597 = vpop.f32.mrb[0].mxu0
          %1598 = vmatprep.mubr.bf16.mxu0 0
          %1599 = vmatmul.mubr.bf16.gmra.mrb[0].mxu0 %v1542
          %v1600 = vpop.f32.mrb[0].mxu0
          %v1601 = vadd.f32 0.0, %v1600
          %v1602 = vpop.f32.mrb[0].mxu0
          %v1603 = vpop.f32.mrb[0].mxu0
          %v1604 = vadd.f32 0.0, %v1603
          %v1605 = vpop.f32.mrb[0].mxu0
          %1606 = vmatprep.mubr.bf16.mxu0 0
          %1607 = vmatmul.mubr.bf16.gmra.mrb[0].mxu0 %v1545
          %v1608 = vpop.f32.mrb[0].mxu0
          %v1609 = vadd.f32 0.0, %v1608
          %v1610 = vpop.f32.mrb[0].mxu0
          %v1611 = vpop.f32.mrb[0].mxu0
          %v1612 = vadd.f32 0.0, %v1611
          %v1613 = vpop.f32.mrb[0].mxu0
          %1614 = vdwg.mxu0
          %v1615 = vadd.f32 %v1489, %v1585
          %v1616 = vadd.f32 %v1490, %v1588
          %v1617 = vadd.f32 %v1491, %v1593
          %v1618 = vadd.f32 %v1492, %v1596
          %v1619 = vadd.f32 %v1493, %v1601
          %v1620 = vadd.f32 %v1494, %v1604
          %v1621 = vadd.f32 %v1495, %v1609
          %v1622 = vadd.f32 %v1496, %v1612
          %v1623 = vpack.c.bf16 %v301, %v299
          %v1624 = vpack.c.bf16 %v305, %v303
          %v1625 = vpack.c.bf16 %v309, %v307
          %v1626 = vpack.c.bf16 %v313, %v311
          %s1627 = scalar_lea.vmem %s1, 24
          %v1628 = vld [vmem:[%s1627] sm:$0x3]
          %v1630 = vsel %vm421, %v1623, 0
          %v1633 = vsel %vm421, %v1624, 0
          %v1636 = vsel %vm421, %v1625, 0
          %v1639 = vsel %vm421, %v1626, 0
          %v1642 = vand.u32 %v1628, %v437
          %1644 = vmatprep.subr.bf16.mxu0 0
          %1645 = vmatpush1.bf16.msra.mxu0 %v1642
          %1646 = vmatprep.subr.bf16.mxu0 0
          %1647 = vmatpush1.bf16.msra.mxu0 0
          %1648 = vmatprep.subr.bf16.mxu0 0
          %1649 = vmatpush1.bf16.msra.mxu0 0
          %1650 = vmatprep.subr.bf16.mxu0 0
          %1651 = vmatpush1.bf16.msra.mxu0 0
          %1652 = vmatprep.subr.bf16.mxu0 0
          %1653 = vmatpush1.bf16.msra.mxu0 0
          %1654 = vmatprep.subr.bf16.mxu0 0
          %1655 = vmatpush1.bf16.msra.mxu0 0
          %1656 = vmatprep.subr.bf16.mxu0 0
          %1657 = vmatpush1.bf16.msra.mxu0 0
          %1658 = vmatprep.subr.bf16.mxu0 0
          %1659 = vmatpush1.bf16.msra.mxu0 0
          %1660 = vmatprep.subr.bf16.mxu0 0
          %1661 = vmatpush1.bf16.msra.mxu0 0
          %1662 = vmatprep.subr.bf16.mxu0 0
          %1663 = vmatpush1.bf16.msra.mxu0 0
          %1664 = vmatprep.subr.bf16.mxu0 0
          %1665 = vmatpush1.bf16.msra.mxu0 0
          %1666 = vmatprep.subr.bf16.mxu0 0
          %1667 = vmatpush1.bf16.msra.mxu0 0
          %1668 = vmatprep.subr.bf16.mxu0 0
          %1669 = vmatpush1.bf16.msra.mxu0 0
          %1670 = vmatprep.subr.bf16.mxu0 0
          %1671 = vmatpush1.bf16.msra.mxu0 0
          %1672 = vmatprep.subr.bf16.mxu0 0
          %1673 = vmatpush1.bf16.msra.mxu0 0
          %1674 = vmatprep.subr.bf16.mxu0 0
          %1675 = vmatpush1.bf16.msra.mxu0 0
          %1676 = vmatprep.mubr.bf16.mxu0 0
          %1677 = vmatmul.mubr.bf16.gmra.mrb[0].mxu0 %v1630
          %v1678 = vpop.f32.mrb[0].mxu0
          %v1679 = vadd.f32 0.0, %v1678
          %v1680 = vpop.f32.mrb[0].mxu0
          %v1681 = vpop.f32.mrb[0].mxu0
          %v1682 = vadd.f32 0.0, %v1681
          %v1683 = vpop.f32.mrb[0].mxu0
          %1684 = vmatprep.mubr.bf16.mxu0 0
          %1685 = vmatmul.mubr.bf16.gmra.mrb[0].mxu0 %v1633
          %v1686 = vpop.f32.mrb[0].mxu0
          %v1687 = vadd.f32 0.0, %v1686
          %v1688 = vpop.f32.mrb[0].mxu0
          %v1689 = vpop.f32.mrb[0].mxu0
          %v1690 = vadd.f32 0.0, %v1689
          %v1691 = vpop.f32.mrb[0].mxu0
          %1692 = vmatprep.mubr.bf16.mxu0 0
          %1693 = vmatmul.mubr.bf16.gmra.mrb[0].mxu0 %v1636
          %v1694 = vpop.f32.mrb[0].mxu0
          %v1695 = vadd.f32 0.0, %v1694
          %v1696 = vpop.f32.mrb[0].mxu0
          %v1697 = vpop.f32.mrb[0].mxu0
          %v1698 = vadd.f32 0.0, %v1697
          %v1699 = vpop.f32.mrb[0].mxu0
          %1700 = vmatprep.mubr.bf16.mxu0 0
          %1701 = vmatmul.mubr.bf16.gmra.mrb[0].mxu0 %v1639
          %v1702 = vpop.f32.mrb[0].mxu0
          %v1703 = vadd.f32 0.0, %v1702
          %v1704 = vpop.f32.mrb[0].mxu0
          %v1705 = vpop.f32.mrb[0].mxu0
          %v1706 = vadd.f32 0.0, %v1705
          %v1707 = vpop.f32.mrb[0].mxu0
          %1708 = vdwg.mxu0
          %v1709 = vadd.f32 %v1615, %v1679
          %v1710 = vadd.f32 %v1616, %v1682
          %v1711 = vadd.f32 %v1617, %v1687
          %v1712 = vadd.f32 %v1618, %v1690
          %v1713 = vadd.f32 %v1619, %v1695
          %v1714 = vadd.f32 %v1620, %v1698
          %v1715 = vadd.f32 %v1621, %v1703
          %v1716 = vadd.f32 %v1622, %v1706
          %v1719 = vrot.slane %v313, 1
          %v1720 = vrot.slane %v314, 1
          %v1721 = vsel %vm382, %v1719, %v1720
          %v1723 = vpack.c.bf16 %v1379, %v1376
          %v1724 = vpack.c.bf16 %v1385, %v1382
          %v1725 = vpack.c.bf16 %v1391, %v1388
          %v1726 = vpack.c.bf16 %v1721, %v1394
          %s1727 = scalar_lea.vmem %s1, 26
          %v1728 = vld [vmem:[%s1727] sm:$0x3]
          %v1730 = vsel %vm421, %v1723, 0
          %v1733 = vsel %vm421, %v1724, 0
          %v1736 = vsel %vm421, %v1725, 0
          %v1739 = vsel %vm421, %v1726, 0
          %v1742 = vand.u32 %v1728, %v437
          %1744 = vmatprep.subr.bf16.mxu0 0
          %1745 = vmatpush1.bf16.msra.mxu0 %v1742
          %1746 = vmatprep.subr.bf16.mxu0 0
          %1747 = vmatpush1.bf16.msra.mxu0 0
          %1748 = vmatprep.subr.bf16.mxu0 0
          %1749 = vmatpush1.bf16.msra.mxu0 0
          %1750 = vmatprep.subr.bf16.mxu0 0
          %1751 = vmatpush1.bf16.msra.mxu0 0
          %1752 = vmatprep.subr.bf16.mxu0 0
          %1753 = vmatpush1.bf16.msra.mxu0 0
          %1754 = vmatprep.subr.bf16.mxu0 0
          %1755 = vmatpush1.bf16.msra.mxu0 0
          %1756 = vmatprep.subr.bf16.mxu0 0
          %1757 = vmatpush1.bf16.msra.mxu0 0
          %1758 = vmatprep.subr.bf16.mxu0 0
          %1759 = vmatpush1.bf16.msra.mxu0 0
          %1760 = vmatprep.subr.bf16.mxu0 0
          %1761 = vmatpush1.bf16.msra.mxu0 0
          %1762 = vmatprep.subr.bf16.mxu0 0
          %1763 = vmatpush1.bf16.msra.mxu0 0
          %1764 = vmatprep.subr.bf16.mxu0 0
          %1765 = vmatpush1.bf16.msra.mxu0 0
          %1766 = vmatprep.subr.bf16.mxu0 0
          %1767 = vmatpush1.bf16.msra.mxu0 0
          %1768 = vmatprep.subr.bf16.mxu0 0
          %1769 = vmatpush1.bf16.msra.mxu0 0
          %1770 = vmatprep.subr.bf16.mxu0 0
          %1771 = vmatpush1.bf16.msra.mxu0 0
          %1772 = vmatprep.subr.bf16.mxu0 0
          %1773 = vmatpush1.bf16.msra.mxu0 0
          %1774 = vmatprep.subr.bf16.mxu0 0
          %1775 = vmatpush1.bf16.msra.mxu0 0
          %1776 = vmatprep.mubr.bf16.mxu0 0
          %1777 = vmatmul.mubr.bf16.gmra.mrb[0].mxu0 %v1730
          %v1778 = vpop.f32.mrb[0].mxu0
          %v1779 = vadd.f32 0.0, %v1778
          %v1780 = vpop.f32.mrb[0].mxu0
          %v1781 = vpop.f32.mrb[0].mxu0
          %v1782 = vadd.f32 0.0, %v1781
          %v1783 = vpop.f32.mrb[0].mxu0
          %1784 = vmatprep.mubr.bf16.mxu0 0
          %1785 = vmatmul.mubr.bf16.gmra.mrb[0].mxu0 %v1733
          %v1786 = vpop.f32.mrb[0].mxu0
          %v1787 = vadd.f32 0.0, %v1786
          %v1788 = vpop.f32.mrb[0].mxu0
          %v1789 = vpop.f32.mrb[0].mxu0
          %v1790 = vadd.f32 0.0, %v1789
          %v1791 = vpop.f32.mrb[0].mxu0
          %1792 = vmatprep.mubr.bf16.mxu0 0
          %1793 = vmatmul.mubr.bf16.gmra.mrb[0].mxu0 %v1736
          %v1794 = vpop.f32.mrb[0].mxu0
          %v1795 = vadd.f32 0.0, %v1794
          %v1796 = vpop.f32.mrb[0].mxu0
          %v1797 = vpop.f32.mrb[0].mxu0
          %v1798 = vadd.f32 0.0, %v1797
          %v1799 = vpop.f32.mrb[0].mxu0
          %1800 = vmatprep.mubr.bf16.mxu0 0
          %1801 = vmatmul.mubr.bf16.gmra.mrb[0].mxu0 %v1739
          %v1802 = vpop.f32.mrb[0].mxu0
          %v1803 = vadd.f32 0.0, %v1802
          %v1804 = vpop.f32.mrb[0].mxu0
          %v1805 = vpop.f32.mrb[0].mxu0
          %v1806 = vadd.f32 0.0, %v1805
          %v1807 = vpop.f32.mrb[0].mxu0
          %1808 = vdwg.mxu0
          %v1809 = vadd.f32 %v1709, %v1779
          %v1810 = vadd.f32 %v1710, %v1782
          %v1811 = vadd.f32 %v1711, %v1787
          %v1812 = vadd.f32 %v1712, %v1790
          %v1813 = vadd.f32 %v1713, %v1795
          %v1814 = vadd.f32 %v1714, %v1798
          %v1815 = vadd.f32 %v1715, %v1803
          %v1816 = vadd.f32 %v1716, %v1806
          %v1817 = vrot.slane %v313, 2
          %v1818 = vrot.slane %v314, 2
          %v1819 = vsel %vm586, %v1817, %v1818
          %v1821 = vpack.c.bf16 %v1505, %v1502
          %v1822 = vpack.c.bf16 %v1511, %v1508
          %v1823 = vpack.c.bf16 %v1517, %v1514
          %v1824 = vpack.c.bf16 %v1819, %v1520
          %s1825 = scalar_lea.vmem %s1, 28
          %v1826 = vld [vmem:[%s1825] sm:$0x3]
          %v1828 = vsel %vm421, %v1821, 0
          %v1831 = vsel %vm421, %v1822, 0
          %v1834 = vsel %vm421, %v1823, 0
          %v1837 = vsel %vm421, %v1824, 0
          %v1840 = vand.u32 %v1826, %v437
          %1842 = vmatprep.subr.bf16.mxu0 0
          %1843 = vmatpush1.bf16.msra.mxu0 %v1840
          %1844 = vmatprep.subr.bf16.mxu0 0
          %1845 = vmatpush1.bf16.msra.mxu0 0
          %1846 = vmatprep.subr.bf16.mxu0 0
          %1847 = vmatpush1.bf16.msra.mxu0 0
          %1848 = vmatprep.subr.bf16.mxu0 0
          %1849 = vmatpush1.bf16.msra.mxu0 0
          %1850 = vmatprep.subr.bf16.mxu0 0
          %1851 = vmatpush1.bf16.msra.mxu0 0
          %1852 = vmatprep.subr.bf16.mxu0 0
          %1853 = vmatpush1.bf16.msra.mxu0 0
          %1854 = vmatprep.subr.bf16.mxu0 0
          %1855 = vmatpush1.bf16.msra.mxu0 0
          %1856 = vmatprep.subr.bf16.mxu0 0
          %1857 = vmatpush1.bf16.msra.mxu0 0
          %1858 = vmatprep.subr.bf16.mxu0 0
          %1859 = vmatpush1.bf16.msra.mxu0 0
          %1860 = vmatprep.subr.bf16.mxu0 0
          %1861 = vmatpush1.bf16.msra.mxu0 0
          %1862 = vmatprep.subr.bf16.mxu0 0
          %1863 = vmatpush1.bf16.msra.mxu0 0
          %1864 = vmatprep.subr.bf16.mxu0 0
          %1865 = vmatpush1.bf16.msra.mxu0 0
          %1866 = vmatprep.subr.bf16.mxu0 0
          %1867 = vmatpush1.bf16.msra.mxu0 0
          %1868 = vmatprep.subr.bf16.mxu0 0
          %1869 = vmatpush1.bf16.msra.mxu0 0
          %1870 = vmatprep.subr.bf16.mxu0 0
          %1871 = vmatpush1.bf16.msra.mxu0 0
          %1872 = vmatprep.subr.bf16.mxu0 0
          %1873 = vmatpush1.bf16.msra.mxu0 0
          %1874 = vmatprep.mubr.bf16.mxu0 0
          %1875 = vmatmul.mubr.bf16.gmra.mrb[0].mxu0 %v1828
          %v1876 = vpop.f32.mrb[0].mxu0
          %v1877 = vadd.f32 0.0, %v1876
          %v1878 = vpop.f32.mrb[0].mxu0
          %v1879 = vpop.f32.mrb[0].mxu0
          %v1880 = vadd.f32 0.0, %v1879
          %v1881 = vpop.f32.mrb[0].mxu0
          %1882 = vmatprep.mubr.bf16.mxu0 0
          %1883 = vmatmul.mubr.bf16.gmra.mrb[0].mxu0 %v1831
          %v1884 = vpop.f32.mrb[0].mxu0
          %v1885 = vadd.f32 0.0, %v1884
          %v1886 = vpop.f32.mrb[0].mxu0
          %v1887 = vpop.f32.mrb[0].mxu0
          %v1888 = vadd.f32 0.0, %v1887
          %v1889 = vpop.f32.mrb[0].mxu0
          %1890 = vmatprep.mubr.bf16.mxu0 0
          %1891 = vmatmul.mubr.bf16.gmra.mrb[0].mxu0 %v1834
          %v1892 = vpop.f32.mrb[0].mxu0
          %v1893 = vadd.f32 0.0, %v1892
          %v1894 = vpop.f32.mrb[0].mxu0
          %v1895 = vpop.f32.mrb[0].mxu0
          %v1896 = vadd.f32 0.0, %v1895
          %v1897 = vpop.f32.mrb[0].mxu0
          %1898 = vmatprep.mubr.bf16.mxu0 0
          %1899 = vmatmul.mubr.bf16.gmra.mrb[0].mxu0 %v1837
          %v1900 = vpop.f32.mrb[0].mxu0
          %v1901 = vadd.f32 0.0, %v1900
          %v1902 = vpop.f32.mrb[0].mxu0
          %v1903 = vpop.f32.mrb[0].mxu0
          %v1904 = vadd.f32 0.0, %v1903
          %v1905 = vpop.f32.mrb[0].mxu0
          %1906 = vdwg.mxu0
          %v1907 = vadd.f32 %v1809, %v1877
          %v1908 = vadd.f32 %v1810, %v1880
          %v1909 = vadd.f32 %v1811, %v1885
          %v1910 = vadd.f32 %v1812, %v1888
          %v1911 = vadd.f32 %v1813, %v1893
          %v1912 = vadd.f32 %v1814, %v1896
          %v1913 = vadd.f32 %v1815, %v1901
          %v1914 = vadd.f32 %v1816, %v1904
          %v1915 = vpack.c.bf16 %v315, %v313
          %s1916 = scalar_lea.vmem %s1, 30
          %v1917 = vld [vmem:[%s1916] sm:$0x3]
          %v1919 = vsel %vm421, %v1915, 0
          %v1922 = vand.u32 %v1917, %v437
          %1924 = vmatprep.subr.bf16.mxu0 0
          %1925 = vmatpush1.bf16.msra.mxu0 %v1922
          %1926 = vmatprep.subr.bf16.mxu0 0
          %1927 = vmatpush1.bf16.msra.mxu0 0
          %1928 = vmatprep.subr.bf16.mxu0 0
          %1929 = vmatpush1.bf16.msra.mxu0 0
          %1930 = vmatprep.subr.bf16.mxu0 0
          %1931 = vmatpush1.bf16.msra.mxu0 0
          %1932 = vmatprep.subr.bf16.mxu0 0
          %1933 = vmatpush1.bf16.msra.mxu0 0
          %1934 = vmatprep.subr.bf16.mxu0 0
          %1935 = vmatpush1.bf16.msra.mxu0 0
          %1936 = vmatprep.subr.bf16.mxu0 0
          %1937 = vmatpush1.bf16.msra.mxu0 0
          %1938 = vmatprep.subr.bf16.mxu0 0
          %1939 = vmatpush1.bf16.msra.mxu0 0
          %1940 = vmatprep.subr.bf16.mxu0 0
          %1941 = vmatpush1.bf16.msra.mxu0 0
          %1942 = vmatprep.subr.bf16.mxu0 0
          %1943 = vmatpush1.bf16.msra.mxu0 0
          %1944 = vmatprep.subr.bf16.mxu0 0
          %1945 = vmatpush1.bf16.msra.mxu0 0
          %1946 = vmatprep.subr.bf16.mxu0 0
          %1947 = vmatpush1.bf16.msra.mxu0 0
          %1948 = vmatprep.subr.bf16.mxu0 0
          %1949 = vmatpush1.bf16.msra.mxu0 0
          %1950 = vmatprep.subr.bf16.mxu0 0
          %1951 = vmatpush1.bf16.msra.mxu0 0
          %1952 = vmatprep.subr.bf16.mxu0 0
          %1953 = vmatpush1.bf16.msra.mxu0 0
          %1954 = vmatprep.subr.bf16.mxu0 0
          %1955 = vmatpush1.bf16.msra.mxu0 0
          %1956 = vmatprep.mubr.bf16.mxu0 0
          %1957 = vmatmul.mubr.bf16.gmra.mrb[0].mxu0 %v1271
          %v1958 = vpop.f32.mrb[0].mxu0
          %v1959 = vadd.f32 0.0, %v1958
          %v1960 = vpop.f32.mrb[0].mxu0
          %v1961 = vpop.f32.mrb[0].mxu0
          %v1962 = vadd.f32 0.0, %v1961
          %v1963 = vpop.f32.mrb[0].mxu0
          %1964 = vmatprep.mubr.bf16.mxu0 0
          %1965 = vmatmul.mubr.bf16.gmra.mrb[0].mxu0 %v1274
          %v1966 = vpop.f32.mrb[0].mxu0
          %v1967 = vadd.f32 0.0, %v1966
          %v1968 = vpop.f32.mrb[0].mxu0
          %v1969 = vpop.f32.mrb[0].mxu0
          %v1970 = vadd.f32 0.0, %v1969
          %v1971 = vpop.f32.mrb[0].mxu0
          %1972 = vmatprep.mubr.bf16.mxu0 0
          %1973 = vmatmul.mubr.bf16.gmra.mrb[0].mxu0 %v1277
          %v1974 = vpop.f32.mrb[0].mxu0
          %v1975 = vadd.f32 0.0, %v1974
          %v1976 = vpop.f32.mrb[0].mxu0
          %v1977 = vpop.f32.mrb[0].mxu0
          %v1978 = vadd.f32 0.0, %v1977
          %v1979 = vpop.f32.mrb[0].mxu0
          %1980 = vmatprep.mubr.bf16.mxu0 0
          %1981 = vmatmul.mubr.bf16.gmra.mrb[0].mxu0 %v1919
          %v1982 = vpop.f32.mrb[0].mxu0
          %v1983 = vadd.f32 0.0, %v1982
          %v1984 = vpop.f32.mrb[0].mxu0
          %v1985 = vpop.f32.mrb[0].mxu0
          %v1986 = vadd.f32 0.0, %v1985
          %v1987 = vpop.f32.mrb[0].mxu0
          %1988 = vdwg.mxu0
          %v1989 = vadd.f32 %v1907, %v1959
          %v1990 = vadd.f32 %v1908, %v1962
          %v1991 = vadd.f32 %v1909, %v1967
          %v1992 = vadd.f32 %v1910, %v1970
          %v1993 = vadd.f32 %v1911, %v1975
          %v1994 = vadd.f32 %v1912, %v1978
          %v1995 = vadd.f32 %v1913, %v1983
          %v1996 = vadd.f32 %v1914, %v1986
          %v1999 = vrot.slane %v315, 1
          %v2000 = vrot.slane %v316, 1
          %v2001 = vsel %vm382, %v1999, %v2000
          %v2003 = vpack.c.bf16 %v2001, %v1721
          %s2004 = scalar_lea.vmem %s1, 32
          %v2005 = vld [vmem:[%s2004] sm:$0x3]
          %v2007 = vsel %vm421, %v2003, 0
          %v2010 = vand.u32 %v2005, %v437
          %2012 = vmatprep.subr.bf16.mxu0 0
          %2013 = vmatpush1.bf16.msra.mxu0 %v2010
          %2014 = vmatprep.subr.bf16.mxu0 0
          %2015 = vmatpush1.bf16.msra.mxu0 0
          %2016 = vmatprep.subr.bf16.mxu0 0
          %2017 = vmatpush1.bf16.msra.mxu0 0
          %2018 = vmatprep.subr.bf16.mxu0 0
          %2019 = vmatpush1.bf16.msra.mxu0 0
          %2020 = vmatprep.subr.bf16.mxu0 0
          %2021 = vmatpush1.bf16.msra.mxu0 0
          %2022 = vmatprep.subr.bf16.mxu0 0
          %2023 = vmatpush1.bf16.msra.mxu0 0
          %2024 = vmatprep.subr.bf16.mxu0 0
          %2025 = vmatpush1.bf16.msra.mxu0 0
          %2026 = vmatprep.subr.bf16.mxu0 0
          %2027 = vmatpush1.bf16.msra.mxu0 0
          %2028 = vmatprep.subr.bf16.mxu0 0
          %2029 = vmatpush1.bf16.msra.mxu0 0
          %2030 = vmatprep.subr.bf16.mxu0 0
          %2031 = vmatpush1.bf16.msra.mxu0 0
          %2032 = vmatprep.subr.bf16.mxu0 0
          %2033 = vmatpush1.bf16.msra.mxu0 0
          %2034 = vmatprep.subr.bf16.mxu0 0
          %2035 = vmatpush1.bf16.msra.mxu0 0
          %2036 = vmatprep.subr.bf16.mxu0 0
          %2037 = vmatpush1.bf16.msra.mxu0 0
          %2038 = vmatprep.subr.bf16.mxu0 0
          %2039 = vmatpush1.bf16.msra.mxu0 0
          %2040 = vmatprep.subr.bf16.mxu0 0
          %2041 = vmatpush1.bf16.msra.mxu0 0
          %2042 = vmatprep.subr.bf16.mxu0 0
          %2043 = vmatpush1.bf16.msra.mxu0 0
          %2044 = vmatprep.mubr.bf16.mxu0 0
          %2045 = vmatmul.mubr.bf16.gmra.mrb[0].mxu0 %v1413
          %v2046 = vpop.f32.mrb[0].mxu0
          %v2047 = vadd.f32 0.0, %v2046
          %v2048 = vpop.f32.mrb[0].mxu0
          %v2049 = vpop.f32.mrb[0].mxu0
          %v2050 = vadd.f32 0.0, %v2049
          %v2051 = vpop.f32.mrb[0].mxu0
          %2052 = vmatprep.mubr.bf16.mxu0 0
          %2053 = vmatmul.mubr.bf16.gmra.mrb[0].mxu0 %v1416
          %v2054 = vpop.f32.mrb[0].mxu0
          %v2055 = vadd.f32 0.0, %v2054
          %v2056 = vpop.f32.mrb[0].mxu0
          %v2057 = vpop.f32.mrb[0].mxu0
          %v2058 = vadd.f32 0.0, %v2057
          %v2059 = vpop.f32.mrb[0].mxu0
          %2060 = vmatprep.mubr.bf16.mxu0 0
          %2061 = vmatmul.mubr.bf16.gmra.mrb[0].mxu0 %v1419
          %v2062 = vpop.f32.mrb[0].mxu0
          %v2063 = vadd.f32 0.0, %v2062
          %v2064 = vpop.f32.mrb[0].mxu0
          %v2065 = vpop.f32.mrb[0].mxu0
          %v2066 = vadd.f32 0.0, %v2065
          %v2067 = vpop.f32.mrb[0].mxu0
          %2068 = vmatprep.mubr.bf16.mxu0 0
          %2069 = vmatmul.mubr.bf16.gmra.mrb[0].mxu0 %v2007
          %v2070 = vpop.f32.mrb[0].mxu0
          %v2071 = vadd.f32 0.0, %v2070
          %v2072 = vpop.f32.mrb[0].mxu0
          %v2073 = vpop.f32.mrb[0].mxu0
          %v2074 = vadd.f32 0.0, %v2073
          %v2075 = vpop.f32.mrb[0].mxu0
          %2076 = vdwg.mxu0
          %v2077 = vadd.f32 %v1989, %v2047
          %v2078 = vadd.f32 %v1990, %v2050
          %v2079 = vadd.f32 %v1991, %v2055
          %v2080 = vadd.f32 %v1992, %v2058
          %v2081 = vadd.f32 %v1993, %v2063
          %v2082 = vadd.f32 %v1994, %v2066
          %v2083 = vadd.f32 %v1995, %v2071
          %v2084 = vadd.f32 %v1996, %v2074
          %v2085 = vrot.slane %v315, 2
          %v2086 = vrot.slane %v316, 2
          %v2087 = vsel %vm586, %v2085, %v2086
          %v2089 = vpack.c.bf16 %v2087, %v1819
          %s2090 = scalar_lea.vmem %s1, 34
          %v2091 = vld [vmem:[%s2090] sm:$0x3]
          %v2093 = vsel %vm421, %v2089, 0
          %v2096 = vand.u32 %v2091, %v437
          %2098 = vmatprep.subr.bf16.mxu0 0
          %2099 = vmatpush1.bf16.msra.mxu0 %v2096
          %2100 = vmatprep.subr.bf16.mxu0 0
          %2101 = vmatpush1.bf16.msra.mxu0 0
          %2102 = vmatprep.subr.bf16.mxu0 0
          %2103 = vmatpush1.bf16.msra.mxu0 0
          %2104 = vmatprep.subr.bf16.mxu0 0
          %2105 = vmatpush1.bf16.msra.mxu0 0
          %2106 = vmatprep.subr.bf16.mxu0 0
          %2107 = vmatpush1.bf16.msra.mxu0 0
          %2108 = vmatprep.subr.bf16.mxu0 0
          %2109 = vmatpush1.bf16.msra.mxu0 0
          %2110 = vmatprep.subr.bf16.mxu0 0
          %2111 = vmatpush1.bf16.msra.mxu0 0
          %2112 = vmatprep.subr.bf16.mxu0 0
          %2113 = vmatpush1.bf16.msra.mxu0 0
          %2114 = vmatprep.subr.bf16.mxu0 0
          %2115 = vmatpush1.bf16.msra.mxu0 0
          %2116 = vmatprep.subr.bf16.mxu0 0
          %2117 = vmatpush1.bf16.msra.mxu0 0
          %2118 = vmatprep.subr.bf16.mxu0 0
          %2119 = vmatpush1.bf16.msra.mxu0 0
          %2120 = vmatprep.subr.bf16.mxu0 0
          %2121 = vmatpush1.bf16.msra.mxu0 0
          %2122 = vmatprep.subr.bf16.mxu0 0
          %2123 = vmatpush1.bf16.msra.mxu0 0
          %2124 = vmatprep.subr.bf16.mxu0 0
          %2125 = vmatpush1.bf16.msra.mxu0 0
          %2126 = vmatprep.subr.bf16.mxu0 0
          %2127 = vmatpush1.bf16.msra.mxu0 0
          %2128 = vmatprep.subr.bf16.mxu0 0
          %2129 = vmatpush1.bf16.msra.mxu0 0
          %2130 = vmatprep.mubr.bf16.mxu0 0
          %2131 = vmatmul.mubr.bf16.gmra.mrb[0].mxu0 %v1539
          %v2132 = vpop.f32.mrb[0].mxu0
          %v2133 = vadd.f32 0.0, %v2132
          %v2134 = vpop.f32.mrb[0].mxu0
          %v2135 = vpop.f32.mrb[0].mxu0
          %v2136 = vadd.f32 0.0, %v2135
          %v2137 = vpop.f32.mrb[0].mxu0
          %2138 = vmatprep.mubr.bf16.mxu0 0
          %2139 = vmatmul.mubr.bf16.gmra.mrb[0].mxu0 %v1542
          %v2140 = vpop.f32.mrb[0].mxu0
          %v2141 = vadd.f32 0.0, %v2140
          %v2142 = vpop.f32.mrb[0].mxu0
          %v2143 = vpop.f32.mrb[0].mxu0
          %v2144 = vadd.f32 0.0, %v2143
          %v2145 = vpop.f32.mrb[0].mxu0
          %2146 = vmatprep.mubr.bf16.mxu0 0
          %2147 = vmatmul.mubr.bf16.gmra.mrb[0].mxu0 %v1545
          %v2148 = vpop.f32.mrb[0].mxu0
          %v2149 = vadd.f32 0.0, %v2148
          %v2150 = vpop.f32.mrb[0].mxu0
          %v2151 = vpop.f32.mrb[0].mxu0
          %v2152 = vadd.f32 0.0, %v2151
          %v2153 = vpop.f32.mrb[0].mxu0
          %2154 = vmatprep.mubr.bf16.mxu0 0
          %2155 = vmatmul.mubr.bf16.gmra.mrb[0].mxu0 %v2093
          %v2156 = vpop.f32.mrb[0].mxu0
          %v2157 = vadd.f32 0.0, %v2156
          %v2158 = vpop.f32.mrb[0].mxu0
          %v2159 = vpop.f32.mrb[0].mxu0
          %v2160 = vadd.f32 0.0, %v2159
          %v2161 = vpop.f32.mrb[0].mxu0
          %2162 = vdwg.mxu0
          %v2163 = vadd.f32 %v2077, %v2133
          %v2164 = vadd.f32 %v2078, %v2136
          %v2165 = vadd.f32 %v2079, %v2141
          %v2166 = vadd.f32 %v2080, %v2144
          %v2167 = vadd.f32 %v2081, %v2149
          %v2168 = vadd.f32 %v2082, %v2152
          %v2169 = vadd.f32 %v2083, %v2157
          %v2170 = vadd.f32 %v2084, %v2160
          %v2171 = vpack.c.bf16 %v343, %v341
          %v2172 = vpack.c.bf16 %v347, %v345
          %v2173 = vpack.c.bf16 %v351, %v349
          %v2174 = vpack.c.bf16 %v355, %v353
          %s2175 = scalar_lea.vmem %s1, 36
          %v2176 = vld [vmem:[%s2175] sm:$0x3]
          %v2178 = vsel %vm421, %v2171, 0
          %v2181 = vsel %vm421, %v2172, 0
          %v2184 = vsel %vm421, %v2173, 0
          %v2187 = vsel %vm421, %v2174, 0
          %v2190 = vand.u32 %v2176, %v437
          %2192 = vmatprep.subr.bf16.mxu0 0
          %2193 = vmatpush1.bf16.msra.mxu0 %v2190
          %2194 = vmatprep.subr.bf16.mxu0 0
          %2195 = vmatpush1.bf16.msra.mxu0 0
          %2196 = vmatprep.subr.bf16.mxu0 0
          %2197 = vmatpush1.bf16.msra.mxu0 0
          %2198 = vmatprep.subr.bf16.mxu0 0
          %2199 = vmatpush1.bf16.msra.mxu0 0
          %2200 = vmatprep.subr.bf16.mxu0 0
          %2201 = vmatpush1.bf16.msra.mxu0 0
          %2202 = vmatprep.subr.bf16.mxu0 0
          %2203 = vmatpush1.bf16.msra.mxu0 0
          %2204 = vmatprep.subr.bf16.mxu0 0
          %2205 = vmatpush1.bf16.msra.mxu0 0
          %2206 = vmatprep.subr.bf16.mxu0 0
          %2207 = vmatpush1.bf16.msra.mxu0 0
          %2208 = vmatprep.subr.bf16.mxu0 0
          %2209 = vmatpush1.bf16.msra.mxu0 0
          %2210 = vmatprep.subr.bf16.mxu0 0
          %2211 = vmatpush1.bf16.msra.mxu0 0
          %2212 = vmatprep.subr.bf16.mxu0 0
          %2213 = vmatpush1.bf16.msra.mxu0 0
          %2214 = vmatprep.subr.bf16.mxu0 0
          %2215 = vmatpush1.bf16.msra.mxu0 0
          %2216 = vmatprep.subr.bf16.mxu0 0
          %2217 = vmatpush1.bf16.msra.mxu0 0
          %2218 = vmatprep.subr.bf16.mxu0 0
          %2219 = vmatpush1.bf16.msra.mxu0 0
          %2220 = vmatprep.subr.bf16.mxu0 0
          %2221 = vmatpush1.bf16.msra.mxu0 0
          %2222 = vmatprep.subr.bf16.mxu0 0
          %2223 = vmatpush1.bf16.msra.mxu0 0
          %2224 = vmatprep.mubr.bf16.mxu0 0
          %2225 = vmatmul.mubr.bf16.gmra.mrb[0].mxu0 %v2178
          %v2226 = vpop.f32.mrb[0].mxu0
          %v2227 = vadd.f32 0.0, %v2226
          %v2228 = vpop.f32.mrb[0].mxu0
          %v2229 = vpop.f32.mrb[0].mxu0
          %v2230 = vadd.f32 0.0, %v2229
          %v2231 = vpop.f32.mrb[0].mxu0
          %2232 = vmatprep.mubr.bf16.mxu0 0
          %2233 = vmatmul.mubr.bf16.gmra.mrb[0].mxu0 %v2181
          %v2234 = vpop.f32.mrb[0].mxu0
          %v2235 = vadd.f32 0.0, %v2234
          %v2236 = vpop.f32.mrb[0].mxu0
          %v2237 = vpop.f32.mrb[0].mxu0
          %v2238 = vadd.f32 0.0, %v2237
          %v2239 = vpop.f32.mrb[0].mxu0
          %2240 = vmatprep.mubr.bf16.mxu0 0
          %2241 = vmatmul.mubr.bf16.gmra.mrb[0].mxu0 %v2184
          %v2242 = vpop.f32.mrb[0].mxu0
          %v2243 = vadd.f32 0.0, %v2242
          %v2244 = vpop.f32.mrb[0].mxu0
          %v2245 = vpop.f32.mrb[0].mxu0
          %v2246 = vadd.f32 0.0, %v2245
          %v2247 = vpop.f32.mrb[0].mxu0
          %2248 = vmatprep.mubr.bf16.mxu0 0
          %2249 = vmatmul.mubr.bf16.gmra.mrb[0].mxu0 %v2187
          %v2250 = vpop.f32.mrb[0].mxu0
          %v2251 = vadd.f32 0.0, %v2250
          %v2252 = vpop.f32.mrb[0].mxu0
          %v2253 = vpop.f32.mrb[0].mxu0
          %v2254 = vadd.f32 0.0, %v2253
          %v2255 = vpop.f32.mrb[0].mxu0
          %2256 = vdwg.mxu0
          %v2257 = vadd.f32 %v2163, %v2227
          %v2258 = vadd.f32 %v2164, %v2230
          %v2259 = vadd.f32 %v2165, %v2235
          %v2260 = vadd.f32 %v2166, %v2238
          %v2261 = vadd.f32 %v2167, %v2243
          %v2262 = vadd.f32 %v2168, %v2246
          %v2263 = vadd.f32 %v2169, %v2251
          %v2264 = vadd.f32 %v2170, %v2254
          %v2281 = vrot.slane %v341, 1
          %v2282 = vrot.slane %v342, 1
          %v2283 = vsel %vm382, %v2281, %v2282
          %v2284 = vrot.slane %v343, 1
          %v2285 = vrot.slane %v344, 1
          %v2286 = vsel %vm382, %v2284, %v2285
          %v2287 = vrot.slane %v345, 1
          %v2288 = vrot.slane %v346, 1
          %v2289 = vsel %vm382, %v2287, %v2288
          %v2290 = vrot.slane %v347, 1
          %v2291 = vrot.slane %v348, 1
          %v2292 = vsel %vm382, %v2290, %v2291
          %v2293 = vrot.slane %v349, 1
          %v2294 = vrot.slane %v350, 1
          %v2295 = vsel %vm382, %v2293, %v2294
          %v2296 = vrot.slane %v351, 1
          %v2297 = vrot.slane %v352, 1
          %v2298 = vsel %vm382, %v2296, %v2297
          %v2299 = vrot.slane %v353, 1
          %v2300 = vrot.slane %v354, 1
          %v2301 = vsel %vm382, %v2299, %v2300
          %v2302 = vrot.slane %v355, 1
          %v2303 = vrot.slane %v356, 1
          %v2304 = vsel %vm382, %v2302, %v2303
          %v2313 = vpack.c.bf16 %v2286, %v2283
          %v2314 = vpack.c.bf16 %v2292, %v2289
          %v2315 = vpack.c.bf16 %v2298, %v2295
          %v2316 = vpack.c.bf16 %v2304, %v2301
          %s2317 = scalar_lea.vmem %s1, 38
          %v2318 = vld [vmem:[%s2317] sm:$0x3]
          %v2320 = vsel %vm421, %v2313, 0
          %v2323 = vsel %vm421, %v2314, 0
          %v2326 = vsel %vm421, %v2315, 0
          %v2329 = vsel %vm421, %v2316, 0
          %v2332 = vand.u32 %v2318, %v437
          %2334 = vmatprep.subr.bf16.mxu0 0
          %2335 = vmatpush1.bf16.msra.mxu0 %v2332
          %2336 = vmatprep.subr.bf16.mxu0 0
          %2337 = vmatpush1.bf16.msra.mxu0 0
          %2338 = vmatprep.subr.bf16.mxu0 0
          %2339 = vmatpush1.bf16.msra.mxu0 0
          %2340 = vmatprep.subr.bf16.mxu0 0
          %2341 = vmatpush1.bf16.msra.mxu0 0
          %2342 = vmatprep.subr.bf16.mxu0 0
          %2343 = vmatpush1.bf16.msra.mxu0 0
          %2344 = vmatprep.subr.bf16.mxu0 0
          %2345 = vmatpush1.bf16.msra.mxu0 0
          %2346 = vmatprep.subr.bf16.mxu0 0
          %2347 = vmatpush1.bf16.msra.mxu0 0
          %2348 = vmatprep.subr.bf16.mxu0 0
          %2349 = vmatpush1.bf16.msra.mxu0 0
          %2350 = vmatprep.subr.bf16.mxu0 0
          %2351 = vmatpush1.bf16.msra.mxu0 0
          %2352 = vmatprep.subr.bf16.mxu0 0
          %2353 = vmatpush1.bf16.msra.mxu0 0
          %2354 = vmatprep.subr.bf16.mxu0 0
          %2355 = vmatpush1.bf16.msra.mxu0 0
          %2356 = vmatprep.subr.bf16.mxu0 0
          %2357 = vmatpush1.bf16.msra.mxu0 0
          %2358 = vmatprep.subr.bf16.mxu0 0
          %2359 = vmatpush1.bf16.msra.mxu0 0
          %2360 = vmatprep.subr.bf16.mxu0 0
          %2361 = vmatpush1.bf16.msra.mxu0 0
          %2362 = vmatprep.subr.bf16.mxu0 0
          %2363 = vmatpush1.bf16.msra.mxu0 0
          %2364 = vmatprep.subr.bf16.mxu0 0
          %2365 = vmatpush1.bf16.msra.mxu0 0
          %2366 = vmatprep.mubr.bf16.mxu0 0
          %2367 = vmatmul.mubr.bf16.gmra.mrb[0].mxu0 %v2320
          %v2368 = vpop.f32.mrb[0].mxu0
          %v2369 = vadd.f32 0.0, %v2368
          %v2370 = vpop.f32.mrb[0].mxu0
          %v2371 = vpop.f32.mrb[0].mxu0
          %v2372 = vadd.f32 0.0, %v2371
          %v2373 = vpop.f32.mrb[0].mxu0
          %2374 = vmatprep.mubr.bf16.mxu0 0
          %2375 = vmatmul.mubr.bf16.gmra.mrb[0].mxu0 %v2323
          %v2376 = vpop.f32.mrb[0].mxu0
          %v2377 = vadd.f32 0.0, %v2376
          %v2378 = vpop.f32.mrb[0].mxu0
          %v2379 = vpop.f32.mrb[0].mxu0
          %v2380 = vadd.f32 0.0, %v2379
          %v2381 = vpop.f32.mrb[0].mxu0
          %2382 = vmatprep.mubr.bf16.mxu0 0
          %2383 = vmatmul.mubr.bf16.gmra.mrb[0].mxu0 %v2326
          %v2384 = vpop.f32.mrb[0].mxu0
          %v2385 = vadd.f32 0.0, %v2384
          %v2386 = vpop.f32.mrb[0].mxu0
          %v2387 = vpop.f32.mrb[0].mxu0
          %v2388 = vadd.f32 0.0, %v2387
          %v2389 = vpop.f32.mrb[0].mxu0
          %2390 = vmatprep.mubr.bf16.mxu0 0
          %2391 = vmatmul.mubr.bf16.gmra.mrb[0].mxu0 %v2329
          %v2392 = vpop.f32.mrb[0].mxu0
          %v2393 = vadd.f32 0.0, %v2392
          %v2394 = vpop.f32.mrb[0].mxu0
          %v2395 = vpop.f32.mrb[0].mxu0
          %v2396 = vadd.f32 0.0, %v2395
          %v2397 = vpop.f32.mrb[0].mxu0
          %2398 = vdwg.mxu0
          %v2399 = vadd.f32 %v2257, %v2369
          %v2400 = vadd.f32 %v2258, %v2372
          %v2401 = vadd.f32 %v2259, %v2377
          %v2402 = vadd.f32 %v2260, %v2380
          %v2403 = vadd.f32 %v2261, %v2385
          %v2404 = vadd.f32 %v2262, %v2388
          %v2405 = vadd.f32 %v2263, %v2393
          %v2406 = vadd.f32 %v2264, %v2396
          %v2407 = vrot.slane %v341, 2
          %v2408 = vrot.slane %v342, 2
          %v2409 = vsel %vm586, %v2407, %v2408
          %v2410 = vrot.slane %v343, 2
          %v2411 = vrot.slane %v344, 2
          %v2412 = vsel %vm586, %v2410, %v2411
          %v2413 = vrot.slane %v345, 2
          %v2414 = vrot.slane %v346, 2
          %v2415 = vsel %vm586, %v2413, %v2414
          %v2416 = vrot.slane %v347, 2
          %v2417 = vrot.slane %v348, 2
          %v2418 = vsel %vm586, %v2416, %v2417
          %v2419 = vrot.slane %v349, 2
          %v2420 = vrot.slane %v350, 2
          %v2421 = vsel %vm586, %v2419, %v2420
          %v2422 = vrot.slane %v351, 2
          %v2423 = vrot.slane %v352, 2
          %v2424 = vsel %vm586, %v2422, %v2423
          %v2425 = vrot.slane %v353, 2
          %v2426 = vrot.slane %v354, 2
          %v2427 = vsel %vm586, %v2425, %v2426
          %v2428 = vrot.slane %v355, 2
          %v2429 = vrot.slane %v356, 2
          %v2430 = vsel %vm586, %v2428, %v2429
          %v2439 = vpack.c.bf16 %v2412, %v2409
          %v2440 = vpack.c.bf16 %v2418, %v2415
          %v2441 = vpack.c.bf16 %v2424, %v2421
          %v2442 = vpack.c.bf16 %v2430, %v2427
          %s2443 = scalar_lea.vmem %s1, 40
          %v2444 = vld [vmem:[%s2443] sm:$0x3]
          %v2446 = vsel %vm421, %v2439, 0
          %v2449 = vsel %vm421, %v2440, 0
          %v2452 = vsel %vm421, %v2441, 0
          %v2455 = vsel %vm421, %v2442, 0
          %v2458 = vand.u32 %v2444, %v437
          %2460 = vmatprep.subr.bf16.mxu0 0
          %2461 = vmatpush1.bf16.msra.mxu0 %v2458
          %2462 = vmatprep.subr.bf16.mxu0 0
          %2463 = vmatpush1.bf16.msra.mxu0 0
          %2464 = vmatprep.subr.bf16.mxu0 0
          %2465 = vmatpush1.bf16.msra.mxu0 0
          %2466 = vmatprep.subr.bf16.mxu0 0
          %2467 = vmatpush1.bf16.msra.mxu0 0
          %2468 = vmatprep.subr.bf16.mxu0 0
          %2469 = vmatpush1.bf16.msra.mxu0 0
          %2470 = vmatprep.subr.bf16.mxu0 0
          %2471 = vmatpush1.bf16.msra.mxu0 0
          %2472 = vmatprep.subr.bf16.mxu0 0
          %2473 = vmatpush1.bf16.msra.mxu0 0
          %2474 = vmatprep.subr.bf16.mxu0 0
          %2475 = vmatpush1.bf16.msra.mxu0 0
          %2476 = vmatprep.subr.bf16.mxu0 0
          %2477 = vmatpush1.bf16.msra.mxu0 0
          %2478 = vmatprep.subr.bf16.mxu0 0
          %2479 = vmatpush1.bf16.msra.mxu0 0
          %2480 = vmatprep.subr.bf16.mxu0 0
          %2481 = vmatpush1.bf16.msra.mxu0 0
          %2482 = vmatprep.subr.bf16.mxu0 0
          %2483 = vmatpush1.bf16.msra.mxu0 0
          %2484 = vmatprep.subr.bf16.mxu0 0
          %2485 = vmatpush1.bf16.msra.mxu0 0
          %2486 = vmatprep.subr.bf16.mxu0 0
          %2487 = vmatpush1.bf16.msra.mxu0 0
          %2488 = vmatprep.subr.bf16.mxu0 0
          %2489 = vmatpush1.bf16.msra.mxu0 0
          %2490 = vmatprep.subr.bf16.mxu0 0
          %2491 = vmatpush1.bf16.msra.mxu0 0
          %2492 = vmatprep.mubr.bf16.mxu0 0
          %2493 = vmatmul.mubr.bf16.gmra.mrb[0].mxu0 %v2446
          %v2494 = vpop.f32.mrb[0].mxu0
          %v2495 = vadd.f32 0.0, %v2494
          %v2496 = vpop.f32.mrb[0].mxu0
          %v2497 = vpop.f32.mrb[0].mxu0
          %v2498 = vadd.f32 0.0, %v2497
          %v2499 = vpop.f32.mrb[0].mxu0
          %2500 = vmatprep.mubr.bf16.mxu0 0
          %2501 = vmatmul.mubr.bf16.gmra.mrb[0].mxu0 %v2449
          %v2502 = vpop.f32.mrb[0].mxu0
          %v2503 = vadd.f32 0.0, %v2502
          %v2504 = vpop.f32.mrb[0].mxu0
          %v2505 = vpop.f32.mrb[0].mxu0
          %v2506 = vadd.f32 0.0, %v2505
          %v2507 = vpop.f32.mrb[0].mxu0
          %2508 = vmatprep.mubr.bf16.mxu0 0
          %2509 = vmatmul.mubr.bf16.gmra.mrb[0].mxu0 %v2452
          %v2510 = vpop.f32.mrb[0].mxu0
          %v2511 = vadd.f32 0.0, %v2510
          %v2512 = vpop.f32.mrb[0].mxu0
          %v2513 = vpop.f32.mrb[0].mxu0
          %v2514 = vadd.f32 0.0, %v2513
          %v2515 = vpop.f32.mrb[0].mxu0
          %2516 = vmatprep.mubr.bf16.mxu0 0
          %2517 = vmatmul.mubr.bf16.gmra.mrb[0].mxu0 %v2455
          %v2518 = vpop.f32.mrb[0].mxu0
          %v2519 = vadd.f32 0.0, %v2518
          %v2520 = vpop.f32.mrb[0].mxu0
          %v2521 = vpop.f32.mrb[0].mxu0
          %v2522 = vadd.f32 0.0, %v2521
          %v2523 = vpop.f32.mrb[0].mxu0
          %2524 = vdwg.mxu0
          %v2525 = vadd.f32 %v2399, %v2495
          %v2526 = vadd.f32 %v2400, %v2498
          %v2527 = vadd.f32 %v2401, %v2503
          %v2528 = vadd.f32 %v2402, %v2506
          %v2529 = vadd.f32 %v2403, %v2511
          %v2530 = vadd.f32 %v2404, %v2514
          %v2531 = vadd.f32 %v2405, %v2519
          %v2532 = vadd.f32 %v2406, %v2522
          %v2533 = vpack.c.bf16 %v345, %v343
          %v2534 = vpack.c.bf16 %v349, %v347
          %v2535 = vpack.c.bf16 %v353, %v351
          %v2536 = vpack.c.bf16 %v357, %v355
          %s2537 = scalar_lea.vmem %s1, 42
          %v2538 = vld [vmem:[%s2537] sm:$0x3]
          %v2540 = vsel %vm421, %v2533, 0
          %v2543 = vsel %vm421, %v2534, 0
          %v2546 = vsel %vm421, %v2535, 0
          %v2549 = vsel %vm421, %v2536, 0
          %v2552 = vand.u32 %v2538, %v437
          %2554 = vmatprep.subr.bf16.mxu0 0
          %2555 = vmatpush1.bf16.msra.mxu0 %v2552
          %2556 = vmatprep.subr.bf16.mxu0 0
          %2557 = vmatpush1.bf16.msra.mxu0 0
          %2558 = vmatprep.subr.bf16.mxu0 0
          %2559 = vmatpush1.bf16.msra.mxu0 0
          %2560 = vmatprep.subr.bf16.mxu0 0
          %2561 = vmatpush1.bf16.msra.mxu0 0
          %2562 = vmatprep.subr.bf16.mxu0 0
          %2563 = vmatpush1.bf16.msra.mxu0 0
          %2564 = vmatprep.subr.bf16.mxu0 0
          %2565 = vmatpush1.bf16.msra.mxu0 0
          %2566 = vmatprep.subr.bf16.mxu0 0
          %2567 = vmatpush1.bf16.msra.mxu0 0
          %2568 = vmatprep.subr.bf16.mxu0 0
          %2569 = vmatpush1.bf16.msra.mxu0 0
          %2570 = vmatprep.subr.bf16.mxu0 0
          %2571 = vmatpush1.bf16.msra.mxu0 0
          %2572 = vmatprep.subr.bf16.mxu0 0
          %2573 = vmatpush1.bf16.msra.mxu0 0
          %2574 = vmatprep.subr.bf16.mxu0 0
          %2575 = vmatpush1.bf16.msra.mxu0 0
          %2576 = vmatprep.subr.bf16.mxu0 0
          %2577 = vmatpush1.bf16.msra.mxu0 0
          %2578 = vmatprep.subr.bf16.mxu0 0
          %2579 = vmatpush1.bf16.msra.mxu0 0
          %2580 = vmatprep.subr.bf16.mxu0 0
          %2581 = vmatpush1.bf16.msra.mxu0 0
          %2582 = vmatprep.subr.bf16.mxu0 0
          %2583 = vmatpush1.bf16.msra.mxu0 0
          %2584 = vmatprep.subr.bf16.mxu0 0
          %2585 = vmatpush1.bf16.msra.mxu0 0
          %2586 = vmatprep.mubr.bf16.mxu0 0
          %2587 = vmatmul.mubr.bf16.gmra.mrb[0].mxu0 %v2540
          %v2588 = vpop.f32.mrb[0].mxu0
          %v2589 = vadd.f32 0.0, %v2588
          %v2590 = vpop.f32.mrb[0].mxu0
          %v2591 = vpop.f32.mrb[0].mxu0
          %v2592 = vadd.f32 0.0, %v2591
          %v2593 = vpop.f32.mrb[0].mxu0
          %2594 = vmatprep.mubr.bf16.mxu0 0
          %2595 = vmatmul.mubr.bf16.gmra.mrb[0].mxu0 %v2543
          %v2596 = vpop.f32.mrb[0].mxu0
          %v2597 = vadd.f32 0.0, %v2596
          %v2598 = vpop.f32.mrb[0].mxu0
          %v2599 = vpop.f32.mrb[0].mxu0
          %v2600 = vadd.f32 0.0, %v2599
          %v2601 = vpop.f32.mrb[0].mxu0
          %2602 = vmatprep.mubr.bf16.mxu0 0
          %2603 = vmatmul.mubr.bf16.gmra.mrb[0].mxu0 %v2546
          %v2604 = vpop.f32.mrb[0].mxu0
          %v2605 = vadd.f32 0.0, %v2604
          %v2606 = vpop.f32.mrb[0].mxu0
          %v2607 = vpop.f32.mrb[0].mxu0
          %v2608 = vadd.f32 0.0, %v2607
          %v2609 = vpop.f32.mrb[0].mxu0
          %2610 = vmatprep.mubr.bf16.mxu0 0
          %2611 = vmatmul.mubr.bf16.gmra.mrb[0].mxu0 %v2549
          %v2612 = vpop.f32.mrb[0].mxu0
          %v2613 = vadd.f32 0.0, %v2612
          %v2614 = vpop.f32.mrb[0].mxu0
          %v2615 = vpop.f32.mrb[0].mxu0
          %v2616 = vadd.f32 0.0, %v2615
          %v2617 = vpop.f32.mrb[0].mxu0
          %2618 = vdwg.mxu0
          %v2619 = vadd.f32 %v2525, %v2589
          %v2620 = vadd.f32 %v2526, %v2592
          %v2621 = vadd.f32 %v2527, %v2597
          %v2622 = vadd.f32 %v2528, %v2600
          %v2623 = vadd.f32 %v2529, %v2605
          %v2624 = vadd.f32 %v2530, %v2608
          %v2625 = vadd.f32 %v2531, %v2613
          %v2626 = vadd.f32 %v2532, %v2616
          %v2629 = vrot.slane %v357, 1
          %v2630 = vrot.slane %v358, 1
          %v2631 = vsel %vm382, %v2629, %v2630
          %v2633 = vpack.c.bf16 %v2289, %v2286
          %v2634 = vpack.c.bf16 %v2295, %v2292
          %v2635 = vpack.c.bf16 %v2301, %v2298
          %v2636 = vpack.c.bf16 %v2631, %v2304
          %s2637 = scalar_lea.vmem %s1, 44
          %v2638 = vld [vmem:[%s2637] sm:$0x3]
          %v2640 = vsel %vm421, %v2633, 0
          %v2643 = vsel %vm421, %v2634, 0
          %v2646 = vsel %vm421, %v2635, 0
          %v2649 = vsel %vm421, %v2636, 0
          %v2652 = vand.u32 %v2638, %v437
          %2654 = vmatprep.subr.bf16.mxu0 0
          %2655 = vmatpush1.bf16.msra.mxu0 %v2652
          %2656 = vmatprep.subr.bf16.mxu0 0
          %2657 = vmatpush1.bf16.msra.mxu0 0
          %2658 = vmatprep.subr.bf16.mxu0 0
          %2659 = vmatpush1.bf16.msra.mxu0 0
          %2660 = vmatprep.subr.bf16.mxu0 0
          %2661 = vmatpush1.bf16.msra.mxu0 0
          %2662 = vmatprep.subr.bf16.mxu0 0
          %2663 = vmatpush1.bf16.msra.mxu0 0
          %2664 = vmatprep.subr.bf16.mxu0 0
          %2665 = vmatpush1.bf16.msra.mxu0 0
          %2666 = vmatprep.subr.bf16.mxu0 0
          %2667 = vmatpush1.bf16.msra.mxu0 0
          %2668 = vmatprep.subr.bf16.mxu0 0
          %2669 = vmatpush1.bf16.msra.mxu0 0
          %2670 = vmatprep.subr.bf16.mxu0 0
          %2671 = vmatpush1.bf16.msra.mxu0 0
          %2672 = vmatprep.subr.bf16.mxu0 0
          %2673 = vmatpush1.bf16.msra.mxu0 0
          %2674 = vmatprep.subr.bf16.mxu0 0
          %2675 = vmatpush1.bf16.msra.mxu0 0
          %2676 = vmatprep.subr.bf16.mxu0 0
          %2677 = vmatpush1.bf16.msra.mxu0 0
          %2678 = vmatprep.subr.bf16.mxu0 0
          %2679 = vmatpush1.bf16.msra.mxu0 0
          %2680 = vmatprep.subr.bf16.mxu0 0
          %2681 = vmatpush1.bf16.msra.mxu0 0
          %2682 = vmatprep.subr.bf16.mxu0 0
          %2683 = vmatpush1.bf16.msra.mxu0 0
          %2684 = vmatprep.subr.bf16.mxu0 0
          %2685 = vmatpush1.bf16.msra.mxu0 0
          %2686 = vmatprep.mubr.bf16.mxu0 0
          %2687 = vmatmul.mubr.bf16.gmra.mrb[0].mxu0 %v2640
          %v2688 = vpop.f32.mrb[0].mxu0
          %v2689 = vadd.f32 0.0, %v2688
          %v2690 = vpop.f32.mrb[0].mxu0
          %v2691 = vpop.f32.mrb[0].mxu0
          %v2692 = vadd.f32 0.0, %v2691
          %v2693 = vpop.f32.mrb[0].mxu0
          %2694 = vmatprep.mubr.bf16.mxu0 0
          %2695 = vmatmul.mubr.bf16.gmra.mrb[0].mxu0 %v2643
          %v2696 = vpop.f32.mrb[0].mxu0
          %v2697 = vadd.f32 0.0, %v2696
          %v2698 = vpop.f32.mrb[0].mxu0
          %v2699 = vpop.f32.mrb[0].mxu0
          %v2700 = vadd.f32 0.0, %v2699
          %v2701 = vpop.f32.mrb[0].mxu0
          %2702 = vmatprep.mubr.bf16.mxu0 0
          %2703 = vmatmul.mubr.bf16.gmra.mrb[0].mxu0 %v2646
          %v2704 = vpop.f32.mrb[0].mxu0
          %v2705 = vadd.f32 0.0, %v2704
          %v2706 = vpop.f32.mrb[0].mxu0
          %v2707 = vpop.f32.mrb[0].mxu0
          %v2708 = vadd.f32 0.0, %v2707
          %v2709 = vpop.f32.mrb[0].mxu0
          %2710 = vmatprep.mubr.bf16.mxu0 0
          %2711 = vmatmul.mubr.bf16.gmra.mrb[0].mxu0 %v2649
          %v2712 = vpop.f32.mrb[0].mxu0
          %v2713 = vadd.f32 0.0, %v2712
          %v2714 = vpop.f32.mrb[0].mxu0
          %v2715 = vpop.f32.mrb[0].mxu0
          %v2716 = vadd.f32 0.0, %v2715
          %v2717 = vpop.f32.mrb[0].mxu0
          %2718 = vdwg.mxu0
          %v2719 = vadd.f32 %v2619, %v2689
          %v2720 = vadd.f32 %v2620, %v2692
          %v2721 = vadd.f32 %v2621, %v2697
          %v2722 = vadd.f32 %v2622, %v2700
          %v2723 = vadd.f32 %v2623, %v2705
          %v2724 = vadd.f32 %v2624, %v2708
          %v2725 = vadd.f32 %v2625, %v2713
          %v2726 = vadd.f32 %v2626, %v2716
          %v2727 = vrot.slane %v357, 2
          %v2728 = vrot.slane %v358, 2
          %v2729 = vsel %vm586, %v2727, %v2728
          %v2731 = vpack.c.bf16 %v2415, %v2412
          %v2732 = vpack.c.bf16 %v2421, %v2418
          %v2733 = vpack.c.bf16 %v2427, %v2424
          %v2734 = vpack.c.bf16 %v2729, %v2430
          %s2735 = scalar_lea.vmem %s1, 46
          %v2736 = vld [vmem:[%s2735] sm:$0x3]
          %v2738 = vsel %vm421, %v2731, 0
          %v2741 = vsel %vm421, %v2732, 0
          %v2744 = vsel %vm421, %v2733, 0
          %v2747 = vsel %vm421, %v2734, 0
          %v2750 = vand.u32 %v2736, %v437
          %2752 = vmatprep.subr.bf16.mxu0 0
          %2753 = vmatpush1.bf16.msra.mxu0 %v2750
          %2754 = vmatprep.subr.bf16.mxu0 0
          %2755 = vmatpush1.bf16.msra.mxu0 0
          %2756 = vmatprep.subr.bf16.mxu0 0
          %2757 = vmatpush1.bf16.msra.mxu0 0
          %2758 = vmatprep.subr.bf16.mxu0 0
          %2759 = vmatpush1.bf16.msra.mxu0 0
          %2760 = vmatprep.subr.bf16.mxu0 0
          %2761 = vmatpush1.bf16.msra.mxu0 0
          %2762 = vmatprep.subr.bf16.mxu0 0
          %2763 = vmatpush1.bf16.msra.mxu0 0
          %2764 = vmatprep.subr.bf16.mxu0 0
          %2765 = vmatpush1.bf16.msra.mxu0 0
          %2766 = vmatprep.subr.bf16.mxu0 0
          %2767 = vmatpush1.bf16.msra.mxu0 0
          %2768 = vmatprep.subr.bf16.mxu0 0
          %2769 = vmatpush1.bf16.msra.mxu0 0
          %2770 = vmatprep.subr.bf16.mxu0 0
          %2771 = vmatpush1.bf16.msra.mxu0 0
          %2772 = vmatprep.subr.bf16.mxu0 0
          %2773 = vmatpush1.bf16.msra.mxu0 0
          %2774 = vmatprep.subr.bf16.mxu0 0
          %2775 = vmatpush1.bf16.msra.mxu0 0
          %2776 = vmatprep.subr.bf16.mxu0 0
          %2777 = vmatpush1.bf16.msra.mxu0 0
          %2778 = vmatprep.subr.bf16.mxu0 0
          %2779 = vmatpush1.bf16.msra.mxu0 0
          %2780 = vmatprep.subr.bf16.mxu0 0
          %2781 = vmatpush1.bf16.msra.mxu0 0
          %2782 = vmatprep.subr.bf16.mxu0 0
          %2783 = vmatpush1.bf16.msra.mxu0 0
          %2784 = vmatprep.mubr.bf16.mxu0 0
          %2785 = vmatmul.mubr.bf16.gmra.mrb[0].mxu0 %v2738
          %v2786 = vpop.f32.mrb[0].mxu0
          %v2787 = vadd.f32 0.0, %v2786
          %v2788 = vpop.f32.mrb[0].mxu0
          %v2789 = vpop.f32.mrb[0].mxu0
          %v2790 = vadd.f32 0.0, %v2789
          %v2791 = vpop.f32.mrb[0].mxu0
          %2792 = vmatprep.mubr.bf16.mxu0 0
          %2793 = vmatmul.mubr.bf16.gmra.mrb[0].mxu0 %v2741
          %v2794 = vpop.f32.mrb[0].mxu0
          %v2795 = vadd.f32 0.0, %v2794
          %v2796 = vpop.f32.mrb[0].mxu0
          %v2797 = vpop.f32.mrb[0].mxu0
          %v2798 = vadd.f32 0.0, %v2797
          %v2799 = vpop.f32.mrb[0].mxu0
          %2800 = vmatprep.mubr.bf16.mxu0 0
          %2801 = vmatmul.mubr.bf16.gmra.mrb[0].mxu0 %v2744
          %v2802 = vpop.f32.mrb[0].mxu0
          %v2803 = vadd.f32 0.0, %v2802
          %v2804 = vpop.f32.mrb[0].mxu0
          %v2805 = vpop.f32.mrb[0].mxu0
          %v2806 = vadd.f32 0.0, %v2805
          %v2807 = vpop.f32.mrb[0].mxu0
          %2808 = vmatprep.mubr.bf16.mxu0 0
          %2809 = vmatmul.mubr.bf16.gmra.mrb[0].mxu0 %v2747
          %v2810 = vpop.f32.mrb[0].mxu0
          %v2811 = vadd.f32 0.0, %v2810
          %v2812 = vpop.f32.mrb[0].mxu0
          %v2813 = vpop.f32.mrb[0].mxu0
          %v2814 = vadd.f32 0.0, %v2813
          %v2815 = vpop.f32.mrb[0].mxu0
          %2816 = vdwg.mxu0
          %v2817 = vadd.f32 %v2719, %v2787
          %v2818 = vadd.f32 %v2720, %v2790
          %v2819 = vadd.f32 %v2721, %v2795
          %v2820 = vadd.f32 %v2722, %v2798
          %v2821 = vadd.f32 %v2723, %v2803
          %v2822 = vadd.f32 %v2724, %v2806
          %v2823 = vadd.f32 %v2725, %v2811
          %v2824 = vadd.f32 %v2726, %v2814
          %v2825 = vpack.c.bf16 %v359, %v357
          %s2826 = scalar_lea.vmem %s1, 48
          %v2827 = vld [vmem:[%s2826] sm:$0x3]
          %v2829 = vsel %vm421, %v2825, 0
          %v2832 = vand.u32 %v2827, %v437
          %2834 = vmatprep.subr.bf16.mxu0 0
          %2835 = vmatpush1.bf16.msra.mxu0 %v2832
          %2836 = vmatprep.subr.bf16.mxu0 0
          %2837 = vmatpush1.bf16.msra.mxu0 0
          %2838 = vmatprep.subr.bf16.mxu0 0
          %2839 = vmatpush1.bf16.msra.mxu0 0
          %2840 = vmatprep.subr.bf16.mxu0 0
          %2841 = vmatpush1.bf16.msra.mxu0 0
          %2842 = vmatprep.subr.bf16.mxu0 0
          %2843 = vmatpush1.bf16.msra.mxu0 0
          %2844 = vmatprep.subr.bf16.mxu0 0
          %2845 = vmatpush1.bf16.msra.mxu0 0
          %2846 = vmatprep.subr.bf16.mxu0 0
          %2847 = vmatpush1.bf16.msra.mxu0 0
          %2848 = vmatprep.subr.bf16.mxu0 0
          %2849 = vmatpush1.bf16.msra.mxu0 0
          %2850 = vmatprep.subr.bf16.mxu0 0
          %2851 = vmatpush1.bf16.msra.mxu0 0
          %2852 = vmatprep.subr.bf16.mxu0 0
          %2853 = vmatpush1.bf16.msra.mxu0 0
          %2854 = vmatprep.subr.bf16.mxu0 0
          %2855 = vmatpush1.bf16.msra.mxu0 0
          %2856 = vmatprep.subr.bf16.mxu0 0
          %2857 = vmatpush1.bf16.msra.mxu0 0
          %2858 = vmatprep.subr.bf16.mxu0 0
          %2859 = vmatpush1.bf16.msra.mxu0 0
          %2860 = vmatprep.subr.bf16.mxu0 0
          %2861 = vmatpush1.bf16.msra.mxu0 0
          %2862 = vmatprep.subr.bf16.mxu0 0
          %2863 = vmatpush1.bf16.msra.mxu0 0
          %2864 = vmatprep.subr.bf16.mxu0 0
          %2865 = vmatpush1.bf16.msra.mxu0 0
          %2866 = vmatprep.mubr.bf16.mxu0 0
          %2867 = vmatmul.mubr.bf16.gmra.mrb[0].mxu0 %v2181
          %v2868 = vpop.f32.mrb[0].mxu0
          %v2869 = vadd.f32 0.0, %v2868
          %v2870 = vpop.f32.mrb[0].mxu0
          %v2871 = vpop.f32.mrb[0].mxu0
          %v2872 = vadd.f32 0.0, %v2871
          %v2873 = vpop.f32.mrb[0].mxu0
          %2874 = vmatprep.mubr.bf16.mxu0 0
          %2875 = vmatmul.mubr.bf16.gmra.mrb[0].mxu0 %v2184
          %v2876 = vpop.f32.mrb[0].mxu0
          %v2877 = vadd.f32 0.0, %v2876
          %v2878 = vpop.f32.mrb[0].mxu0
          %v2879 = vpop.f32.mrb[0].mxu0
          %v2880 = vadd.f32 0.0, %v2879
          %v2881 = vpop.f32.mrb[0].mxu0
          %2882 = vmatprep.mubr.bf16.mxu0 0
          %2883 = vmatmul.mubr.bf16.gmra.mrb[0].mxu0 %v2187
          %v2884 = vpop.f32.mrb[0].mxu0
          %v2885 = vadd.f32 0.0, %v2884
          %v2886 = vpop.f32.mrb[0].mxu0
          %v2887 = vpop.f32.mrb[0].mxu0
          %v2888 = vadd.f32 0.0, %v2887
          %v2889 = vpop.f32.mrb[0].mxu0
          %2890 = vmatprep.mubr.bf16.mxu0 0
          %2891 = vmatmul.mubr.bf16.gmra.mrb[0].mxu0 %v2829
          %v2892 = vpop.f32.mrb[0].mxu0
          %v2893 = vadd.f32 0.0, %v2892
          %v2894 = vpop.f32.mrb[0].mxu0
          %v2895 = vpop.f32.mrb[0].mxu0
          %v2896 = vadd.f32 0.0, %v2895
          %v2897 = vpop.f32.mrb[0].mxu0
          %2898 = vdwg.mxu0
          %v2899 = vadd.f32 %v2817, %v2869
          %v2900 = vadd.f32 %v2818, %v2872
          %v2901 = vadd.f32 %v2819, %v2877
          %v2902 = vadd.f32 %v2820, %v2880
          %v2903 = vadd.f32 %v2821, %v2885
          %v2904 = vadd.f32 %v2822, %v2888
          %v2905 = vadd.f32 %v2823, %v2893
          %v2906 = vadd.f32 %v2824, %v2896
          %v2909 = vrot.slane %v359, 1
          %v2910 = vrot.slane %v360, 1
          %v2911 = vsel %vm382, %v2909, %v2910
          %v2913 = vpack.c.bf16 %v2911, %v2631
          %s2914 = scalar_lea.vmem %s1, 50
          %v2915 = vld [vmem:[%s2914] sm:$0x3]
          %v2917 = vsel %vm421, %v2913, 0
          %v2920 = vand.u32 %v2915, %v437
          %2922 = vmatprep.subr.bf16.mxu0 0
          %2923 = vmatpush1.bf16.msra.mxu0 %v2920
          %2924 = vmatprep.subr.bf16.mxu0 0
          %2925 = vmatpush1.bf16.msra.mxu0 0
          %2926 = vmatprep.subr.bf16.mxu0 0
          %2927 = vmatpush1.bf16.msra.mxu0 0
          %2928 = vmatprep.subr.bf16.mxu0 0
          %2929 = vmatpush1.bf16.msra.mxu0 0
          %2930 = vmatprep.subr.bf16.mxu0 0
          %2931 = vmatpush1.bf16.msra.mxu0 0
          %2932 = vmatprep.subr.bf16.mxu0 0
          %2933 = vmatpush1.bf16.msra.mxu0 0
          %2934 = vmatprep.subr.bf16.mxu0 0
          %2935 = vmatpush1.bf16.msra.mxu0 0
          %2936 = vmatprep.subr.bf16.mxu0 0
          %2937 = vmatpush1.bf16.msra.mxu0 0
          %2938 = vmatprep.subr.bf16.mxu0 0
          %2939 = vmatpush1.bf16.msra.mxu0 0
          %2940 = vmatprep.subr.bf16.mxu0 0
          %2941 = vmatpush1.bf16.msra.mxu0 0
          %2942 = vmatprep.subr.bf16.mxu0 0
          %2943 = vmatpush1.bf16.msra.mxu0 0
          %2944 = vmatprep.subr.bf16.mxu0 0
          %2945 = vmatpush1.bf16.msra.mxu0 0
          %2946 = vmatprep.subr.bf16.mxu0 0
          %2947 = vmatpush1.bf16.msra.mxu0 0
          %2948 = vmatprep.subr.bf16.mxu0 0
          %2949 = vmatpush1.bf16.msra.mxu0 0
          %2950 = vmatprep.subr.bf16.mxu0 0
          %2951 = vmatpush1.bf16.msra.mxu0 0
          %2952 = vmatprep.subr.bf16.mxu0 0
          %2953 = vmatpush1.bf16.msra.mxu0 0
          %2954 = vmatprep.mubr.bf16.mxu0 0
          %2955 = vmatmul.mubr.bf16.gmra.mrb[0].mxu0 %v2323
          %v2956 = vpop.f32.mrb[0].mxu0
          %v2957 = vadd.f32 0.0, %v2956
          %v2958 = vpop.f32.mrb[0].mxu0
          %v2959 = vpop.f32.mrb[0].mxu0
          %v2960 = vadd.f32 0.0, %v2959
          %v2961 = vpop.f32.mrb[0].mxu0
          %2962 = vmatprep.mubr.bf16.mxu0 0
          %2963 = vmatmul.mubr.bf16.gmra.mrb[0].mxu0 %v2326
          %v2964 = vpop.f32.mrb[0].mxu0
          %v2965 = vadd.f32 0.0, %v2964
          %v2966 = vpop.f32.mrb[0].mxu0
          %v2967 = vpop.f32.mrb[0].mxu0
          %v2968 = vadd.f32 0.0, %v2967
          %v2969 = vpop.f32.mrb[0].mxu0
          %2970 = vmatprep.mubr.bf16.mxu0 0
          %2971 = vmatmul.mubr.bf16.gmra.mrb[0].mxu0 %v2329
          %v2972 = vpop.f32.mrb[0].mxu0
          %v2973 = vadd.f32 0.0, %v2972
          %v2974 = vpop.f32.mrb[0].mxu0
          %v2975 = vpop.f32.mrb[0].mxu0
          %v2976 = vadd.f32 0.0, %v2975
          %v2977 = vpop.f32.mrb[0].mxu0
          %2978 = vmatprep.mubr.bf16.mxu0 0
          %2979 = vmatmul.mubr.bf16.gmra.mrb[0].mxu0 %v2917
          %v2980 = vpop.f32.mrb[0].mxu0
          %v2981 = vadd.f32 0.0, %v2980
          %v2982 = vpop.f32.mrb[0].mxu0
          %v2983 = vpop.f32.mrb[0].mxu0
          %v2984 = vadd.f32 0.0, %v2983
          %v2985 = vpop.f32.mrb[0].mxu0
          %2986 = vdwg.mxu0
          %v2987 = vadd.f32 %v2899, %v2957
          %v2988 = vadd.f32 %v2900, %v2960
          %v2989 = vadd.f32 %v2901, %v2965
          %v2990 = vadd.f32 %v2902, %v2968
          %v2991 = vadd.f32 %v2903, %v2973
          %v2992 = vadd.f32 %v2904, %v2976
          %v2993 = vadd.f32 %v2905, %v2981
          %v2994 = vadd.f32 %v2906, %v2984
          %v2995 = vrot.slane %v359, 2
          %v2996 = vrot.slane %v360, 2
          %v2997 = vsel %vm586, %v2995, %v2996
          %v2999 = vpack.c.bf16 %v2997, %v2729
          %s3000 = scalar_lea.vmem %s1, 52
          %v3001 = vld [vmem:[%s3000] sm:$0x3]
          %v3003 = vsel %vm421, %v2999, 0
          %v3006 = vand.u32 %v3001, %v437
          %3008 = vmatprep.subr.bf16.mxu0 0
          %3009 = vmatpush1.bf16.msra.mxu0 %v3006
          %3010 = vmatprep.subr.bf16.mxu0 0
          %3011 = vmatpush1.bf16.msra.mxu0 0
          %3012 = vmatprep.subr.bf16.mxu0 0
          %3013 = vmatpush1.bf16.msra.mxu0 0
          %3014 = vmatprep.subr.bf16.mxu0 0
          %3015 = vmatpush1.bf16.msra.mxu0 0
          %3016 = vmatprep.subr.bf16.mxu0 0
          %3017 = vmatpush1.bf16.msra.mxu0 0
          %3018 = vmatprep.subr.bf16.mxu0 0
          %3019 = vmatpush1.bf16.msra.mxu0 0
          %3020 = vmatprep.subr.bf16.mxu0 0
          %3021 = vmatpush1.bf16.msra.mxu0 0
          %3022 = vmatprep.subr.bf16.mxu0 0
          %3023 = vmatpush1.bf16.msra.mxu0 0
          %3024 = vmatprep.subr.bf16.mxu0 0
          %3025 = vmatpush1.bf16.msra.mxu0 0
          %3026 = vmatprep.subr.bf16.mxu0 0
          %3027 = vmatpush1.bf16.msra.mxu0 0
          %3028 = vmatprep.subr.bf16.mxu0 0
          %3029 = vmatpush1.bf16.msra.mxu0 0
          %3030 = vmatprep.subr.bf16.mxu0 0
          %3031 = vmatpush1.bf16.msra.mxu0 0
          %3032 = vmatprep.subr.bf16.mxu0 0
          %3033 = vmatpush1.bf16.msra.mxu0 0
          %3034 = vmatprep.subr.bf16.mxu0 0
          %3035 = vmatpush1.bf16.msra.mxu0 0
          %3036 = vmatprep.subr.bf16.mxu0 0
          %3037 = vmatpush1.bf16.msra.mxu0 0
          %3038 = vmatprep.subr.bf16.mxu0 0
          %3039 = vmatpush1.bf16.msra.mxu0 0
          %3040 = vmatprep.mubr.bf16.mxu0 0
          %3041 = vmatmul.mubr.bf16.gmra.mrb[0].mxu0 %v2449
          %v3042 = vpop.f32.mrb[0].mxu0
          %v3043 = vadd.f32 0.0, %v3042
          %v3044 = vpop.f32.mrb[0].mxu0
          %v3045 = vpop.f32.mrb[0].mxu0
          %v3046 = vadd.f32 0.0, %v3045
          %v3047 = vpop.f32.mrb[0].mxu0
          %3048 = vmatprep.mubr.bf16.mxu0 0
          %3049 = vmatmul.mubr.bf16.gmra.mrb[0].mxu0 %v2452
          %v3050 = vpop.f32.mrb[0].mxu0
          %v3051 = vadd.f32 0.0, %v3050
          %v3052 = vpop.f32.mrb[0].mxu0
          %v3053 = vpop.f32.mrb[0].mxu0
          %v3054 = vadd.f32 0.0, %v3053
          %v3055 = vpop.f32.mrb[0].mxu0
          %3056 = vmatprep.mubr.bf16.mxu0 0
          %3057 = vmatmul.mubr.bf16.gmra.mrb[0].mxu0 %v2455
          %v3058 = vpop.f32.mrb[0].mxu0
          %v3059 = vadd.f32 0.0, %v3058
          %v3060 = vpop.f32.mrb[0].mxu0
          %v3061 = vpop.f32.mrb[0].mxu0
          %v3062 = vadd.f32 0.0, %v3061
          %v3063 = vpop.f32.mrb[0].mxu0
          %3064 = vmatprep.mubr.bf16.mxu0 0
          %3065 = vmatmul.mubr.bf16.gmra.mrb[0].mxu0 %v3003
          %v3066 = vpop.f32.mrb[0].mxu0
          %v3067 = vadd.f32 0.0, %v3066
          %v3068 = vpop.f32.mrb[0].mxu0
          %v3069 = vpop.f32.mrb[0].mxu0
          %v3070 = vadd.f32 0.0, %v3069
          %v3071 = vpop.f32.mrb[0].mxu0
          %3072 = vdwg.mxu0
          %v3073 = vadd.f32 %v2987, %v3043
          %v3074 = vadd.f32 %v2988, %v3046
          %v3075 = vadd.f32 %v2989, %v3051
          %v3076 = vadd.f32 %v2990, %v3054
          %v3077 = vadd.f32 %v2991, %v3059
          %v3078 = vadd.f32 %v2992, %v3062
          %v3079 = vadd.f32 %v2993, %v3067
          %v3080 = vadd.f32 %v2994, %v3070
          %v3081 = vld [vmem:[%s2] sm:$0x1]
          %v3083 = vlaneseq
          %v3084 = vshrl.u32 %v3083, 7
          %v3085 = vsub.s32 0, %v3084
          %v3086 = vrot.slane %v3081, %v3085
          %v3088 = vadd.f32 %v3073, %v3086
          %v3089 = vadd.f32 %v3074, %v3086
          %v3090 = vadd.f32 %v3075, %v3086
          %v3091 = vadd.f32 %v3076, %v3086
          %v3092 = vadd.f32 %v3077, %v3086
          %v3093 = vadd.f32 %v3078, %v3086
          %v3094 = vadd.f32 %v3079, %v3086
          %v3095 = vadd.f32 %v3080, %v3086
          %v3096 = vmax.f32 %v3088, 0.0
          %v3097 = vmax.f32 %v3089, 0.0
          %v3098 = vmax.f32 %v3090, 0.0
          %v3099 = vmax.f32 %v3091, 0.0
          %v3100 = vmax.f32 %v3092, 0.0
          %v3101 = vmax.f32 %v3093, 0.0
          %v3102 = vmax.f32 %v3094, 0.0
          %v3103 = vmax.f32 %v3095, 0.0
          %vm3104 = vcmask 261120
          %v3105 = vsel %vm3104, %v3096, 0.0
          %v3106 = vsel %vm3104, %v3097, 0.0
          %v3107 = vadd.f32 %v3105, %v3106
          %v3108 = vsel %vm3104, %v3098, 0.0
          %v3109 = vadd.f32 %v3107, %v3108
          %v3110 = vsel %vm3104, %v3099, 0.0
          %v3111 = vadd.f32 %v3109, %v3110
          %v3112 = vsel %vm3104, %v3100, 0.0
          %v3113 = vadd.f32 %v3111, %v3112
          %v3114 = vsel %vm3104, %v3101, 0.0
          %v3115 = vadd.f32 %v3113, %v3114
          %v3116 = vsel %vm3104, %v3102, 0.0
          %v3117 = vadd.f32 %v3115, %v3116
          %v3118 = vsel %vm3104, %v3103, 0.0
          %v3119 = vadd.f32 %v3117, %v3118
          %v3120 = vrot.slane %v3119, 4
          %v3121 = vadd.f32 %v3119, %v3120
          %v3122 = vrot.slane %v3121, 2
          %v3123 = vadd.f32 %v3121, %v3122
          %v3124 = vrot.slane %v3123, 1
          %v3125 = vadd.f32 %v3123, %v3124
          %v3126 = vadd.f32 %v229, %v3125
        $region45: #{base_video_model_forward.1} parent=39 // loop_footer
          %s228 = sadd.s32 1, %s224
        $region46: #{base_video_model_forward.1} parent=39 // loop_footer_branch
          %223 = sbr.rel target = $region42
        $region47: #{base_video_model_forward.1} parent=39 // loop_exit
          _
        %v3127 = vmul.f32 %v229, 0.00390625
        %v3128 = vld [vmem:[%s3] sm:$0xff]
        %v3129 = vld [vmem:[%s3 + $0x8] sm:$0xff]
        %v3130 = vld [vmem:[%s3 + $0x10] sm:$0xff]
        %v3131 = vld [vmem:[%s3 + $0x18] sm:$0xff]
        %v3132 = vld [vmem:[%s4] sm:$0x1]
        %vm3133 = vcmask 261120
        %v3135 = vsel %vm3133, %v3127, 0
        %3137 = vmatprep.subr.mxu0 0.0
        %3138 = vmatpush1.msra.mxu0 %v3128
        %3139 = vmatprep.subr.mxu0 0.0
        %3140 = vmatpush1.msra.mxu0 %v3129
        %3141 = vmatprep.subr.mxu0 0.0
        %3142 = vmatpush1.msra.mxu0 %v3130
        %3143 = vmatprep.subr.mxu0 0.0
        %3144 = vmatpush1.msra.mxu0 %v3131
        %3145 = vmatprep.subr.mxu0 0.0
        %3146 = vmatpush1.msra.mxu0 0.0
        %3147 = vmatprep.subr.mxu0 0.0
        %3148 = vmatpush1.msra.mxu0 0.0
        %3149 = vmatprep.subr.mxu0 0.0
        %3150 = vmatpush1.msra.mxu0 0.0
        %3151 = vmatprep.subr.mxu0 0.0
        %3152 = vmatpush1.msra.mxu0 0.0
        %3153 = vmatprep.subr.mxu0 0.0
        %3154 = vmatpush1.msra.mxu0 0.0
        %3155 = vmatprep.subr.mxu0 0.0
        %3156 = vmatpush1.msra.mxu0 0.0
        %3157 = vmatprep.subr.mxu0 0.0
        %3158 = vmatpush1.msra.mxu0 0.0
        %3159 = vmatprep.subr.mxu0 0.0
        %3160 = vmatpush1.msra.mxu0 0.0
        %3161 = vmatprep.subr.mxu0 0.0
        %3162 = vmatpush1.msra.mxu0 0.0
        %3163 = vmatprep.subr.mxu0 0.0
        %3164 = vmatpush1.msra.mxu0 0.0
        %3165 = vmatprep.subr.mxu0 0.0
        %3166 = vmatpush1.msra.mxu0 0.0
        %3167 = vmatprep.subr.mxu0 0.0
        %3168 = vmatpush1.msra.mxu0 0.0
        %3169 = vmatprep.subr.mxu0 0.0
        %3170 = vmatpush1.msra.mxu0 0.0
        %3171 = vmatprep.subr.mxu0 0.0
        %3172 = vmatpush1.msra.mxu0 0.0
        %3173 = vmatprep.subr.mxu0 0.0
        %3174 = vmatpush1.msra.mxu0 0.0
        %3175 = vmatprep.subr.mxu0 0.0
        %3176 = vmatpush1.msra.mxu0 0.0
        %3177 = vmatprep.subr.mxu0 0.0
        %3178 = vmatpush1.msra.mxu0 0.0
        %3179 = vmatprep.subr.mxu0 0.0
        %3180 = vmatpush1.msra.mxu0 0.0
        %3181 = vmatprep.subr.mxu0 0.0
        %3182 = vmatpush1.msra.mxu0 0.0
        %3183 = vmatprep.subr.mxu0 0.0
        %3184 = vmatpush1.msra.mxu0 0.0
        %3185 = vmatprep.subr.mxu0 0.0
        %3186 = vmatpush1.msra.mxu0 0.0
        %3187 = vmatprep.subr.mxu0 0.0
        %3188 = vmatpush1.msra.mxu0 0.0
        %3189 = vmatprep.subr.mxu0 0.0
        %3190 = vmatpush1.msra.mxu0 0.0
        %3191 = vmatprep.subr.mxu0 0.0
        %3192 = vmatpush1.msra.mxu0 0.0
        %3193 = vmatprep.subr.mxu0 0.0
        %3194 = vmatpush1.msra.mxu0 0.0
        %3195 = vmatprep.subr.mxu0 0.0
        %3196 = vmatpush1.msra.mxu0 0.0
        %3197 = vmatprep.subr.mxu0 0.0
        %3198 = vmatpush1.msra.mxu0 0.0
        %3199 = vmatprep.subr.mxu0 0.0
        %3200 = vmatpush1.msra.mxu0 0.0
        %3201 = vmatprep.mubr.f32.mxu0 0.0
        %3202 = vmatmul.mubr.f32.gmra.mrb[0].mxu0 %v3135
        %v3203 = vpop.f32.mrb[0].mxu0
        %v3204 = vadd.f32 %v3132, %v3203
        %v3205 = vpop.f32.mrb[0].mxu0
        %3206 = vdwg.mxu0
        %vm3207 = vcmask 73728
        %3208 = vst.msk [vmem:[%s216] sm:$0x1] %vm3207, %v3204
        %s3209 = sand.u32 %s137, 1
        %s3210 = scalar_lea.sflag [#allocation3], %s3209
        %s3211 = sand.u32 %s137, 1
        %s3212 = scalar_lea.vmem [#allocation2], %s3211
        // Predicated region
        $region48: #{base_video_model_forward.1} parent=39 // pred_check
          %p3213 = pneg %p147
        $region49: #{base_video_model_forward.1} parent=39 // pred_check_branch
          %3215 = sbr.rel (%p3213) target = $region51
        $region50: #{base_video_model_forward.1} parent=39 // pred_region
          %s3217 = ssub.s32 16, 16
          %3218 = vsyncadd %s3210, %s3217
          %s3219 = smul.addr %s19, 16
          %s3220 = scalar_lea.hbm %s5, %s3219
          %s3222 = sshll.u32 %s3212, 4
          %s3223 = int_to_ptr.vmem [resolvable:$true] %s3222
          %3225 = dma.vmem_to_hbm [thread:$0]  %s3223, 16, %s3220, %s3210
        $region51: #{base_video_model_forward.1} parent=39 // pred_fallthru
          _
      $region40: #{base_video_model_forward.1} parent=5 // pred_fallthru
        _
      %p3226 = scmp.le.s32.totalorder 2, %s14
      // Predicated region
      $region52: #{base_video_model_forward.1} parent=5 // pred_check
        %p3227 = pneg %p3226
      $region53: #{base_video_model_forward.1} parent=5 // pred_check_branch
        %3229 = sbr.rel (%p3227) target = $region55
      $region54: #{base_video_model_forward.1} parent=5 // pred_region
        %s3230 = ssub.s32 %s14, 2
        // Predicated region
        $region56: #{base_video_model_forward.1} parent=54 // pred_check
          %p3231 = pneg %p153
        $region57: #{base_video_model_forward.1} parent=54 // pred_check_branch
          %3233 = sbr.rel (%p3231) target = $region59
        $region58: #{base_video_model_forward.1} parent=54 // pred_region
          %s3234 = sand.u32 %s138, 1
          %s3235 = scalar_lea.sflag [#allocation3], %s3234
          %s3236 = sand.u32 %s138, 1
          %s3237 = scalar_lea.vmem [#allocation2], %s3236
          %3238 = dma.done %s3235, 16
        $region59: #{base_video_model_forward.1} parent=54 // pred_fallthru
          _
      $region55: #{base_video_model_forward.1} parent=5 // pred_fallthru
        _
    $region6: #{base_video_model_forward.1} parent=1 // loop_footer
      %s18 = sadd.s32 1, %s14
    $region7: #{base_video_model_forward.1} parent=1 // loop_footer_branch
      %13 = sbr.rel target = $region3
    $region8: #{base_video_model_forward.1} parent=1 // loop_exit
      _
    %3239 = vsyncpa [#allocation3], 1
    %s3240 = scalar_lea.sflag [#allocation3], 1
    %3241 = vsyncpa %s3240, 1

</llo_original>
